<compile_context>
chip_gen: v7x
topology: tpu7x:2x2x1
jax: 0.10.0
libtpu: 0.0.40
codegen_flags: <defaults>
</compile_context>

<pallas_src>
import math
import functools

import jax
import jax.numpy as jnp
import numpy as np
from jax import lax
from jax.experimental import pallas as pl
from jax.experimental.pallas import tpu as pltpu


# ----------------------------- static conv plan -----------------------------

_CONV_STRIDES = (1, 2, 2, 2, 2, 2)
_CONV_RELU = (True, True, True, True, True, False)
_K, _PAD = 3, 1


def _conv_plan(l_in):
    """Per conv stage, per output position: tuple of K input indices (None = zero pad)."""
    plan = []
    L = l_in
    for stride in _CONV_STRIDES:
        l_out = (L + 2 * _PAD - _K) // stride + 1
        taps = []
        for lo in range(l_out):
            row = []
            for k in range(_K):
                li = lo * stride + k - _PAD
                row.append(li if 0 <= li < L else None)
            taps.append(tuple(row))
        plan.append(tuple(taps))
        L = l_out
    return tuple(plan), L


# ------------------------------- fused kernel -------------------------------

def _fused_forward_kernel(x_ref, encw_ref, vec_ref, convw_ref, headw_ref,
                          pred_ref, feat_ref, *,
                          S, B, E, nhead, nhid, nlayers, hidden_dim, conv_plan):
    N = B * S
    dh = E // nhead
    hd2 = hidden_dim // 2
    scale = 1.0 / math.sqrt(dh)
    vbase = 8 * nlayers          # first conv-bias row in the vector slab

    def vec(r, w):
        return vec_ref[r:r + 1, :w]                       # (1, w)

    def layernorm(z, g, b):
        mu = jnp.mean(z, axis=-1, keepdims=True)
        d = z - mu
        var = jnp.mean(d * d, axis=-1, keepdims=True)
        return d * lax.rsqrt(var + 1e-5) * g + b

    x = x_ref[...]                                        # (N, E), PE already added

    # Additive attention mask, built in-kernel (no HBM DMA): block-diagonal
    # causal mask (batches share one (N, N) score matrix per head).
    row = lax.broadcasted_iota(jnp.int32, (N, N), 0)
    col = lax.broadcasted_iota(jnp.int32, (N, N), 1)
    if S & (S - 1) == 0:                                  # power-of-two fast path
        blk_start = row - (row & (S - 1))
        allowed = jnp.logical_and(col <= row, col >= blk_start)
    else:                                                 # safe fallback
        allowed = None
        for b in range(B):
            lo, hi = b * S, (b + 1) * S
            blk = (row >= lo) & (row < hi) & (col >= lo) & (col <= row)
            allowed = blk if allowed is None else jnp.logical_or(allowed, blk)
    mask = jnp.where(allowed, 0.0, -1e30).astype(jnp.float32)

    # --------------------- TransformerEncoder (post-norm) ---------------------
    for l in range(nlayers):
        wq_all = encw_ref[l * 4 + 0]                      # (Rmax, Cmax)
        wo_all = encw_ref[l * 4 + 1]
        w1_all = encw_ref[l * 4 + 2]
        w2_all = encw_ref[l * 4 + 3]
        wq = wq_all[:E, :3 * E]                           # (E, 3E)
        wo = wo_all[:E, :E]                               # (E, E)
        w1 = w1_all[:E, :nhid]                            # (E, nhid)
        w2 = w2_all[:nhid, :E]                            # (nhid, E)

        vb = 8 * l
        b_qkv = vec(vb + 0, 3 * E)
        b_o = vec(vb + 1, E)
        g1, be1 = vec(vb + 2, E), vec(vb + 3, E)
        b_f1 = vec(vb + 4, nhid)
        b_f2 = vec(vb + 5, E)
        g2, be2 = vec(vb + 6, E), vec(vb + 7, E)

        # Fused QKV projection: one matmul, lane-dense (N, 3E) result.
        qkv = jnp.dot(x, wq, preferred_element_type=jnp.float32) + b_qkv

        outs = []
        for h in range(nhead):
            q = qkv[:, h * dh:(h + 1) * dh]
            k = qkv[:, E + h * dh: E + (h + 1) * dh]
            v = qkv[:, 2 * E + h * dh: 2 * E + (h + 1) * dh]
            s = lax.dot_general(q, k, (((1,), (1,)), ((), ())),
                                preferred_element_type=jnp.float32) * scale + mask
            m = jnp.max(s, axis=-1, keepdims=True)
            e = jnp.exp(s - m)
            p = e * pl.reciprocal(jnp.sum(e, axis=-1, keepdims=True), approx=True)
            outs.append(jnp.dot(p, v, preferred_element_type=jnp.float32))  # (N, dh)

        # Single head-concatenated output projection.
        o_cat = jnp.concatenate(outs, axis=-1)            # (N, E)
        attn = jnp.dot(o_cat, wo, preferred_element_type=jnp.float32) + b_o
        x = layernorm(x + attn, g1, be1)

        hmid = jnp.maximum(
            jnp.dot(x, w1, preferred_element_type=jnp.float32) + b_f1, 0.0)
        ff = jnp.dot(hmid, w2, preferred_element_type=jnp.float32) + b_f2
        x = layernorm(x + ff, g2, be2)

    # ------------ permute(0,2,1) + Conv1d decoder as per-position matmuls ------------
    # Conv input (N=S, C=E, L=B); position l of the length axis is batch b, and
    # its (S, C) slab is a contiguous row block of the batch-major activations.
    ys = [x[b * S:(b + 1) * S, :] for b in range(B)]
    c_in = E
    for i, taps in enumerate(conv_plan):
        w_full = convw_ref[i]                             # (K*C_in_max, 8)
        w = w_full[: _K * c_in, :]                        # (K*c_in, 8)
        bias = vec(vbase + i, 8)                          # (1, 8)
        zero = jnp.zeros((S, c_in), jnp.float32)
        new_ys = []
        for tap_row in taps:
            parts = [ys[li] if li is not None else zero for li in tap_row]
            xin = jnp.concatenate(parts, axis=-1)         # (S, K*c_in)
            acc = jnp.dot(xin, w, preferred_element_type=jnp.float32) + bias
            if _CONV_RELU[i]:
                acc = jnp.maximum(acc, 0.0)
            new_ys.append(acc)
        ys = new_ys
        c_in = 8

    flat = ys[0]                                          # Flatten -> (S, 8)
    dec_w = headw_ref[0][:8, :hidden_dim]
    feats = (jnp.dot(flat, dec_w, preferred_element_type=jnp.float32)
             + vec(vbase + 6, hidden_dim))
    feat_ref[...] = feats

    # Regressor.  TODO(synk): Dropout not applied (inference-mode forward).
    h1 = jnp.maximum(
        jnp.dot(feats, headw_ref[1][:hidden_dim, :hidden_dim],
                preferred_element_type=jnp.float32) + vec(vbase + 7, hidden_dim), 0.0)
    h2 = jnp.maximum(
        jnp.dot(h1, headw_ref[2][:hidden_dim, :hd2],
                preferred_element_type=jnp.float32) + vec(vbase + 8, hd2), 0.0)
    pred_ref[...] = (jnp.dot(h2, headw_ref[3][:hd2, :1],
                             preferred_element_type=jnp.float32) + vec(vbase + 9, 1))


# ------------------------------- model wrapper -------------------------------

def make_positional_encoding(d_model, max_len=30):
    position = jnp.arange(max_len, dtype=jnp.float32)[:, None]
    div_term = jnp.exp(jnp.arange(0, d_model, 2, dtype=jnp.float32)
                       * (-math.log(10000.0) / d_model))
    pe = jnp.zeros((max_len, d_model), dtype=jnp.float32)
    pe = pe.at[:, 0::2].set(jnp.sin(position * div_term))
    pe = pe.at[:, 1::2].set(jnp.cos(position * div_term))
    return pe


def prep_kernel_params(params, *, input_dim, nhead, max_len=30):
    """One-time weight re-layout: pack everything into a few padded slabs."""
    E = input_dim
    layers = params['layers']
    L = len(layers)
    nhid = int(np.asarray(layers[0]['ff1_w']).shape[0])
    hidden_dim = int(np.asarray(params['dec_lin'][0]).shape[0])

    # --- encoder matrix slab: (L*4, Rmax, Cmax), zero-padded ---
    Rmax = max(E, nhid)
    Cmax = max(3 * E, E, nhid)
    enc_w = np.zeros((L * 4, Rmax, Cmax), np.float32)
    for l, lp in enumerate(layers):
        enc_w[l * 4 + 0, :E, :3 * E] = np.asarray(lp['in_proj_w']).T
        enc_w[l * 4 + 1, :E, :E] = np.asarray(lp['out_proj_w']).T
        enc_w[l * 4 + 2, :E, :nhid] = np.asarray(lp['ff1_w']).T
        enc_w[l * 4 + 3, :nhid, :E] = np.asarray(lp['ff2_w']).T

    # --- small-vector slab: all biases / LN params / conv & head biases ---
    VEC_W = max(3 * E, nhid, hidden_dim, 8)
    n_vec = 8 * L + 6 + 1 + 3
    vec = np.zeros((n_vec, VEC_W), np.float32)
    for l, lp in enumerate(layers):
        b = 8 * l
        vec[b + 0, :3 * E] = np.asarray(lp['in_proj_b'])
        vec[b + 1, :E] = np.asarray(lp['out_proj_b'])
        vec[b + 2, :E] = np.asarray(lp['ln1_g'])
        vec[b + 3, :E] = np.asarray(lp['ln1_b'])
        vec[b + 4, :nhid] = np.asarray(lp['ff1_b'])
        vec[b + 5, :E] = np.asarray(lp['ff2_b'])
        vec[b + 6, :E] = np.asarray(lp['ln2_g'])
        vec[b + 7, :E] = np.asarray(lp['ln2_b'])
    vbase = 8 * L

    # --- conv weight slab: per stage the K taps stacked along the contraction axis ---
    conv_w = np.zeros((6, _K * max(E, 8), 8), np.float32)
    for i, (w, b) in enumerate(params['convs']):
        w = np.asarray(w)                                 # (C_out=8, C_in, K)
        c_in = w.shape[1]
        for k in range(_K):
            conv_w[i, k * c_in:(k + 1) * c_in, :] = w[:, :, k].T
        vec[vbase + i, :8] = np.asarray(b)

    # --- head weight slab: dec linear + 3 regressor layers ---
    dw, db = params['dec_lin']
    (w1, b1), (w2, b2), (w3, b3) = params['reg']
    Hmax = max(hidden_dim, 8)
    head_w = np.zeros((4, Hmax, Hmax), np.float32)
    head_w[0, :8, :hidden_dim] = np.asarray(dw).T
    head_w[1, :hidden_dim, :hidden_dim] = np.asarray(w1).T
    head_w[2, :hidden_dim, :hidden_dim // 2] = np.asarray(w2).T
    head_w[3, :hidden_dim // 2, :1] = np.asarray(w3).T
    vec[vbase + 6, :hidden_dim] = np.asarray(db)
    vec[vbase + 7, :hidden_dim] = np.asarray(b1)
    vec[vbase + 8, :hidden_dim // 2] = np.asarray(b2)
    vec[vbase + 9, :1] = np.asarray(b3)

    arrays = dict(pe=make_positional_encoding(E, max_len),
                  enc_w=jnp.asarray(enc_w), vec=jnp.asarray(vec),
                  conv_w=jnp.asarray(conv_w), head_w=jnp.asarray(head_w))
    meta = dict(E=E, nhead=nhead, nhid=nhid, nlayers=L, hidden_dim=hidden_dim)
    return dict(arrays=arrays, meta=meta)


def transformer_model_cnn_forward(src, arrays, *, meta):
    S, B, E = src.shape
    assert E == meta['E']
    nhead, nhid = meta['nhead'], meta['nhid']
    nlayers, hidden_dim = meta['nlayers'], meta['hidden_dim']
    pe = arrays['pe']
    assert S <= pe.shape[0], "sequence length exceeds positional-encoding max_len"
    N = B * S

    conv_plan, l_final = _conv_plan(B)
    assert l_final == 1, ("Flatten -> Linear(8, hidden_dim) in the reference only "
                          "matches when the conv chain reduces the length axis to 1")

    # Single cheap XLA relayout (mem-bound anyway): batch-major 2-D activations,
    # row r = b*S + s, with the positional-encoding add fused in.
    x2d = (jnp.transpose(src, (1, 0, 2)) + pe[None, :S, :]).reshape(N, E)

    flat_inputs = [x2d, arrays['enc_w'], arrays['vec'],
                   arrays['conv_w'], arrays['head_w']]

    # Advisory cost estimate for the XLA scheduler.
    def mm(m, k, n):
        return 2 * m * k * n
    dh = E // nhead
    hd2 = hidden_dim // 2
    flops = 0
    for _ in range(nlayers):
        flops += mm(N, E, 3 * E) + nhead * (mm(N, dh, N) + mm(N, N, dh)) + mm(N, E, E)
        flops += mm(N, E, nhid) + mm(N, nhid, E) + 24 * N * E
    c_in = E
    for taps in conv_plan:
        flops += len(taps) * mm(S, _K * c_in, 8)
        c_in = 8
    flops += (mm(S, 8, hidden_dim) + mm(S, hidden_dim, hidden_dim)
              + mm(S, hidden_dim, hd2) + mm(S, hd2, 1))
    transc = nlayers * nhead * N * N + 2 * nlayers * N
    bytes_acc = sum(int(a.size) * a.dtype.itemsize for a in flat_inputs)
    bytes_acc += (S * 1 + S * hidden_dim) * 4

    kernel = functools.partial(_fused_forward_kernel, S=S, B=B, E=E, nhead=nhead,
                               nhid=nhid, nlayers=nlayers, hidden_dim=hidden_dim,
                               conv_plan=conv_plan)
    vmem = pl.BlockSpec(memory_space=pltpu.MemorySpace.VMEM)

    predictions, features = pl.pallas_call(
        kernel,
        out_shape=(jax.ShapeDtypeStruct((S, 1), jnp.float32),
                   jax.ShapeDtypeStruct((S, hidden_dim), jnp.float32)),
        in_specs=[vmem] * len(flat_inputs),
        out_specs=(vmem, vmem),
        compiler_params=pltpu.CompilerParams(vmem_limit_bytes=32 * 1024 * 1024),
        cost_estimate=pl.CostEstimate(flops=int(flops),
                                      transcendentals=int(transc),
                                      bytes_accessed=int(bytes_acc)),
    )(*flat_inputs)
    return predictions, features


# ------------------------- pure-JAX reference (check) -------------------------

def _layernorm_ref(z, g, b, eps=1e-5):
    mu = z.mean(-1, keepdims=True)
    var = ((z - mu) ** 2).mean(-1, keepdims=True)
    return (z - mu) / jnp.sqrt(var + eps) * g + b


def reference_forward(src, params, *, nhead, max_len=30):
    S, B, E = src.shape
    dh = E // nhead
    pe = make_positional_encoding(E, max_len)[:S]
    x = src + pe[:, None, :]
    i = jnp.arange(S)
    mask = jnp.where(i[None, :] > i[:, None], -jnp.inf, 0.0).astype(jnp.float32)
    for p in params['layers']:
        x2 = x.reshape(S * B, E)
        qkv = x2 @ p['in_proj_w'].T + p['in_proj_b']
        q, k, v = jnp.split(qkv, 3, axis=-1)

        def heads(t):
            return t.reshape(S, B, nhead, dh).transpose(1, 2, 0, 3)   # (B,H,S,dh)

        qh, kh, vh = heads(q), heads(k), heads(v)
        s = jnp.einsum('bhqd,bhkd->bhqk', qh, kh) / math.sqrt(dh) + mask
        pa = jax.nn.softmax(s, axis=-1)
        o = jnp.einsum('bhqk,bhkd->bhqd', pa, vh)
        o = o.transpose(2, 0, 1, 3).reshape(S * B, E)
        attn = o @ p['out_proj_w'].T + p['out_proj_b']
        x2 = _layernorm_ref(x2 + attn, p['ln1_g'], p['ln1_b'])
        hmid = jax.nn.relu(x2 @ p['ff1_w'].T + p['ff1_b'])
        ff = hmid @ p['ff2_w'].T + p['ff2_b']
        x2 = _layernorm_ref(x2 + ff, p['ln2_g'], p['ln2_b'])
        x = x2.reshape(S, B, E)

    y = jnp.transpose(x, (0, 2, 1))                                    # (S, E, B)
    for (w, b), stride, relu in zip(params['convs'], _CONV_STRIDES, _CONV_RELU):
        y = lax.conv_general_dilated(y, w, window_strides=(stride,),
                                     padding=[(_PAD, _PAD)],
                                     dimension_numbers=('NCH', 'OIH', 'NCH'))
        y = y + b[None, :, None]
        if relu:
            y = jax.nn.relu(y)
    y = y.reshape(S, -1)
    dw, db = params['dec_lin']
    feats = y @ dw.T + db
    (w1, b1), (w2, b2), (w3, b3) = params['reg']
    h = jax.nn.relu(feats @ w1.T + b1)
    h = jax.nn.relu(h @ w2.T + b2)
    pred = h @ w3.T + b3
    return pred, feats


# ---------------------------------- params -----------------------------------

def init_params(key, *, input_dim, nhead, nhid, nlayers, hidden_dim):
    def nrm(k, shape, scale=0.1):
        return scale * jax.random.normal(k, shape, dtype=jnp.float32)

    keys = iter(jax.random.split(key, 64))
    E = input_dim
    layers = []
    for _ in range(nlayers):
        layers.append(dict(
            in_proj_w=nrm(next(keys), (3 * E, E)),
            in_proj_b=nrm(next(keys), (3 * E,)),
            out_proj_w=nrm(next(keys), (E, E)),
            out_proj_b=nrm(next(keys), (E,)),
            ln1_g=jnp.ones((E,), jnp.float32),
            ln1_b=jnp.zeros((E,), jnp.float32),
            ff1_w=nrm(next(keys), (nhid, E)),
            ff1_b=nrm(next(keys), (nhid,)),
            ff2_w=nrm(next(keys), (E, nhid)),
            ff2_b=nrm(next(keys), (E,)),
            ln2_g=jnp.ones((E,), jnp.float32),
            ln2_b=jnp.zeros((E,), jnp.float32),
        ))
    convs = []
    in_c = E
    for _ in range(6):
        convs.append((nrm(next(keys), (8, in_c, 3)), nrm(next(keys), (8,))))
        in_c = 8
    dec_lin = (nrm(next(keys), (hidden_dim, 8)), nrm(next(keys), (hidden_dim,)))
    reg = [
        (nrm(next(keys), (hidden_dim, hidden_dim)), nrm(next(keys), (hidden_dim,))),
        (nrm(next(keys), (hidden_dim // 2, hidden_dim)),
         nrm(next(keys), (hidden_dim // 2,))),
        (nrm(next(keys), (1, hidden_dim // 2)), nrm(next(keys), (1,))),
    ]
    return dict(layers=layers, convs=convs, dec_lin=dec_lin, reg=reg)


if __name__ == "__main__":
    S, B = 8, 2                      # seq-len (attention axis), batch
    input_dim, nhead, nhid, nlayers = 16, 4, 32, 2
    hidden_dim = 32                  # undefined global in the PyTorch __init__ (bid == 0)

    key = jax.random.PRNGKey(0)
    k_src, k_par = jax.random.split(key)
    src = jax.random.normal(k_src, (S, B, input_dim), dtype=jnp.float32)
    params = init_params(k_par, input_dim=input_dim, nhead=nhead, nhid=nhid,
                         nlayers=nlayers, hidden_dim=hidden_dim)
    kparams = prep_kernel_params(params, input_dim=input_dim, nhead=nhead)

    fwd = jax.jit(functools.partial(transformer_model_cnn_forward,
                                    meta=kparams['meta']))
    predictions, features = fwd(src, kparams['arrays'])
    jax.block_until_ready((predictions, features))

    with jax.default_matmul_precision("float32"):
        ref_pred, ref_feat = reference_forward(src, params, nhead=nhead)
    jax.block_until_ready((ref_pred, ref_feat))

    assert predictions.shape == (S, 1)
    assert features.shape == (S, hidden_dim)
    assert bool(jnp.all(jnp.isfinite(predictions)))
    np.testing.assert_allclose(np.asarray(features), np.asarray(ref_feat),
                               rtol=5e-2, atol=5e-2)
    np.testing.assert_allclose(np.asarray(predictions), np.asarray(ref_pred),
                               rtol=5e-2, atol=5e-2)
    print("KERNEL_OK")
</pallas_src>

<mosaic_0001>
module attributes {stable_mosaic.version = 11 : i64} {
  func.func @_fused_forward_kernel(%arg0: memref<16x16xf32, #tpu.memory_space<vmem>>, %arg1: memref<8x32x48xf32, #tpu.memory_space<vmem>>, %arg2: memref<26x48xf32, #tpu.memory_space<vmem>>, %arg3: memref<6x48x8xf32, #tpu.memory_space<vmem>>, %arg4: memref<4x32x32xf32, #tpu.memory_space<vmem>>, %arg5: memref<8x1xf32, #tpu.memory_space<vmem>>, %arg6: memref<8x32xf32, #tpu.memory_space<vmem>>) attributes {dimension_semantics = [], scalar_prefetch = 0 : i64, scratch_operands = 0 : i64, tpu.core_type = #tpu.core_type<tc>} {
    %c0 = arith.constant 0 : index
    %c0_0 = arith.constant 0 : index
    %0 = vector.load %arg0[%c0, %c0_0] : memref<16x16xf32, #tpu.memory_space<vmem>>, vector<16x16xf32>
    %1 = tpu.iota {dimensions = array<i32: 0>} : vector<16x16xi32>
    %2 = tpu.iota {dimensions = array<i32: 1>} : vector<16x16xi32>
    %c7_i32 = arith.constant 7 : i32
    %3 = vector.broadcast %c7_i32 : i32 to vector<16x16xi32>
    %4 = arith.andi %1, %3 : vector<16x16xi32>
    %5 = arith.subi %1, %4 : vector<16x16xi32>
    %6 = arith.cmpi sle, %2, %1 : vector<16x16xi32>
    %7 = arith.cmpi sge, %2, %5 : vector<16x16xi32>
    %8 = arith.andi %6, %7 : vector<16x16xi1>
    %cst = arith.constant 0.000000e+00 : f32
    %cst_1 = arith.constant -1.000000e+30 : f32
    %9 = vector.broadcast %cst : f32 to vector<16x16xf32>
    %10 = vector.broadcast %cst_1 : f32 to vector<16x16xf32>
    %11 = arith.select %8, %9, %10 : vector<16x16xi1>, vector<16x16xf32>
    %c0_2 = arith.constant 0 : index
    %c0_3 = arith.constant 0 : index
    %c0_4 = arith.constant 0 : index
    %12 = vector.load %arg1[%c0_2, %c0_3, %c0_4] : memref<8x32x48xf32, #tpu.memory_space<vmem>>, vector<1x32x48xf32>
    %13 = vector.shape_cast %12 : vector<1x32x48xf32> to vector<32x48xf32>
    %c1 = arith.constant 1 : index
    %c0_5 = arith.constant 0 : index
    %c0_6 = arith.constant 0 : index
    %14 = vector.load %arg1[%c1, %c0_5, %c0_6] : memref<8x32x48xf32, #tpu.memory_space<vmem>>, vector<1x32x48xf32>
    %15 = vector.shape_cast %14 : vector<1x32x48xf32> to vector<32x48xf32>
    %c2 = arith.constant 2 : index
    %c0_7 = arith.constant 0 : index
    %c0_8 = arith.constant 0 : index
    %16 = vector.load %arg1[%c2, %c0_7, %c0_8] : memref<8x32x48xf32, #tpu.memory_space<vmem>>, vector<1x32x48xf32>
    %17 = vector.shape_cast %16 : vector<1x32x48xf32> to vector<32x48xf32>
    %c3 = arith.constant 3 : index
    %c0_9 = arith.constant 0 : index
    %c0_10 = arith.constant 0 : index
    %18 = vector.load %arg1[%c3, %c0_9, %c0_10] : memref<8x32x48xf32, #tpu.memory_space<vmem>>, vector<1x32x48xf32>
    %19 = vector.shape_cast %18 : vector<1x32x48xf32> to vector<32x48xf32>
    %20 = vector.extract_strided_slice %13 {offsets = [0, 0], sizes = [16, 48], strides = [1, 1]} : vector<32x48xf32> to vector<16x48xf32>
    %21 = vector.extract_strided_slice %15 {offsets = [0, 0], sizes = [16, 16], strides = [1, 1]} : vector<32x48xf32> to vector<16x16xf32>
    %22 = vector.extract_strided_slice %17 {offsets = [0, 0], sizes = [16, 32], strides = [1, 1]} : vector<32x48xf32> to vector<16x32xf32>
    %23 = vector.extract_strided_slice %19 {offsets = [0, 0], sizes = [32, 16], strides = [1, 1]} : vector<32x48xf32> to vector<32x16xf32>
    %c0_11 = arith.constant 0 : index
    %c0_12 = arith.constant 0 : index
    %24 = vector.load %arg2[%c0_11, %c0_12] : memref<26x48xf32, #tpu.memory_space<vmem>>, vector<1x48xf32>
    %c1_13 = arith.constant 1 : index
    %c0_14 = arith.constant 0 : index
    %25 = vector.load %arg2[%c1_13, %c0_14] : memref<26x48xf32, #tpu.memory_space<vmem>>, vector<1x16xf32>
    %c2_15 = arith.constant 2 : index
    %c0_16 = arith.constant 0 : index
    %26 = vector.load %arg2[%c2_15, %c0_16] : memref<26x48xf32, #tpu.memory_space<vmem>>, vector<1x16xf32>
    %c3_17 = arith.constant 3 : index
    %c0_18 = arith.constant 0 : index
    %27 = vector.load %arg2[%c3_17, %c0_18] : memref<26x48xf32, #tpu.memory_space<vmem>>, vector<1x16xf32>
    %c4 = arith.constant 4 : index
    %c0_19 = arith.constant 0 : index
    %28 = vector.load %arg2[%c4, %c0_19] : memref<26x48xf32, #tpu.memory_space<vmem>>, vector<1x32xf32>
    %c5 = arith.constant 5 : index
    %c0_20 = arith.constant 0 : index
    %29 = vector.load %arg2[%c5, %c0_20] : memref<26x48xf32, #tpu.memory_space<vmem>>, vector<1x16xf32>
    %c6 = arith.constant 6 : index
    %c0_21 = arith.constant 0 : index
    %30 = vector.load %arg2[%c6, %c0_21] : memref<26x48xf32, #tpu.memory_space<vmem>>, vector<1x16xf32>
    %c7 = arith.constant 7 : index
    %c0_22 = arith.constant 0 : index
    %31 = vector.load %arg2[%c7, %c0_22] : memref<26x48xf32, #tpu.memory_space<vmem>>, vector<1x16xf32>
    %cst_23 = arith.constant dense<0.000000e+00> : vector<16x48xf32>
    %32 = tpu.matmul %0, %20, %cst_23 {dimension_numbers = #tpu.dot_dimension_numbers<[1], [0], [0], [1], [0, 0, 1, 1], [], []>} : vector<16x16xf32>, vector<16x48xf32>, vector<16x48xf32> -> vector<16x48xf32>
    %33 = vector.broadcast %24 : vector<1x48xf32> to vector<16x48xf32>
    %34 = arith.addf %32, %33 : vector<16x48xf32>
    %35 = vector.extract_strided_slice %34 {offsets = [0, 0], sizes = [16, 4], strides = [1, 1]} : vector<16x48xf32> to vector<16x4xf32>
    %36 = vector.extract_strided_slice %34 {offsets = [0, 16], sizes = [16, 4], strides = [1, 1]} : vector<16x48xf32> to vector<16x4xf32>
    %37 = vector.extract_strided_slice %34 {offsets = [0, 32], sizes = [16, 4], strides = [1, 1]} : vector<16x48xf32> to vector<16x4xf32>
    %cst_24 = arith.constant dense<0.000000e+00> : vector<16x16xf32>
    %38 = tpu.matmul %35, %36, %cst_24 {dimension_numbers = #tpu.dot_dimension_numbers<[1], [1], [0], [0], [0, 0, 1, 0], [], []>} : vector<16x4xf32>, vector<16x4xf32>, vector<16x16xf32> -> vector<16x16xf32>
    %cst_25 = arith.constant 5.000000e-01 : f32
    %39 = vector.broadcast %cst_25 : f32 to vector<16x16xf32>
    %40 = arith.mulf %38, %39 : vector<16x16xf32>
    %41 = arith.addf %40, %11 : vector<16x16xf32>
    %cst_26 = arith.constant dense<0xFF800000> : vector<16xf32>
    %42 = vector.multi_reduction <maximumf>, %41, %cst_26 [1] : vector<16x16xf32> to vector<16xf32>
    %43 = vector.shape_cast %42 : vector<16xf32> to vector<16x1xf32>
    %44 = vector.broadcast %43 : vector<16x1xf32> to vector<16x16xf32>
    %45 = arith.subf %41, %44 : vector<16x16xf32>
    %46 = math.exp %45 : vector<16x16xf32>
    %cst_27 = arith.constant dense<0.000000e+00> : vector<16xf32>
    %47 = vector.multi_reduction <add>, %46, %cst_27 [1] : vector<16x16xf32> to vector<16xf32>
    %48 = vector.shape_cast %47 : vector<16xf32> to vector<16x1xf32>
    %49 = tpu.reciprocal %48 {approx = true} : vector<16x1xf32> -> vector<16x1xf32>
    %50 = vector.broadcast %49 : vector<16x1xf32> to vector<16x16xf32>
    %51 = arith.mulf %46, %50 : vector<16x16xf32>
    %cst_28 = arith.constant dense<0.000000e+00> : vector<16x4xf32>
    %52 = tpu.matmul %51, %37, %cst_28 {dimension_numbers = #tpu.dot_dimension_numbers<[1], [0], [0], [1], [0, 0, 1, 1], [], []>} : vector<16x16xf32>, vector<16x4xf32>, vector<16x4xf32> -> vector<16x4xf32>
    %53 = vector.extract_strided_slice %34 {offsets = [0, 4], sizes = [16, 4], strides = [1, 1]} : vector<16x48xf32> to vector<16x4xf32>
    %54 = vector.extract_strided_slice %34 {offsets = [0, 20], sizes = [16, 4], strides = [1, 1]} : vector<16x48xf32> to vector<16x4xf32>
    %55 = vector.extract_strided_slice %34 {offsets = [0, 36], sizes = [16, 4], strides = [1, 1]} : vector<16x48xf32> to vector<16x4xf32>
    %cst_29 = arith.constant dense<0.000000e+00> : vector<16x16xf32>
    %56 = tpu.matmul %53, %54, %cst_29 {dimension_numbers = #tpu.dot_dimension_numbers<[1], [1], [0], [0], [0, 0, 1, 0], [], []>} : vector<16x4xf32>, vector<16x4xf32>, vector<16x16xf32> -> vector<16x16xf32>
    %cst_30 = arith.constant 5.000000e-01 : f32
    %57 = vector.broadcast %cst_30 : f32 to vector<16x16xf32>
    %58 = arith.mulf %56, %57 : vector<16x16xf32>
    %59 = arith.addf %58, %11 : vector<16x16xf32>
    %cst_31 = arith.constant dense<0xFF800000> : vector<16xf32>
    %60 = vector.multi_reduction <maximumf>, %59, %cst_31 [1] : vector<16x16xf32> to vector<16xf32>
    %61 = vector.shape_cast %60 : vector<16xf32> to vector<16x1xf32>
    %62 = vector.broadcast %61 : vector<16x1xf32> to vector<16x16xf32>
    %63 = arith.subf %59, %62 : vector<16x16xf32>
    %64 = math.exp %63 : vector<16x16xf32>
    %cst_32 = arith.constant dense<0.000000e+00> : vector<16xf32>
    %65 = vector.multi_reduction <add>, %64, %cst_32 [1] : vector<16x16xf32> to vector<16xf32>
    %66 = vector.shape_cast %65 : vector<16xf32> to vector<16x1xf32>
    %67 = tpu.reciprocal %66 {approx = true} : vector<16x1xf32> -> vector<16x1xf32>
    %68 = vector.broadcast %67 : vector<16x1xf32> to vector<16x16xf32>
    %69 = arith.mulf %64, %68 : vector<16x16xf32>
    %cst_33 = arith.constant dense<0.000000e+00> : vector<16x4xf32>
    %70 = tpu.matmul %69, %55, %cst_33 {dimension_numbers = #tpu.dot_dimension_numbers<[1], [0], [0], [1], [0, 0, 1, 1], [], []>} : vector<16x16xf32>, vector<16x4xf32>, vector<16x4xf32> -> vector<16x4xf32>
    %71 = vector.extract_strided_slice %34 {offsets = [0, 8], sizes = [16, 4], strides = [1, 1]} : vector<16x48xf32> to vector<16x4xf32>
    %72 = vector.extract_strided_slice %34 {offsets = [0, 24], sizes = [16, 4], strides = [1, 1]} : vector<16x48xf32> to vector<16x4xf32>
    %73 = vector.extract_strided_slice %34 {offsets = [0, 40], sizes = [16, 4], strides = [1, 1]} : vector<16x48xf32> to vector<16x4xf32>
    %cst_34 = arith.constant dense<0.000000e+00> : vector<16x16xf32>
    %74 = tpu.matmul %71, %72, %cst_34 {dimension_numbers = #tpu.dot_dimension_numbers<[1], [1], [0], [0], [0, 0, 1, 0], [], []>} : vector<16x4xf32>, vector<16x4xf32>, vector<16x16xf32> -> vector<16x16xf32>
    %cst_35 = arith.constant 5.000000e-01 : f32
    %75 = vector.broadcast %cst_35 : f32 to vector<16x16xf32>
    %76 = arith.mulf %74, %75 : vector<16x16xf32>
    %77 = arith.addf %76, %11 : vector<16x16xf32>
    %cst_36 = arith.constant dense<0xFF800000> : vector<16xf32>
    %78 = vector.multi_reduction <maximumf>, %77, %cst_36 [1] : vector<16x16xf32> to vector<16xf32>
    %79 = vector.shape_cast %78 : vector<16xf32> to vector<16x1xf32>
    %80 = vector.broadcast %79 : vector<16x1xf32> to vector<16x16xf32>
    %81 = arith.subf %77, %80 : vector<16x16xf32>
    %82 = math.exp %81 : vector<16x16xf32>
    %cst_37 = arith.constant dense<0.000000e+00> : vector<16xf32>
    %83 = vector.multi_reduction <add>, %82, %cst_37 [1] : vector<16x16xf32> to vector<16xf32>
    %84 = vector.shape_cast %83 : vector<16xf32> to vector<16x1xf32>
    %85 = tpu.reciprocal %84 {approx = true} : vector<16x1xf32> -> vector<16x1xf32>
    %86 = vector.broadcast %85 : vector<16x1xf32> to vector<16x16xf32>
    %87 = arith.mulf %82, %86 : vector<16x16xf32>
    %cst_38 = arith.constant dense<0.000000e+00> : vector<16x4xf32>
    %88 = tpu.matmul %87, %73, %cst_38 {dimension_numbers = #tpu.dot_dimension_numbers<[1], [0], [0], [1], [0, 0, 1, 1], [], []>} : vector<16x16xf32>, vector<16x4xf32>, vector<16x4xf32> -> vector<16x4xf32>
    %89 = vector.extract_strided_slice %34 {offsets = [0, 12], sizes = [16, 4], strides = [1, 1]} : vector<16x48xf32> to vector<16x4xf32>
    %90 = vector.extract_strided_slice %34 {offsets = [0, 28], sizes = [16, 4], strides = [1, 1]} : vector<16x48xf32> to vector<16x4xf32>
    %91 = vector.extract_strided_slice %34 {offsets = [0, 44], sizes = [16, 4], strides = [1, 1]} : vector<16x48xf32> to vector<16x4xf32>
    %cst_39 = arith.constant dense<0.000000e+00> : vector<16x16xf32>
    %92 = tpu.matmul %89, %90, %cst_39 {dimension_numbers = #tpu.dot_dimension_numbers<[1], [1], [0], [0], [0, 0, 1, 0], [], []>} : vector<16x4xf32>, vector<16x4xf32>, vector<16x16xf32> -> vector<16x16xf32>
    %cst_40 = arith.constant 5.000000e-01 : f32
    %93 = vector.broadcast %cst_40 : f32 to vector<16x16xf32>
    %94 = arith.mulf %92, %93 : vector<16x16xf32>
    %95 = arith.addf %94, %11 : vector<16x16xf32>
    %cst_41 = arith.constant dense<0xFF800000> : vector<16xf32>
    %96 = vector.multi_reduction <maximumf>, %95, %cst_41 [1] : vector<16x16xf32> to vector<16xf32>
    %97 = vector.shape_cast %96 : vector<16xf32> to vector<16x1xf32>
    %98 = vector.broadcast %97 : vector<16x1xf32> to vector<16x16xf32>
    %99 = arith.subf %95, %98 : vector<16x16xf32>
    %100 = math.exp %99 : vector<16x16xf32>
    %cst_42 = arith.constant dense<0.000000e+00> : vector<16xf32>
    %101 = vector.multi_reduction <add>, %100, %cst_42 [1] : vector<16x16xf32> to vector<16xf32>
    %102 = vector.shape_cast %101 : vector<16xf32> to vector<16x1xf32>
    %103 = tpu.reciprocal %102 {approx = true} : vector<16x1xf32> -> vector<16x1xf32>
    %104 = vector.broadcast %103 : vector<16x1xf32> to vector<16x16xf32>
    %105 = arith.mulf %100, %104 : vector<16x16xf32>
    %cst_43 = arith.constant dense<0.000000e+00> : vector<16x4xf32>
    %106 = tpu.matmul %105, %91, %cst_43 {dimension_numbers = #tpu.dot_dimension_numbers<[1], [0], [0], [1], [0, 0, 1, 1], [], []>} : vector<16x16xf32>, vector<16x4xf32>, vector<16x4xf32> -> vector<16x4xf32>
    %107 = tpu.concatenate %52, %70, %88, %106 in 1 : vector<16x4xf32>, vector<16x4xf32>, vector<16x4xf32>, vector<16x4xf32> -> vector<16x16xf32>
    %cst_44 = arith.constant dense<0.000000e+00> : vector<16x16xf32>
    %108 = tpu.matmul %107, %21, %cst_44 {dimension_numbers = #tpu.dot_dimension_numbers<[1], [0], [0], [1], [0, 0, 1, 1], [], []>} : vector<16x16xf32>, vector<16x16xf32>, vector<16x16xf32> -> vector<16x16xf32>
    %109 = vector.broadcast %25 : vector<1x16xf32> to vector<16x16xf32>
    %110 = arith.addf %108, %109 : vector<16x16xf32>
    %111 = arith.addf %0, %110 : vector<16x16xf32>
    %cst_45 = arith.constant dense<0.000000e+00> : vector<16xf32>
    %112 = vector.multi_reduction <add>, %111, %cst_45 [1] : vector<16x16xf32> to vector<16xf32>
    %113 = vector.shape_cast %112 : vector<16xf32> to vector<16x1xf32>
    %cst_46 = arith.constant 1.600000e+01 : f32
    %114 = vector.broadcast %cst_46 : f32 to vector<16x1xf32>
    %115 = arith.divf %113, %114 : vector<16x1xf32>
    %116 = vector.broadcast %115 : vector<16x1xf32> to vector<16x16xf32>
    %117 = arith.subf %111, %116 : vector<16x16xf32>
    %118 = arith.mulf %117, %117 : vector<16x16xf32>
    %cst_47 = arith.constant dense<0.000000e+00> : vector<16xf32>
    %119 = vector.multi_reduction <add>, %118, %cst_47 [1] : vector<16x16xf32> to vector<16xf32>
    %120 = vector.shape_cast %119 : vector<16xf32> to vector<16x1xf32>
    %cst_48 = arith.constant 1.600000e+01 : f32
    %121 = vector.broadcast %cst_48 : f32 to vector<16x1xf32>
    %122 = arith.divf %120, %121 : vector<16x1xf32>
    %cst_49 = arith.constant 9.99999974E-6 : f32
    %123 = vector.broadcast %cst_49 : f32 to vector<16x1xf32>
    %124 = arith.addf %122, %123 : vector<16x1xf32>
    %125 = math.rsqrt %124 : vector<16x1xf32>
    %126 = vector.broadcast %125 : vector<16x1xf32> to vector<16x16xf32>
    %127 = arith.mulf %117, %126 : vector<16x16xf32>
    %128 = vector.broadcast %26 : vector<1x16xf32> to vector<16x16xf32>
    %129 = arith.mulf %127, %128 : vector<16x16xf32>
    %130 = vector.broadcast %27 : vector<1x16xf32> to vector<16x16xf32>
    %131 = arith.addf %129, %130 : vector<16x16xf32>
    %cst_50 = arith.constant dense<0.000000e+00> : vector<16x32xf32>
    %132 = tpu.matmul %131, %22, %cst_50 {dimension_numbers = #tpu.dot_dimension_numbers<[1], [0], [0], [1], [0, 0, 1, 1], [], []>} : vector<16x16xf32>, vector<16x32xf32>, vector<16x32xf32> -> vector<16x32xf32>
    %133 = vector.broadcast %28 : vector<1x32xf32> to vector<16x32xf32>
    %134 = arith.addf %132, %133 : vector<16x32xf32>
    %cst_51 = arith.constant 0.000000e+00 : f32
    %135 = vector.broadcast %cst_51 : f32 to vector<16x32xf32>
    %136 = arith.maximumf %134, %135 : vector<16x32xf32>
    %cst_52 = arith.constant dense<0.000000e+00> : vector<16x16xf32>
    %137 = tpu.matmul %136, %23, %cst_52 {dimension_numbers = #tpu.dot_dimension_numbers<[1], [0], [0], [1], [0, 0, 1, 1], [], []>} : vector<16x32xf32>, vector<32x16xf32>, vector<16x16xf32> -> vector<16x16xf32>
    %138 = vector.broadcast %29 : vector<1x16xf32> to vector<16x16xf32>
    %139 = arith.addf %137, %138 : vector<16x16xf32>
    %140 = arith.addf %131, %139 : vector<16x16xf32>
    %cst_53 = arith.constant dense<0.000000e+00> : vector<16xf32>
    %141 = vector.multi_reduction <add>, %140, %cst_53 [1] : vector<16x16xf32> to vector<16xf32>
    %142 = vector.shape_cast %141 : vector<16xf32> to vector<16x1xf32>
    %cst_54 = arith.constant 1.600000e+01 : f32
    %143 = vector.broadcast %cst_54 : f32 to vector<16x1xf32>
    %144 = arith.divf %142, %143 : vector<16x1xf32>
    %145 = vector.broadcast %144 : vector<16x1xf32> to vector<16x16xf32>
    %146 = arith.subf %140, %145 : vector<16x16xf32>
    %147 = arith.mulf %146, %146 : vector<16x16xf32>
    %cst_55 = arith.constant dense<0.000000e+00> : vector<16xf32>
    %148 = vector.multi_reduction <add>, %147, %cst_55 [1] : vector<16x16xf32> to vector<16xf32>
    %149 = vector.shape_cast %148 : vector<16xf32> to vector<16x1xf32>
    %cst_56 = arith.constant 1.600000e+01 : f32
    %150 = vector.broadcast %cst_56 : f32 to vector<16x1xf32>
    %151 = arith.divf %149, %150 : vector<16x1xf32>
    %cst_57 = arith.constant 9.99999974E-6 : f32
    %152 = vector.broadcast %cst_57 : f32 to vector<16x1xf32>
    %153 = arith.addf %151, %152 : vector<16x1xf32>
    %154 = math.rsqrt %153 : vector<16x1xf32>
    %155 = vector.broadcast %154 : vector<16x1xf32> to vector<16x16xf32>
    %156 = arith.mulf %146, %155 : vector<16x16xf32>
    %157 = vector.broadcast %30 : vector<1x16xf32> to vector<16x16xf32>
    %158 = arith.mulf %156, %157 : vector<16x16xf32>
    %159 = vector.broadcast %31 : vector<1x16xf32> to vector<16x16xf32>
    %160 = arith.addf %158, %159 : vector<16x16xf32>
    %c4_58 = arith.constant 4 : index
    %c0_59 = arith.constant 0 : index
    %c0_60 = arith.constant 0 : index
    %161 = vector.load %arg1[%c4_58, %c0_59, %c0_60] : memref<8x32x48xf32, #tpu.memory_space<vmem>>, vector<1x32x48xf32>
    %162 = vector.shape_cast %161 : vector<1x32x48xf32> to vector<32x48xf32>
    %c5_61 = arith.constant 5 : index
    %c0_62 = arith.constant 0 : index
    %c0_63 = arith.constant 0 : index
    %163 = vector.load %arg1[%c5_61, %c0_62, %c0_63] : memref<8x32x48xf32, #tpu.memory_space<vmem>>, vector<1x32x48xf32>
    %164 = vector.shape_cast %163 : vector<1x32x48xf32> to vector<32x48xf32>
    %c6_64 = arith.constant 6 : index
    %c0_65 = arith.constant 0 : index
    %c0_66 = arith.constant 0 : index
    %165 = vector.load %arg1[%c6_64, %c0_65, %c0_66] : memref<8x32x48xf32, #tpu.memory_space<vmem>>, vector<1x32x48xf32>
    %166 = vector.shape_cast %165 : vector<1x32x48xf32> to vector<32x48xf32>
    %c7_67 = arith.constant 7 : index
    %c0_68 = arith.constant 0 : index
    %c0_69 = arith.constant 0 : index
    %167 = vector.load %arg1[%c7_67, %c0_68, %c0_69] : memref<8x32x48xf32, #tpu.memory_space<vmem>>, vector<1x32x48xf32>
    %168 = vector.shape_cast %167 : vector<1x32x48xf32> to vector<32x48xf32>
    %169 = vector.extract_strided_slice %162 {offsets = [0, 0], sizes = [16, 48], strides = [1, 1]} : vector<32x48xf32> to vector<16x48xf32>
    %170 = vector.extract_strided_slice %164 {offsets = [0, 0], sizes = [16, 16], strides = [1, 1]} : vector<32x48xf32> to vector<16x16xf32>
    %171 = vector.extract_strided_slice %166 {offsets = [0, 0], sizes = [16, 32], strides = [1, 1]} : vector<32x48xf32> to vector<16x32xf32>
    %172 = vector.extract_strided_slice %168 {offsets = [0, 0], sizes = [32, 16], strides = [1, 1]} : vector<32x48xf32> to vector<32x16xf32>
    %c8 = arith.constant 8 : index
    %c0_70 = arith.constant 0 : index
    %173 = vector.load %arg2[%c8, %c0_70] : memref<26x48xf32, #tpu.memory_space<vmem>>, vector<1x48xf32>
    %c9 = arith.constant 9 : index
    %c0_71 = arith.constant 0 : index
    %174 = vector.load %arg2[%c9, %c0_71] : memref<26x48xf32, #tpu.memory_space<vmem>>, vector<1x16xf32>
    %c10 = arith.constant 10 : index
    %c0_72 = arith.constant 0 : index
    %175 = vector.load %arg2[%c10, %c0_72] : memref<26x48xf32, #tpu.memory_space<vmem>>, vector<1x16xf32>
    %c11 = arith.constant 11 : index
    %c0_73 = arith.constant 0 : index
    %176 = vector.load %arg2[%c11, %c0_73] : memref<26x48xf32, #tpu.memory_space<vmem>>, vector<1x16xf32>
    %c12 = arith.constant 12 : index
    %c0_74 = arith.constant 0 : index
    %177 = vector.load %arg2[%c12, %c0_74] : memref<26x48xf32, #tpu.memory_space<vmem>>, vector<1x32xf32>
    %c13 = arith.constant 13 : index
    %c0_75 = arith.constant 0 : index
    %178 = vector.load %arg2[%c13, %c0_75] : memref<26x48xf32, #tpu.memory_space<vmem>>, vector<1x16xf32>
    %c14 = arith.constant 14 : index
    %c0_76 = arith.constant 0 : index
    %179 = vector.load %arg2[%c14, %c0_76] : memref<26x48xf32, #tpu.memory_space<vmem>>, vector<1x16xf32>
    %c15 = arith.constant 15 : index
    %c0_77 = arith.constant 0 : index
    %180 = vector.load %arg2[%c15, %c0_77] : memref<26x48xf32, #tpu.memory_space<vmem>>, vector<1x16xf32>
    %cst_78 = arith.constant dense<0.000000e+00> : vector<16x48xf32>
    %181 = tpu.matmul %160, %169, %cst_78 {dimension_numbers = #tpu.dot_dimension_numbers<[1], [0], [0], [1], [0, 0, 1, 1], [], []>} : vector<16x16xf32>, vector<16x48xf32>, vector<16x48xf32> -> vector<16x48xf32>
    %182 = vector.broadcast %173 : vector<1x48xf32> to vector<16x48xf32>
    %183 = arith.addf %181, %182 : vector<16x48xf32>
    %184 = vector.extract_strided_slice %183 {offsets = [0, 0], sizes = [16, 4], strides = [1, 1]} : vector<16x48xf32> to vector<16x4xf32>
    %185 = vector.extract_strided_slice %183 {offsets = [0, 16], sizes = [16, 4], strides = [1, 1]} : vector<16x48xf32> to vector<16x4xf32>
    %186 = vector.extract_strided_slice %183 {offsets = [0, 32], sizes = [16, 4], strides = [1, 1]} : vector<16x48xf32> to vector<16x4xf32>
    %cst_79 = arith.constant dense<0.000000e+00> : vector<16x16xf32>
    %187 = tpu.matmul %184, %185, %cst_79 {dimension_numbers = #tpu.dot_dimension_numbers<[1], [1], [0], [0], [0, 0, 1, 0], [], []>} : vector<16x4xf32>, vector<16x4xf32>, vector<16x16xf32> -> vector<16x16xf32>
    %cst_80 = arith.constant 5.000000e-01 : f32
    %188 = vector.broadcast %cst_80 : f32 to vector<16x16xf32>
    %189 = arith.mulf %187, %188 : vector<16x16xf32>
    %190 = arith.addf %189, %11 : vector<16x16xf32>
    %cst_81 = arith.constant dense<0xFF800000> : vector<16xf32>
    %191 = vector.multi_reduction <maximumf>, %190, %cst_81 [1] : vector<16x16xf32> to vector<16xf32>
    %192 = vector.shape_cast %191 : vector<16xf32> to vector<16x1xf32>
    %193 = vector.broadcast %192 : vector<16x1xf32> to vector<16x16xf32>
    %194 = arith.subf %190, %193 : vector<16x16xf32>
    %195 = math.exp %194 : vector<16x16xf32>
    %cst_82 = arith.constant dense<0.000000e+00> : vector<16xf32>
    %196 = vector.multi_reduction <add>, %195, %cst_82 [1] : vector<16x16xf32> to vector<16xf32>
    %197 = vector.shape_cast %196 : vector<16xf32> to vector<16x1xf32>
    %198 = tpu.reciprocal %197 {approx = true} : vector<16x1xf32> -> vector<16x1xf32>
    %199 = vector.broadcast %198 : vector<16x1xf32> to vector<16x16xf32>
    %200 = arith.mulf %195, %199 : vector<16x16xf32>
    %cst_83 = arith.constant dense<0.000000e+00> : vector<16x4xf32>
    %201 = tpu.matmul %200, %186, %cst_83 {dimension_numbers = #tpu.dot_dimension_numbers<[1], [0], [0], [1], [0, 0, 1, 1], [], []>} : vector<16x16xf32>, vector<16x4xf32>, vector<16x4xf32> -> vector<16x4xf32>
    %202 = vector.extract_strided_slice %183 {offsets = [0, 4], sizes = [16, 4], strides = [1, 1]} : vector<16x48xf32> to vector<16x4xf32>
    %203 = vector.extract_strided_slice %183 {offsets = [0, 20], sizes = [16, 4], strides = [1, 1]} : vector<16x48xf32> to vector<16x4xf32>
    %204 = vector.extract_strided_slice %183 {offsets = [0, 36], sizes = [16, 4], strides = [1, 1]} : vector<16x48xf32> to vector<16x4xf32>
    %cst_84 = arith.constant dense<0.000000e+00> : vector<16x16xf32>
    %205 = tpu.matmul %202, %203, %cst_84 {dimension_numbers = #tpu.dot_dimension_numbers<[1], [1], [0], [0], [0, 0, 1, 0], [], []>} : vector<16x4xf32>, vector<16x4xf32>, vector<16x16xf32> -> vector<16x16xf32>
    %cst_85 = arith.constant 5.000000e-01 : f32
    %206 = vector.broadcast %cst_85 : f32 to vector<16x16xf32>
    %207 = arith.mulf %205, %206 : vector<16x16xf32>
    %208 = arith.addf %207, %11 : vector<16x16xf32>
    %cst_86 = arith.constant dense<0xFF800000> : vector<16xf32>
    %209 = vector.multi_reduction <maximumf>, %208, %cst_86 [1] : vector<16x16xf32> to vector<16xf32>
    %210 = vector.shape_cast %209 : vector<16xf32> to vector<16x1xf32>
    %211 = vector.broadcast %210 : vector<16x1xf32> to vector<16x16xf32>
    %212 = arith.subf %208, %211 : vector<16x16xf32>
    %213 = math.exp %212 : vector<16x16xf32>
    %cst_87 = arith.constant dense<0.000000e+00> : vector<16xf32>
    %214 = vector.multi_reduction <add>, %213, %cst_87 [1] : vector<16x16xf32> to vector<16xf32>
    %215 = vector.shape_cast %214 : vector<16xf32> to vector<16x1xf32>
    %216 = tpu.reciprocal %215 {approx = true} : vector<16x1xf32> -> vector<16x1xf32>
    %217 = vector.broadcast %216 : vector<16x1xf32> to vector<16x16xf32>
    %218 = arith.mulf %213, %217 : vector<16x16xf32>
    %cst_88 = arith.constant dense<0.000000e+00> : vector<16x4xf32>
    %219 = tpu.matmul %218, %204, %cst_88 {dimension_numbers = #tpu.dot_dimension_numbers<[1], [0], [0], [1], [0, 0, 1, 1], [], []>} : vector<16x16xf32>, vector<16x4xf32>, vector<16x4xf32> -> vector<16x4xf32>
    %220 = vector.extract_strided_slice %183 {offsets = [0, 8], sizes = [16, 4], strides = [1, 1]} : vector<16x48xf32> to vector<16x4xf32>
    %221 = vector.extract_strided_slice %183 {offsets = [0, 24], sizes = [16, 4], strides = [1, 1]} : vector<16x48xf32> to vector<16x4xf32>
    %222 = vector.extract_strided_slice %183 {offsets = [0, 40], sizes = [16, 4], strides = [1, 1]} : vector<16x48xf32> to vector<16x4xf32>
    %cst_89 = arith.constant dense<0.000000e+00> : vector<16x16xf32>
    %223 = tpu.matmul %220, %221, %cst_89 {dimension_numbers = #tpu.dot_dimension_numbers<[1], [1], [0], [0], [0, 0, 1, 0], [], []>} : vector<16x4xf32>, vector<16x4xf32>, vector<16x16xf32> -> vector<16x16xf32>
    %cst_90 = arith.constant 5.000000e-01 : f32
    %224 = vector.broadcast %cst_90 : f32 to vector<16x16xf32>
    %225 = arith.mulf %223, %224 : vector<16x16xf32>
    %226 = arith.addf %225, %11 : vector<16x16xf32>
    %cst_91 = arith.constant dense<0xFF800000> : vector<16xf32>
    %227 = vector.multi_reduction <maximumf>, %226, %cst_91 [1] : vector<16x16xf32> to vector<16xf32>
    %228 = vector.shape_cast %227 : vector<16xf32> to vector<16x1xf32>
    %229 = vector.broadcast %228 : vector<16x1xf32> to vector<16x16xf32>
    %230 = arith.subf %226, %229 : vector<16x16xf32>
    %231 = math.exp %230 : vector<16x16xf32>
    %cst_92 = arith.constant dense<0.000000e+00> : vector<16xf32>
    %232 = vector.multi_reduction <add>, %231, %cst_92 [1] : vector<16x16xf32> to vector<16xf32>
    %233 = vector.shape_cast %232 : vector<16xf32> to vector<16x1xf32>
    %234 = tpu.reciprocal %233 {approx = true} : vector<16x1xf32> -> vector<16x1xf32>
    %235 = vector.broadcast %234 : vector<16x1xf32> to vector<16x16xf32>
    %236 = arith.mulf %231, %235 : vector<16x16xf32>
    %cst_93 = arith.constant dense<0.000000e+00> : vector<16x4xf32>
    %237 = tpu.matmul %236, %222, %cst_93 {dimension_numbers = #tpu.dot_dimension_numbers<[1], [0], [0], [1], [0, 0, 1, 1], [], []>} : vector<16x16xf32>, vector<16x4xf32>, vector<16x4xf32> -> vector<16x4xf32>
    %238 = vector.extract_strided_slice %183 {offsets = [0, 12], sizes = [16, 4], strides = [1, 1]} : vector<16x48xf32> to vector<16x4xf32>
    %239 = vector.extract_strided_slice %183 {offsets = [0, 28], sizes = [16, 4], strides = [1, 1]} : vector<16x48xf32> to vector<16x4xf32>
    %240 = vector.extract_strided_slice %183 {offsets = [0, 44], sizes = [16, 4], strides = [1, 1]} : vector<16x48xf32> to vector<16x4xf32>
    %cst_94 = arith.constant dense<0.000000e+00> : vector<16x16xf32>
    %241 = tpu.matmul %238, %239, %cst_94 {dimension_numbers = #tpu.dot_dimension_numbers<[1], [1], [0], [0], [0, 0, 1, 0], [], []>} : vector<16x4xf32>, vector<16x4xf32>, vector<16x16xf32> -> vector<16x16xf32>
    %cst_95 = arith.constant 5.000000e-01 : f32
    %242 = vector.broadcast %cst_95 : f32 to vector<16x16xf32>
    %243 = arith.mulf %241, %242 : vector<16x16xf32>
    %244 = arith.addf %243, %11 : vector<16x16xf32>
    %cst_96 = arith.constant dense<0xFF800000> : vector<16xf32>
    %245 = vector.multi_reduction <maximumf>, %244, %cst_96 [1] : vector<16x16xf32> to vector<16xf32>
    %246 = vector.shape_cast %245 : vector<16xf32> to vector<16x1xf32>
    %247 = vector.broadcast %246 : vector<16x1xf32> to vector<16x16xf32>
    %248 = arith.subf %244, %247 : vector<16x16xf32>
    %249 = math.exp %248 : vector<16x16xf32>
    %cst_97 = arith.constant dense<0.000000e+00> : vector<16xf32>
    %250 = vector.multi_reduction <add>, %249, %cst_97 [1] : vector<16x16xf32> to vector<16xf32>
    %251 = vector.shape_cast %250 : vector<16xf32> to vector<16x1xf32>
    %252 = tpu.reciprocal %251 {approx = true} : vector<16x1xf32> -> vector<16x1xf32>
    %253 = vector.broadcast %252 : vector<16x1xf32> to vector<16x16xf32>
    %254 = arith.mulf %249, %253 : vector<16x16xf32>
    %cst_98 = arith.constant dense<0.000000e+00> : vector<16x4xf32>
    %255 = tpu.matmul %254, %240, %cst_98 {dimension_numbers = #tpu.dot_dimension_numbers<[1], [0], [0], [1], [0, 0, 1, 1], [], []>} : vector<16x16xf32>, vector<16x4xf32>, vector<16x4xf32> -> vector<16x4xf32>
    %256 = tpu.concatenate %201, %219, %237, %255 in 1 : vector<16x4xf32>, vector<16x4xf32>, vector<16x4xf32>, vector<16x4xf32> -> vector<16x16xf32>
    %cst_99 = arith.constant dense<0.000000e+00> : vector<16x16xf32>
    %257 = tpu.matmul %256, %170, %cst_99 {dimension_numbers = #tpu.dot_dimension_numbers<[1], [0], [0], [1], [0, 0, 1, 1], [], []>} : vector<16x16xf32>, vector<16x16xf32>, vector<16x16xf32> -> vector<16x16xf32>
    %258 = vector.broadcast %174 : vector<1x16xf32> to vector<16x16xf32>
    %259 = arith.addf %257, %258 : vector<16x16xf32>
    %260 = arith.addf %160, %259 : vector<16x16xf32>
    %cst_100 = arith.constant dense<0.000000e+00> : vector<16xf32>
    %261 = vector.multi_reduction <add>, %260, %cst_100 [1] : vector<16x16xf32> to vector<16xf32>
    %262 = vector.shape_cast %261 : vector<16xf32> to vector<16x1xf32>
    %cst_101 = arith.constant 1.600000e+01 : f32
    %263 = vector.broadcast %cst_101 : f32 to vector<16x1xf32>
    %264 = arith.divf %262, %263 : vector<16x1xf32>
    %265 = vector.broadcast %264 : vector<16x1xf32> to vector<16x16xf32>
    %266 = arith.subf %260, %265 : vector<16x16xf32>
    %267 = arith.mulf %266, %266 : vector<16x16xf32>
    %cst_102 = arith.constant dense<0.000000e+00> : vector<16xf32>
    %268 = vector.multi_reduction <add>, %267, %cst_102 [1] : vector<16x16xf32> to vector<16xf32>
    %269 = vector.shape_cast %268 : vector<16xf32> to vector<16x1xf32>
    %cst_103 = arith.constant 1.600000e+01 : f32
    %270 = vector.broadcast %cst_103 : f32 to vector<16x1xf32>
    %271 = arith.divf %269, %270 : vector<16x1xf32>
    %cst_104 = arith.constant 9.99999974E-6 : f32
    %272 = vector.broadcast %cst_104 : f32 to vector<16x1xf32>
    %273 = arith.addf %271, %272 : vector<16x1xf32>
    %274 = math.rsqrt %273 : vector<16x1xf32>
    %275 = vector.broadcast %274 : vector<16x1xf32> to vector<16x16xf32>
    %276 = arith.mulf %266, %275 : vector<16x16xf32>
    %277 = vector.broadcast %175 : vector<1x16xf32> to vector<16x16xf32>
    %278 = arith.mulf %276, %277 : vector<16x16xf32>
    %279 = vector.broadcast %176 : vector<1x16xf32> to vector<16x16xf32>
    %280 = arith.addf %278, %279 : vector<16x16xf32>
    %cst_105 = arith.constant dense<0.000000e+00> : vector<16x32xf32>
    %281 = tpu.matmul %280, %171, %cst_105 {dimension_numbers = #tpu.dot_dimension_numbers<[1], [0], [0], [1], [0, 0, 1, 1], [], []>} : vector<16x16xf32>, vector<16x32xf32>, vector<16x32xf32> -> vector<16x32xf32>
    %282 = vector.broadcast %177 : vector<1x32xf32> to vector<16x32xf32>
    %283 = arith.addf %281, %282 : vector<16x32xf32>
    %cst_106 = arith.constant 0.000000e+00 : f32
    %284 = vector.broadcast %cst_106 : f32 to vector<16x32xf32>
    %285 = arith.maximumf %283, %284 : vector<16x32xf32>
    %cst_107 = arith.constant dense<0.000000e+00> : vector<16x16xf32>
    %286 = tpu.matmul %285, %172, %cst_107 {dimension_numbers = #tpu.dot_dimension_numbers<[1], [0], [0], [1], [0, 0, 1, 1], [], []>} : vector<16x32xf32>, vector<32x16xf32>, vector<16x16xf32> -> vector<16x16xf32>
    %287 = vector.broadcast %178 : vector<1x16xf32> to vector<16x16xf32>
    %288 = arith.addf %286, %287 : vector<16x16xf32>
    %289 = arith.addf %280, %288 : vector<16x16xf32>
    %cst_108 = arith.constant dense<0.000000e+00> : vector<16xf32>
    %290 = vector.multi_reduction <add>, %289, %cst_108 [1] : vector<16x16xf32> to vector<16xf32>
    %291 = vector.shape_cast %290 : vector<16xf32> to vector<16x1xf32>
    %cst_109 = arith.constant 1.600000e+01 : f32
    %292 = vector.broadcast %cst_109 : f32 to vector<16x1xf32>
    %293 = arith.divf %291, %292 : vector<16x1xf32>
    %294 = vector.broadcast %293 : vector<16x1xf32> to vector<16x16xf32>
    %295 = arith.subf %289, %294 : vector<16x16xf32>
    %296 = arith.mulf %295, %295 : vector<16x16xf32>
    %cst_110 = arith.constant dense<0.000000e+00> : vector<16xf32>
    %297 = vector.multi_reduction <add>, %296, %cst_110 [1] : vector<16x16xf32> to vector<16xf32>
    %298 = vector.shape_cast %297 : vector<16xf32> to vector<16x1xf32>
    %cst_111 = arith.constant 1.600000e+01 : f32
    %299 = vector.broadcast %cst_111 : f32 to vector<16x1xf32>
    %300 = arith.divf %298, %299 : vector<16x1xf32>
    %cst_112 = arith.constant 9.99999974E-6 : f32
    %301 = vector.broadcast %cst_112 : f32 to vector<16x1xf32>
    %302 = arith.addf %300, %301 : vector<16x1xf32>
    %303 = math.rsqrt %302 : vector<16x1xf32>
    %304 = vector.broadcast %303 : vector<16x1xf32> to vector<16x16xf32>
    %305 = arith.mulf %295, %304 : vector<16x16xf32>
    %306 = vector.broadcast %179 : vector<1x16xf32> to vector<16x16xf32>
    %307 = arith.mulf %305, %306 : vector<16x16xf32>
    %308 = vector.broadcast %180 : vector<1x16xf32> to vector<16x16xf32>
    %309 = arith.addf %307, %308 : vector<16x16xf32>
    %310 = vector.extract_strided_slice %309 {offsets = [0, 0], sizes = [8, 16], strides = [1, 1]} : vector<16x16xf32> to vector<8x16xf32>
    %311 = vector.extract_strided_slice %309 {offsets = [8, 0], sizes = [8, 16], strides = [1, 1]} : vector<16x16xf32> to vector<8x16xf32>
    %c0_113 = arith.constant 0 : index
    %c0_114 = arith.constant 0 : index
    %c0_115 = arith.constant 0 : index
    %312 = vector.load %arg3[%c0_113, %c0_114, %c0_115] : memref<6x48x8xf32, #tpu.memory_space<vmem>>, vector<1x48x8xf32>
    %313 = vector.shape_cast %312 : vector<1x48x8xf32> to vector<48x8xf32>
    %c16 = arith.constant 16 : index
    %c0_116 = arith.constant 0 : index
    %314 = vector.load %arg2[%c16, %c0_116] : memref<26x48xf32, #tpu.memory_space<vmem>>, vector<1x8xf32>
    %cst_117 = arith.constant 0.000000e+00 : f32
    %315 = vector.broadcast %cst_117 : f32 to vector<8x16xf32>
    %316 = tpu.concatenate %315, %310, %311 in 1 : vector<8x16xf32>, vector<8x16xf32>, vector<8x16xf32> -> vector<8x48xf32>
    %cst_118 = arith.constant dense<0.000000e+00> : vector<8x8xf32>
    %317 = tpu.matmul %316, %313, %cst_118 {dimension_numbers = #tpu.dot_dimension_numbers<[1], [0], [0], [1], [0, 0, 1, 1], [], []>} : vector<8x48xf32>, vector<48x8xf32>, vector<8x8xf32> -> vector<8x8xf32>
    %318 = vector.broadcast %314 : vector<1x8xf32> to vector<8x8xf32>
    %319 = arith.addf %317, %318 : vector<8x8xf32>
    %cst_119 = arith.constant 0.000000e+00 : f32
    %320 = vector.broadcast %cst_119 : f32 to vector<8x8xf32>
    %321 = arith.maximumf %319, %320 : vector<8x8xf32>
    %322 = tpu.concatenate %310, %311, %315 in 1 : vector<8x16xf32>, vector<8x16xf32>, vector<8x16xf32> -> vector<8x48xf32>
    %cst_120 = arith.constant dense<0.000000e+00> : vector<8x8xf32>
    %323 = tpu.matmul %322, %313, %cst_120 {dimension_numbers = #tpu.dot_dimension_numbers<[1], [0], [0], [1], [0, 0, 1, 1], [], []>} : vector<8x48xf32>, vector<48x8xf32>, vector<8x8xf32> -> vector<8x8xf32>
    %324 = vector.broadcast %314 : vector<1x8xf32> to vector<8x8xf32>
    %325 = arith.addf %323, %324 : vector<8x8xf32>
    %cst_121 = arith.constant 0.000000e+00 : f32
    %326 = vector.broadcast %cst_121 : f32 to vector<8x8xf32>
    %327 = arith.maximumf %325, %326 : vector<8x8xf32>
    %c1_122 = arith.constant 1 : index
    %c0_123 = arith.constant 0 : index
    %c0_124 = arith.constant 0 : index
    %328 = vector.load %arg3[%c1_122, %c0_123, %c0_124] : memref<6x48x8xf32, #tpu.memory_space<vmem>>, vector<1x48x8xf32>
    %329 = vector.shape_cast %328 : vector<1x48x8xf32> to vector<48x8xf32>
    %330 = vector.extract_strided_slice %329 {offsets = [0, 0], sizes = [24, 8], strides = [1, 1]} : vector<48x8xf32> to vector<24x8xf32>
    %c17 = arith.constant 17 : index
    %c0_125 = arith.constant 0 : index
    %331 = vector.load %arg2[%c17, %c0_125] : memref<26x48xf32, #tpu.memory_space<vmem>>, vector<1x8xf32>
    %cst_126 = arith.constant 0.000000e+00 : f32
    %332 = vector.broadcast %cst_126 : f32 to vector<8x8xf32>
    %333 = tpu.concatenate %332, %321, %327 in 1 : vector<8x8xf32>, vector<8x8xf32>, vector<8x8xf32> -> vector<8x24xf32>
    %cst_127 = arith.constant dense<0.000000e+00> : vector<8x8xf32>
    %334 = tpu.matmul %333, %330, %cst_127 {dimension_numbers = #tpu.dot_dimension_numbers<[1], [0], [0], [1], [0, 0, 1, 1], [], []>} : vector<8x24xf32>, vector<24x8xf32>, vector<8x8xf32> -> vector<8x8xf32>
    %335 = vector.broadcast %331 : vector<1x8xf32> to vector<8x8xf32>
    %336 = arith.addf %334, %335 : vector<8x8xf32>
    %cst_128 = arith.constant 0.000000e+00 : f32
    %337 = vector.broadcast %cst_128 : f32 to vector<8x8xf32>
    %338 = arith.maximumf %336, %337 : vector<8x8xf32>
    %c2_129 = arith.constant 2 : index
    %c0_130 = arith.constant 0 : index
    %c0_131 = arith.constant 0 : index
    %339 = vector.load %arg3[%c2_129, %c0_130, %c0_131] : memref<6x48x8xf32, #tpu.memory_space<vmem>>, vector<1x48x8xf32>
    %340 = vector.shape_cast %339 : vector<1x48x8xf32> to vector<48x8xf32>
    %341 = vector.extract_strided_slice %340 {offsets = [0, 0], sizes = [24, 8], strides = [1, 1]} : vector<48x8xf32> to vector<24x8xf32>
    %c18 = arith.constant 18 : index
    %c0_132 = arith.constant 0 : index
    %342 = vector.load %arg2[%c18, %c0_132] : memref<26x48xf32, #tpu.memory_space<vmem>>, vector<1x8xf32>
    %cst_133 = arith.constant 0.000000e+00 : f32
    %343 = vector.broadcast %cst_133 : f32 to vector<8x8xf32>
    %344 = tpu.concatenate %343, %338, %343 in 1 : vector<8x8xf32>, vector<8x8xf32>, vector<8x8xf32> -> vector<8x24xf32>
    %cst_134 = arith.constant dense<0.000000e+00> : vector<8x8xf32>
    %345 = tpu.matmul %344, %341, %cst_134 {dimension_numbers = #tpu.dot_dimension_numbers<[1], [0], [0], [1], [0, 0, 1, 1], [], []>} : vector<8x24xf32>, vector<24x8xf32>, vector<8x8xf32> -> vector<8x8xf32>
    %346 = vector.broadcast %342 : vector<1x8xf32> to vector<8x8xf32>
    %347 = arith.addf %345, %346 : vector<8x8xf32>
    %cst_135 = arith.constant 0.000000e+00 : f32
    %348 = vector.broadcast %cst_135 : f32 to vector<8x8xf32>
    %349 = arith.maximumf %347, %348 : vector<8x8xf32>
    %c3_136 = arith.constant 3 : index
    %c0_137 = arith.constant 0 : index
    %c0_138 = arith.constant 0 : index
    %350 = vector.load %arg3[%c3_136, %c0_137, %c0_138] : memref<6x48x8xf32, #tpu.memory_space<vmem>>, vector<1x48x8xf32>
    %351 = vector.shape_cast %350 : vector<1x48x8xf32> to vector<48x8xf32>
    %352 = vector.extract_strided_slice %351 {offsets = [0, 0], sizes = [24, 8], strides = [1, 1]} : vector<48x8xf32> to vector<24x8xf32>
    %c19 = arith.constant 19 : index
    %c0_139 = arith.constant 0 : index
    %353 = vector.load %arg2[%c19, %c0_139] : memref<26x48xf32, #tpu.memory_space<vmem>>, vector<1x8xf32>
    %cst_140 = arith.constant 0.000000e+00 : f32
    %354 = vector.broadcast %cst_140 : f32 to vector<8x8xf32>
    %355 = tpu.concatenate %354, %349, %354 in 1 : vector<8x8xf32>, vector<8x8xf32>, vector<8x8xf32> -> vector<8x24xf32>
    %cst_141 = arith.constant dense<0.000000e+00> : vector<8x8xf32>
    %356 = tpu.matmul %355, %352, %cst_141 {dimension_numbers = #tpu.dot_dimension_numbers<[1], [0], [0], [1], [0, 0, 1, 1], [], []>} : vector<8x24xf32>, vector<24x8xf32>, vector<8x8xf32> -> vector<8x8xf32>
    %357 = vector.broadcast %353 : vector<1x8xf32> to vector<8x8xf32>
    %358 = arith.addf %356, %357 : vector<8x8xf32>
    %cst_142 = arith.constant 0.000000e+00 : f32
    %359 = vector.broadcast %cst_142 : f32 to vector<8x8xf32>
    %360 = arith.maximumf %358, %359 : vector<8x8xf32>
    %c4_143 = arith.constant 4 : index
    %c0_144 = arith.constant 0 : index
    %c0_145 = arith.constant 0 : index
    %361 = vector.load %arg3[%c4_143, %c0_144, %c0_145] : memref<6x48x8xf32, #tpu.memory_space<vmem>>, vector<1x48x8xf32>
    %362 = vector.shape_cast %361 : vector<1x48x8xf32> to vector<48x8xf32>
    %363 = vector.extract_strided_slice %362 {offsets = [0, 0], sizes = [24, 8], strides = [1, 1]} : vector<48x8xf32> to vector<24x8xf32>
    %c20 = arith.constant 20 : index
    %c0_146 = arith.constant 0 : index
    %364 = vector.load %arg2[%c20, %c0_146] : memref<26x48xf32, #tpu.memory_space<vmem>>, vector<1x8xf32>
    %cst_147 = arith.constant 0.000000e+00 : f32
    %365 = vector.broadcast %cst_147 : f32 to vector<8x8xf32>
    %366 = tpu.concatenate %365, %360, %365 in 1 : vector<8x8xf32>, vector<8x8xf32>, vector<8x8xf32> -> vector<8x24xf32>
    %cst_148 = arith.constant dense<0.000000e+00> : vector<8x8xf32>
    %367 = tpu.matmul %366, %363, %cst_148 {dimension_numbers = #tpu.dot_dimension_numbers<[1], [0], [0], [1], [0, 0, 1, 1], [], []>} : vector<8x24xf32>, vector<24x8xf32>, vector<8x8xf32> -> vector<8x8xf32>
    %368 = vector.broadcast %364 : vector<1x8xf32> to vector<8x8xf32>
    %369 = arith.addf %367, %368 : vector<8x8xf32>
    %cst_149 = arith.constant 0.000000e+00 : f32
    %370 = vector.broadcast %cst_149 : f32 to vector<8x8xf32>
    %371 = arith.maximumf %369, %370 : vector<8x8xf32>
    %c5_150 = arith.constant 5 : index
    %c0_151 = arith.constant 0 : index
    %c0_152 = arith.constant 0 : index
    %372 = vector.load %arg3[%c5_150, %c0_151, %c0_152] : memref<6x48x8xf32, #tpu.memory_space<vmem>>, vector<1x48x8xf32>
    %373 = vector.shape_cast %372 : vector<1x48x8xf32> to vector<48x8xf32>
    %374 = vector.extract_strided_slice %373 {offsets = [0, 0], sizes = [24, 8], strides = [1, 1]} : vector<48x8xf32> to vector<24x8xf32>
    %c21 = arith.constant 21 : index
    %c0_153 = arith.constant 0 : index
    %375 = vector.load %arg2[%c21, %c0_153] : memref<26x48xf32, #tpu.memory_space<vmem>>, vector<1x8xf32>
    %cst_154 = arith.constant 0.000000e+00 : f32
    %376 = vector.broadcast %cst_154 : f32 to vector<8x8xf32>
    %377 = tpu.concatenate %376, %371, %376 in 1 : vector<8x8xf32>, vector<8x8xf32>, vector<8x8xf32> -> vector<8x24xf32>
    %cst_155 = arith.constant dense<0.000000e+00> : vector<8x8xf32>
    %378 = tpu.matmul %377, %374, %cst_155 {dimension_numbers = #tpu.dot_dimension_numbers<[1], [0], [0], [1], [0, 0, 1, 1], [], []>} : vector<8x24xf32>, vector<24x8xf32>, vector<8x8xf32> -> vector<8x8xf32>
    %379 = vector.broadcast %375 : vector<1x8xf32> to vector<8x8xf32>
    %380 = arith.addf %378, %379 : vector<8x8xf32>
    %c0_156 = arith.constant 0 : index
    %c0_157 = arith.constant 0 : index
    %c0_158 = arith.constant 0 : index
    %381 = vector.load %arg4[%c0_156, %c0_157, %c0_158] : memref<4x32x32xf32, #tpu.memory_space<vmem>>, vector<1x32x32xf32>
    %382 = vector.shape_cast %381 : vector<1x32x32xf32> to vector<32x32xf32>
    %383 = vector.extract_strided_slice %382 {offsets = [0, 0], sizes = [8, 32], strides = [1, 1]} : vector<32x32xf32> to vector<8x32xf32>
    %cst_159 = arith.constant dense<0.000000e+00> : vector<8x32xf32>
    %384 = tpu.matmul %380, %383, %cst_159 {dimension_numbers = #tpu.dot_dimension_numbers<[1], [0], [0], [1], [0, 0, 1, 1], [], []>} : vector<8x8xf32>, vector<8x32xf32>, vector<8x32xf32> -> vector<8x32xf32>
    %c22 = arith.constant 22 : index
    %c0_160 = arith.constant 0 : index
    %385 = vector.load %arg2[%c22, %c0_160] : memref<26x48xf32, #tpu.memory_space<vmem>>, vector<1x32xf32>
    %386 = vector.broadcast %385 : vector<1x32xf32> to vector<8x32xf32>
    %387 = arith.addf %384, %386 : vector<8x32xf32>
    %c0_161 = arith.constant 0 : index
    %c0_162 = arith.constant 0 : index
    %388 = vector.load %arg6[%c0_161, %c0_162] : memref<8x32xf32, #tpu.memory_space<vmem>>, vector<8x32xf32>
    tpu.vector_store %arg6[%c0_161, %c0_162], %387 {strides = array<i32>} : memref<8x32xf32, #tpu.memory_space<vmem>>, vector<8x32xf32>,
    %c1_163 = arith.constant 1 : index
    %c0_164 = arith.constant 0 : index
    %c0_165 = arith.constant 0 : index
    %389 = vector.load %arg4[%c1_163, %c0_164, %c0_165] : memref<4x32x32xf32, #tpu.memory_space<vmem>>, vector<1x32x32xf32>
    %390 = vector.shape_cast %389 : vector<1x32x32xf32> to vector<32x32xf32>
    %cst_166 = arith.constant dense<0.000000e+00> : vector<8x32xf32>
    %391 = tpu.matmul %387, %390, %cst_166 {dimension_numbers = #tpu.dot_dimension_numbers<[1], [0], [0], [1], [0, 0, 1, 1], [], []>} : vector<8x32xf32>, vector<32x32xf32>, vector<8x32xf32> -> vector<8x32xf32>
    %c23 = arith.constant 23 : index
    %c0_167 = arith.constant 0 : index
    %392 = vector.load %arg2[%c23, %c0_167] : memref<26x48xf32, #tpu.memory_space<vmem>>, vector<1x32xf32>
    %393 = vector.broadcast %392 : vector<1x32xf32> to vector<8x32xf32>
    %394 = arith.addf %391, %393 : vector<8x32xf32>
    %cst_168 = arith.constant 0.000000e+00 : f32
    %395 = vector.broadcast %cst_168 : f32 to vector<8x32xf32>
    %396 = arith.maximumf %394, %395 : vector<8x32xf32>
    %c2_169 = arith.constant 2 : index
    %c0_170 = arith.constant 0 : index
    %c0_171 = arith.constant 0 : index
    %397 = vector.load %arg4[%c2_169, %c0_170, %c0_171] : memref<4x32x32xf32, #tpu.memory_space<vmem>>, vector<1x32x32xf32>
    %398 = vector.shape_cast %397 : vector<1x32x32xf32> to vector<32x32xf32>
    %399 = vector.extract_strided_slice %398 {offsets = [0, 0], sizes = [32, 16], strides = [1, 1]} : vector<32x32xf32> to vector<32x16xf32>
    %cst_172 = arith.constant dense<0.000000e+00> : vector<8x16xf32>
    %400 = tpu.matmul %396, %399, %cst_172 {dimension_numbers = #tpu.dot_dimension_numbers<[1], [0], [0], [1], [0, 0, 1, 1], [], []>} : vector<8x32xf32>, vector<32x16xf32>, vector<8x16xf32> -> vector<8x16xf32>
    %c24 = arith.constant 24 : index
    %c0_173 = arith.constant 0 : index
    %401 = vector.load %arg2[%c24, %c0_173] : memref<26x48xf32, #tpu.memory_space<vmem>>, vector<1x16xf32>
    %402 = vector.broadcast %401 : vector<1x16xf32> to vector<8x16xf32>
    %403 = arith.addf %400, %402 : vector<8x16xf32>
    %cst_174 = arith.constant 0.000000e+00 : f32
    %404 = vector.broadcast %cst_174 : f32 to vector<8x16xf32>
    %405 = arith.maximumf %403, %404 : vector<8x16xf32>
    %c3_175 = arith.constant 3 : index
    %c0_176 = arith.constant 0 : index
    %c0_177 = arith.constant 0 : index
    %406 = vector.load %arg4[%c3_175, %c0_176, %c0_177] : memref<4x32x32xf32, #tpu.memory_space<vmem>>, vector<1x32x32xf32>
    %407 = vector.shape_cast %406 : vector<1x32x32xf32> to vector<32x32xf32>
    %408 = vector.extract_strided_slice %407 {offsets = [0, 0], sizes = [16, 1], strides = [1, 1]} : vector<32x32xf32> to vector<16x1xf32>
    %cst_178 = arith.constant dense<0.000000e+00> : vector<8x1xf32>
    %409 = tpu.matmul %405, %408, %cst_178 {dimension_numbers = #tpu.dot_dimension_numbers<[1], [0], [0], [1], [0, 0, 1, 1], [], []>} : vector<8x16xf32>, vector<16x1xf32>, vector<8x1xf32> -> vector<8x1xf32>
    %c25 = arith.constant 25 : index
    %c0_179 = arith.constant 0 : index
    %410 = vector.load %arg2[%c25, %c0_179] : memref<26x48xf32, #tpu.memory_space<vmem>>, vector<1x1xf32>
    %411 = vector.broadcast %410 : vector<1x1xf32> to vector<8x1xf32>
    %412 = arith.addf %409, %411 : vector<8x1xf32>
    %c0_180 = arith.constant 0 : index
    %c0_181 = arith.constant 0 : index
    %413 = vector.load %arg5[%c0_180, %c0_181] : memref<8x1xf32, #tpu.memory_space<vmem>>, vector<8x1xf32>
    tpu.vector_store %arg5[%c0_180, %c0_181], %412 {strides = array<i32>} : memref<8x1xf32, #tpu.memory_space<vmem>>, vector<8x1xf32>,
    return
  }
}

</mosaic_0001>

<llo_original>
// kernel: transformer_model_cnn_forward.1
$region0: #{transformer_model_cnn_forward.1}
  #allocation0 [shape = 'u32[]', space=smem, size = 0x4, offset = 0x4, fixed_abs, tag = 'smem constant byte address 0x4 - core index']
  #allocation1 [shape = 'u32[144,128]{1,0:T(1,128)}', space=vmem, size = 0x12000, scoped, tag = 'internal scratch']
  %s0 = inlined_call_operand.vmem [shape: f32[16,16], index: 0, kind: input, shape index: {}]
  %s1 = inlined_call_operand.vmem [shape: f32[8,32,48], index: 1, kind: input, shape index: {}]
  %s2 = inlined_call_operand.vmem [shape: f32[26,48], index: 2, kind: input, shape index: {}]
  %s3 = inlined_call_operand.vmem [shape: f32[6,48,8], index: 3, kind: input, shape index: {}]
  %s4 = inlined_call_operand.vmem [shape: f32[4,32,32], index: 4, kind: input, shape index: {}]
  %s5 = inlined_call_operand.vmem [shape: f32[8,1], index: 5, kind: output, shape index: {0}]
  %s6 = inlined_call_operand.hbm [shape: f32[8,32], index: 6, kind: output, shape index: {1}]
  %7 = xla_tuple %s5, %s6
  %s8 = sld [smem:[#allocation0]]
  $region38: #{transformer_model_cnn_forward.1} parent=0
    _
  %s10 = ssub.s32 1, %s8
  %s11 = scalar_select 0, %s10, %s8
  $region1: #{transformer_model_cnn_forward.1} parent=0
    #allocation2 [shape = 'u8[4096]{0}', space=vmem, size = 0x1000, scoped, tag = 'output window, operand 1, single buffered']
    #allocation3 [shape = 's32[1]{0}', space=sflag, size = 0x4, scoped, tag = 'scoped memory for transformer_model_cnn_forward.1']
    %12 = vsyncpa [#allocation3], 0
    // Predicated region
    $region2: #{transformer_model_cnn_forward.1} parent=1 // pred_check
      _
    $region3: #{transformer_model_cnn_forward.1} parent=1 // pred_check_branch
      %14 = sbr.rel (0) target = $region5
    $region4: #{transformer_model_cnn_forward.1} parent=1 // pred_region
      _
    $region5: #{transformer_model_cnn_forward.1} parent=1 // pred_fallthru
      _
    // Predicated region
    $region6: #{transformer_model_cnn_forward.1} parent=1 // pred_check
      _
    $region7: #{transformer_model_cnn_forward.1} parent=1 // pred_check_branch
      %16 = sbr.rel (0) target = $region9
    $region8: #{transformer_model_cnn_forward.1} parent=1 // pred_region
      _
    $region9: #{transformer_model_cnn_forward.1} parent=1 // pred_fallthru
      _
    // Predicated region
    $region10: #{transformer_model_cnn_forward.1} parent=1 // pred_check
      _
    $region11: #{transformer_model_cnn_forward.1} parent=1 // pred_check_branch
      %18 = sbr.rel (0) target = $region13
    $region12: #{transformer_model_cnn_forward.1} parent=1 // pred_region
      _
    $region13: #{transformer_model_cnn_forward.1} parent=1 // pred_fallthru
      _
    // Predicated region
    $region14: #{transformer_model_cnn_forward.1} parent=1 // pred_check
      _
    $region15: #{transformer_model_cnn_forward.1} parent=1 // pred_check_branch
      %20 = sbr.rel (0) target = $region17
    $region16: #{transformer_model_cnn_forward.1} parent=1 // pred_region
      _
    $region17: #{transformer_model_cnn_forward.1} parent=1 // pred_fallthru
      _
    // Predicated region
    $region18: #{transformer_model_cnn_forward.1} parent=1 // pred_check
      _
    $region19: #{transformer_model_cnn_forward.1} parent=1 // pred_check_branch
      %22 = sbr.rel (0) target = $region21
    $region20: #{transformer_model_cnn_forward.1} parent=1 // pred_region
      _
    $region21: #{transformer_model_cnn_forward.1} parent=1 // pred_fallthru
      _
    %v23 = vld [vmem:[%s0] sm:$0xff]
    %v24 = vld [vmem:[%s0 + $0x8] sm:$0xff]
    %v25 = vlaneseq
    %v26 = vshrl.u32 %v25, 7
    %v27 = vadd.s32 %v26, 8
    %v28 = vlaneseq
    %v29 = vand.u32 %v28, 127
    %v30 = vand.u32 %v26, 7
    %v31 = vand.u32 %v27, 7
    %v32 = vsub.s32 %v26, %v30
    %v33 = vsub.s32 %v27, %v31
    %vm34 = vcmp.le.s32.totalorder %v29, %v26
    %vm35 = vcmp.le.s32.totalorder %v29, %v27
    %vm36 = vcmp.ge.s32.totalorder %v29, %v32
    %vm37 = vcmp.ge.s32.totalorder %v29, %v33
    %vm38 = vmand %vm34, %vm36
    %vm39 = vmand %vm35, %vm37
    %v40 = vsel %vm38, 0.0, -1e+30
    %v41 = vsel %vm39, 0.0, -1e+30
    %v42 = vld [vmem:[%s1] sm:$0xff]
    %v43 = vld [vmem:[%s1 + $0x8] sm:$0xff]
    %s44 = scalar_lea.vmem %s1, 32
    %v45 = vld [vmem:[%s44] sm:$0xff]
    %v46 = vld [vmem:[%s44 + $0x8] sm:$0xff]
    %s47 = scalar_lea.vmem %s1, 64
    %v48 = vld [vmem:[%s47] sm:$0xff]
    %v49 = vld [vmem:[%s47 + $0x8] sm:$0xff]
    %s50 = scalar_lea.vmem %s1, 96
    %v51 = vld [vmem:[%s50] sm:$0xff]
    %v52 = vld [vmem:[%s50 + $0x8] sm:$0xff]
    %v53 = vld [vmem:[%s50 + $0x10] sm:$0xff]
    %v54 = vld [vmem:[%s50 + $0x18] sm:$0xff]
    %v55 = vld [vmem:[%s2] sm:$0x1]
    %v56 = vld [vmem:[%s2 + $0x1] sm:$0x1]
    %v57 = vld [vmem:[%s2 + $0x2] sm:$0x1]
    %v58 = vld [vmem:[%s2 + $0x3] sm:$0x1]
    %v59 = vld [vmem:[%s2 + $0x4] sm:$0x1]
    %v60 = vld [vmem:[%s2 + $0x5] sm:$0x1]
    %v61 = vld [vmem:[%s2 + $0x6] sm:$0x1]
    %v62 = vld [vmem:[%s2 + $0x7] sm:$0x1]
    %v63 = vlaneseq
    %v64 = vshrl.u32 %v63, 7
    %v65 = vsub.s32 0, %v64
    %v66 = vrot.slane %v55, %v65
    %vm67 = vcmask 130048
    %v69 = vsel %vm67, %v23, 0
    %v72 = vsel %vm67, %v24, 0
    %74 = vmatprep.subr.mxu0 0.0
    %75 = vmatpush1.msra.mxu0 %v42
    %76 = vmatprep.subr.mxu0 0.0
    %77 = vmatpush1.msra.mxu0 %v43
    %78 = vmatprep.subr.mxu0 0.0
    %79 = vmatpush1.msra.mxu0 0.0
    %80 = vmatprep.subr.mxu0 0.0
    %81 = vmatpush1.msra.mxu0 0.0
    %82 = vmatprep.subr.mxu0 0.0
    %83 = vmatpush1.msra.mxu0 0.0
    %84 = vmatprep.subr.mxu0 0.0
    %85 = vmatpush1.msra.mxu0 0.0
    %86 = vmatprep.subr.mxu0 0.0
    %87 = vmatpush1.msra.mxu0 0.0
    %88 = vmatprep.subr.mxu0 0.0
    %89 = vmatpush1.msra.mxu0 0.0
    %90 = vmatprep.subr.mxu0 0.0
    %91 = vmatpush1.msra.mxu0 0.0
    %92 = vmatprep.subr.mxu0 0.0
    %93 = vmatpush1.msra.mxu0 0.0
    %94 = vmatprep.subr.mxu0 0.0
    %95 = vmatpush1.msra.mxu0 0.0
    %96 = vmatprep.subr.mxu0 0.0
    %97 = vmatpush1.msra.mxu0 0.0
    %98 = vmatprep.subr.mxu0 0.0
    %99 = vmatpush1.msra.mxu0 0.0
    %100 = vmatprep.subr.mxu0 0.0
    %101 = vmatpush1.msra.mxu0 0.0
    %102 = vmatprep.subr.mxu0 0.0
    %103 = vmatpush1.msra.mxu0 0.0
    %104 = vmatprep.subr.mxu0 0.0
    %105 = vmatpush1.msra.mxu0 0.0
    %106 = vmatprep.subr.mxu0 0.0
    %107 = vmatpush1.msra.mxu0 0.0
    %108 = vmatprep.subr.mxu0 0.0
    %109 = vmatpush1.msra.mxu0 0.0
    %110 = vmatprep.subr.mxu0 0.0
    %111 = vmatpush1.msra.mxu0 0.0
    %112 = vmatprep.subr.mxu0 0.0
    %113 = vmatpush1.msra.mxu0 0.0
    %114 = vmatprep.subr.mxu0 0.0
    %115 = vmatpush1.msra.mxu0 0.0
    %116 = vmatprep.subr.mxu0 0.0
    %117 = vmatpush1.msra.mxu0 0.0
    %118 = vmatprep.subr.mxu0 0.0
    %119 = vmatpush1.msra.mxu0 0.0
    %120 = vmatprep.subr.mxu0 0.0
    %121 = vmatpush1.msra.mxu0 0.0
    %122 = vmatprep.subr.mxu0 0.0
    %123 = vmatpush1.msra.mxu0 0.0
    %124 = vmatprep.subr.mxu0 0.0
    %125 = vmatpush1.msra.mxu0 0.0
    %126 = vmatprep.subr.mxu0 0.0
    %127 = vmatpush1.msra.mxu0 0.0
    %128 = vmatprep.subr.mxu0 0.0
    %129 = vmatpush1.msra.mxu0 0.0
    %130 = vmatprep.subr.mxu0 0.0
    %131 = vmatpush1.msra.mxu0 0.0
    %132 = vmatprep.subr.mxu0 0.0
    %133 = vmatpush1.msra.mxu0 0.0
    %134 = vmatprep.subr.mxu0 0.0
    %135 = vmatpush1.msra.mxu0 0.0
    %136 = vmatprep.subr.mxu0 0.0
    %137 = vmatpush1.msra.mxu0 0.0
    %138 = vmatprep.mubr.f32.mxu0 0.0
    %139 = vmatmul.mubr.f32.gmra.mrb[0].mxu0 %v69
    %v140 = vpop.f32.mrb[0].mxu0
    %v141 = vadd.f32 %v66, %v140
    %v142 = vpop.f32.mrb[0].mxu0
    %143 = vmatprep.mubr.f32.mxu0 0.0
    %144 = vmatmul.mubr.f32.gmra.mrb[0].mxu0 %v72
    %v145 = vpop.f32.mrb[0].mxu0
    %v146 = vadd.f32 %v66, %v145
    %v147 = vpop.f32.mrb[0].mxu0
    %148 = vdwg.mxu0
    %151 = vrot.lane.b32.xlu0 %v141, 112
    %v152 = vpop.permute.xlu0 %151
    %153 = vrot.lane.b32.xlu0 %v146, 112
    %v154 = vpop.permute.xlu0 %153
    %vm155 = vcmask 31744
    %v156 = vsel %vm155, %v141, 0
    %v158 = vsel %vm155, %v146, 0
    %v160 = vsel %vm155, %v152, 0
    %v162 = vsel %vm155, %v154, 0
    %164 = vmatprep.subr.mxu0 0.0
    %165 = vmatpush1.xpose.msra.mxu0 %v160
    %166 = vmatprep.subr.mxu0 0.0
    %167 = vmatpush1.xpose.msra.mxu0 %v162
    %168 = vmatprep.subr.mxu0 0.0
    %169 = vmatpush1.xpose.msra.mxu0 0.0
    %170 = vmatprep.subr.mxu0 0.0
    %171 = vmatpush1.xpose.msra.mxu0 0.0
    %172 = vmatprep.subr.mxu0 0.0
    %173 = vmatpush1.xpose.msra.mxu0 0.0
    %174 = vmatprep.subr.mxu0 0.0
    %175 = vmatpush1.xpose.msra.mxu0 0.0
    %176 = vmatprep.subr.mxu0 0.0
    %177 = vmatpush1.xpose.msra.mxu0 0.0
    %178 = vmatprep.subr.mxu0 0.0
    %179 = vmatpush1.xpose.msra.mxu0 0.0
    %180 = vmatprep.subr.mxu0 0.0
    %181 = vmatpush1.xpose.msra.mxu0 0.0
    %182 = vmatprep.subr.mxu0 0.0
    %183 = vmatpush1.xpose.msra.mxu0 0.0
    %184 = vmatprep.subr.mxu0 0.0
    %185 = vmatpush1.xpose.msra.mxu0 0.0
    %186 = vmatprep.subr.mxu0 0.0
    %187 = vmatpush1.xpose.msra.mxu0 0.0
    %188 = vmatprep.subr.mxu0 0.0
    %189 = vmatpush1.xpose.msra.mxu0 0.0
    %190 = vmatprep.subr.mxu0 0.0
    %191 = vmatpush1.xpose.msra.mxu0 0.0
    %192 = vmatprep.subr.mxu0 0.0
    %193 = vmatpush1.xpose.msra.mxu0 0.0
    %194 = vmatprep.subr.mxu0 0.0
    %195 = vmatpush1.xpose.msra.mxu0 0.0
    %196 = vmatprep.subr.mxu0 0.0
    %197 = vmatpush1.xpose.msra.mxu0 0.0
    %198 = vmatprep.subr.mxu0 0.0
    %199 = vmatpush1.xpose.msra.mxu0 0.0
    %200 = vmatprep.subr.mxu0 0.0
    %201 = vmatpush1.xpose.msra.mxu0 0.0
    %202 = vmatprep.subr.mxu0 0.0
    %203 = vmatpush1.xpose.msra.mxu0 0.0
    %204 = vmatprep.subr.mxu0 0.0
    %205 = vmatpush1.xpose.msra.mxu0 0.0
    %206 = vmatprep.subr.mxu0 0.0
    %207 = vmatpush1.xpose.msra.mxu0 0.0
    %208 = vmatprep.subr.mxu0 0.0
    %209 = vmatpush1.xpose.msra.mxu0 0.0
    %210 = vmatprep.subr.mxu0 0.0
    %211 = vmatpush1.xpose.msra.mxu0 0.0
    %212 = vmatprep.subr.mxu0 0.0
    %213 = vmatpush1.xpose.msra.mxu0 0.0
    %214 = vmatprep.subr.mxu0 0.0
    %215 = vmatpush1.xpose.msra.mxu0 0.0
    %216 = vmatprep.subr.mxu0 0.0
    %217 = vmatpush1.xpose.msra.mxu0 0.0
    %218 = vmatprep.subr.mxu0 0.0
    %219 = vmatpush1.xpose.msra.mxu0 0.0
    %220 = vmatprep.subr.mxu0 0.0
    %221 = vmatpush1.xpose.msra.mxu0 0.0
    %222 = vmatprep.subr.mxu0 0.0
    %223 = vmatpush1.xpose.msra.mxu0 0.0
    %224 = vmatprep.subr.mxu0 0.0
    %225 = vmatpush1.xpose.msra.mxu0 0.0
    %226 = vmatprep.subr.mxu0 0.0
    %227 = vmatpush1.xpose.msra.mxu0 0.0
    %228 = vmatprep.mubr.f32.mxu0 0.0
    %229 = vmatmul.mubr.f32.gmra.mrb[0].mxu0 %v156
    %v230 = vpop.f32.mrb[0].mxu0
    %v231 = vadd.f32 0.0, %v230
    %v232 = vpop.f32.mrb[0].mxu0
    %233 = vmatprep.mubr.f32.mxu0 0.0
    %234 = vmatmul.mubr.f32.gmra.mrb[0].mxu0 %v158
    %v235 = vpop.f32.mrb[0].mxu0
    %v236 = vadd.f32 0.0, %v235
    %v237 = vpop.f32.mrb[0].mxu0
    %238 = vdwg.mxu0
    %v239 = vmul.f32 %v231, 0.5
    %v240 = vmul.f32 %v236, 0.5
    %v241 = vadd.f32 %v239, %v40
    %v242 = vadd.f32 %v240, %v41
    %v243 = vsel %vm67, %v241, -inf
    %244 = vmax.xlane.f32.xlu0 %v243
    %v245 = vpop.xlane.xlu0 %244
    %v246 = vsel %vm67, %v242, -inf
    %247 = vmax.xlane.f32.xlu0 %v246
    %v248 = vpop.xlane.xlu0 %247
    %v249 = vsub.f32 %v241, %v245
    %v250 = vsub.f32 %v242, %v248
    %v251 = vmul.f32 %v249, 1.442695
    %v252 = vpow.pop %v251
    %v253 = vmul.f32 %v250, 1.442695
    %v254 = vpow.pop %v253
    %v255 = vsel %vm67, %v252, 0.0
    %256 = vadd.xlane.f32.xlu0 %v255
    %v257 = vpop.xlane.xlu0 %256
    %v258 = vsel %vm67, %v254, 0.0
    %259 = vadd.xlane.f32.xlu0 %v258
    %v260 = vpop.xlane.xlu0 %259
    %v261 = vrcp.pop %v257
    %v262 = vrcp.pop %v260
    %v263 = vmul.f32 %v252, %v261
    %v264 = vmul.f32 %v254, %v262
    %265 = vrot.lane.b32.xlu0 %v141, 96
    %v266 = vpop.permute.xlu0 %265
    %267 = vrot.lane.b32.xlu0 %v146, 96
    %v268 = vpop.permute.xlu0 %267
    %v272 = vsel %vm67, %v263, 0
    %v275 = vsel %vm67, %v264, 0
    %277 = vmatprep.subr.mxu0 0.0
    %278 = vmatpush1.msra.mxu0 %v266
    %279 = vmatprep.subr.mxu0 0.0
    %280 = vmatpush1.msra.mxu0 %v268
    %281 = vmatprep.subr.mxu0 0.0
    %282 = vmatpush1.msra.mxu0 0.0
    %283 = vmatprep.subr.mxu0 0.0
    %284 = vmatpush1.msra.mxu0 0.0
    %285 = vmatprep.subr.mxu0 0.0
    %286 = vmatpush1.msra.mxu0 0.0
    %287 = vmatprep.subr.mxu0 0.0
    %288 = vmatpush1.msra.mxu0 0.0
    %289 = vmatprep.subr.mxu0 0.0
    %290 = vmatpush1.msra.mxu0 0.0
    %291 = vmatprep.subr.mxu0 0.0
    %292 = vmatpush1.msra.mxu0 0.0
    %293 = vmatprep.subr.mxu0 0.0
    %294 = vmatpush1.msra.mxu0 0.0
    %295 = vmatprep.subr.mxu0 0.0
    %296 = vmatpush1.msra.mxu0 0.0
    %297 = vmatprep.subr.mxu0 0.0
    %298 = vmatpush1.msra.mxu0 0.0
    %299 = vmatprep.subr.mxu0 0.0
    %300 = vmatpush1.msra.mxu0 0.0
    %301 = vmatprep.subr.mxu0 0.0
    %302 = vmatpush1.msra.mxu0 0.0
    %303 = vmatprep.subr.mxu0 0.0
    %304 = vmatpush1.msra.mxu0 0.0
    %305 = vmatprep.subr.mxu0 0.0
    %306 = vmatpush1.msra.mxu0 0.0
    %307 = vmatprep.subr.mxu0 0.0
    %308 = vmatpush1.msra.mxu0 0.0
    %309 = vmatprep.subr.mxu0 0.0
    %310 = vmatpush1.msra.mxu0 0.0
    %311 = vmatprep.subr.mxu0 0.0
    %312 = vmatpush1.msra.mxu0 0.0
    %313 = vmatprep.subr.mxu0 0.0
    %314 = vmatpush1.msra.mxu0 0.0
    %315 = vmatprep.subr.mxu0 0.0
    %316 = vmatpush1.msra.mxu0 0.0
    %317 = vmatprep.subr.mxu0 0.0
    %318 = vmatpush1.msra.mxu0 0.0
    %319 = vmatprep.subr.mxu0 0.0
    %320 = vmatpush1.msra.mxu0 0.0
    %321 = vmatprep.subr.mxu0 0.0
    %322 = vmatpush1.msra.mxu0 0.0
    %323 = vmatprep.subr.mxu0 0.0
    %324 = vmatpush1.msra.mxu0 0.0
    %325 = vmatprep.subr.mxu0 0.0
    %326 = vmatpush1.msra.mxu0 0.0
    %327 = vmatprep.subr.mxu0 0.0
    %328 = vmatpush1.msra.mxu0 0.0
    %329 = vmatprep.subr.mxu0 0.0
    %330 = vmatpush1.msra.mxu0 0.0
    %331 = vmatprep.subr.mxu0 0.0
    %332 = vmatpush1.msra.mxu0 0.0
    %333 = vmatprep.subr.mxu0 0.0
    %334 = vmatpush1.msra.mxu0 0.0
    %335 = vmatprep.subr.mxu0 0.0
    %336 = vmatpush1.msra.mxu0 0.0
    %337 = vmatprep.subr.mxu0 0.0
    %338 = vmatpush1.msra.mxu0 0.0
    %339 = vmatprep.subr.mxu0 0.0
    %340 = vmatpush1.msra.mxu0 0.0
    %341 = vmatprep.mubr.f32.mxu0 0.0
    %342 = vmatmul.mubr.f32.gmra.mrb[0].mxu0 %v272
    %v343 = vpop.f32.mrb[0].mxu0
    %v344 = vadd.f32 0.0, %v343
    %v345 = vpop.f32.mrb[0].mxu0
    %346 = vmatprep.mubr.f32.mxu0 0.0
    %347 = vmatmul.mubr.f32.gmra.mrb[0].mxu0 %v275
    %v348 = vpop.f32.mrb[0].mxu0
    %v349 = vadd.f32 0.0, %v348
    %v350 = vpop.f32.mrb[0].mxu0
    %351 = vdwg.mxu0
    %352 = vrot.lane.b32.xlu0 %v141, 124
    %v353 = vpop.permute.xlu0 %352
    %354 = vrot.lane.b32.xlu0 %v146, 124
    %v355 = vpop.permute.xlu0 %354
    %356 = vrot.lane.b32.xlu0 %v141, 108
    %v357 = vpop.permute.xlu0 %356
    %358 = vrot.lane.b32.xlu0 %v146, 108
    %v359 = vpop.permute.xlu0 %358
    %v360 = vsel %vm155, %v353, 0
    %v362 = vsel %vm155, %v355, 0
    %v364 = vsel %vm155, %v357, 0
    %v366 = vsel %vm155, %v359, 0
    %368 = vmatprep.subr.mxu0 0.0
    %369 = vmatpush1.xpose.msra.mxu0 %v364
    %370 = vmatprep.subr.mxu0 0.0
    %371 = vmatpush1.xpose.msra.mxu0 %v366
    %372 = vmatprep.subr.mxu0 0.0
    %373 = vmatpush1.xpose.msra.mxu0 0.0
    %374 = vmatprep.subr.mxu0 0.0
    %375 = vmatpush1.xpose.msra.mxu0 0.0
    %376 = vmatprep.subr.mxu0 0.0
    %377 = vmatpush1.xpose.msra.mxu0 0.0
    %378 = vmatprep.subr.mxu0 0.0
    %379 = vmatpush1.xpose.msra.mxu0 0.0
    %380 = vmatprep.subr.mxu0 0.0
    %381 = vmatpush1.xpose.msra.mxu0 0.0
    %382 = vmatprep.subr.mxu0 0.0
    %383 = vmatpush1.xpose.msra.mxu0 0.0
    %384 = vmatprep.subr.mxu0 0.0
    %385 = vmatpush1.xpose.msra.mxu0 0.0
    %386 = vmatprep.subr.mxu0 0.0
    %387 = vmatpush1.xpose.msra.mxu0 0.0
    %388 = vmatprep.subr.mxu0 0.0
    %389 = vmatpush1.xpose.msra.mxu0 0.0
    %390 = vmatprep.subr.mxu0 0.0
    %391 = vmatpush1.xpose.msra.mxu0 0.0
    %392 = vmatprep.subr.mxu0 0.0
    %393 = vmatpush1.xpose.msra.mxu0 0.0
    %394 = vmatprep.subr.mxu0 0.0
    %395 = vmatpush1.xpose.msra.mxu0 0.0
    %396 = vmatprep.subr.mxu0 0.0
    %397 = vmatpush1.xpose.msra.mxu0 0.0
    %398 = vmatprep.subr.mxu0 0.0
    %399 = vmatpush1.xpose.msra.mxu0 0.0
    %400 = vmatprep.subr.mxu0 0.0
    %401 = vmatpush1.xpose.msra.mxu0 0.0
    %402 = vmatprep.subr.mxu0 0.0
    %403 = vmatpush1.xpose.msra.mxu0 0.0
    %404 = vmatprep.subr.mxu0 0.0
    %405 = vmatpush1.xpose.msra.mxu0 0.0
    %406 = vmatprep.subr.mxu0 0.0
    %407 = vmatpush1.xpose.msra.mxu0 0.0
    %408 = vmatprep.subr.mxu0 0.0
    %409 = vmatpush1.xpose.msra.mxu0 0.0
    %410 = vmatprep.subr.mxu0 0.0
    %411 = vmatpush1.xpose.msra.mxu0 0.0
    %412 = vmatprep.subr.mxu0 0.0
    %413 = vmatpush1.xpose.msra.mxu0 0.0
    %414 = vmatprep.subr.mxu0 0.0
    %415 = vmatpush1.xpose.msra.mxu0 0.0
    %416 = vmatprep.subr.mxu0 0.0
    %417 = vmatpush1.xpose.msra.mxu0 0.0
    %418 = vmatprep.subr.mxu0 0.0
    %419 = vmatpush1.xpose.msra.mxu0 0.0
    %420 = vmatprep.subr.mxu0 0.0
    %421 = vmatpush1.xpose.msra.mxu0 0.0
    %422 = vmatprep.subr.mxu0 0.0
    %423 = vmatpush1.xpose.msra.mxu0 0.0
    %424 = vmatprep.subr.mxu0 0.0
    %425 = vmatpush1.xpose.msra.mxu0 0.0
    %426 = vmatprep.subr.mxu0 0.0
    %427 = vmatpush1.xpose.msra.mxu0 0.0
    %428 = vmatprep.subr.mxu0 0.0
    %429 = vmatpush1.xpose.msra.mxu0 0.0
    %430 = vmatprep.subr.mxu0 0.0
    %431 = vmatpush1.xpose.msra.mxu0 0.0
    %432 = vmatprep.mubr.f32.mxu0 0.0
    %433 = vmatmul.mubr.f32.gmra.mrb[0].mxu0 %v360
    %v434 = vpop.f32.mrb[0].mxu0
    %v435 = vadd.f32 0.0, %v434
    %v436 = vpop.f32.mrb[0].mxu0
    %437 = vmatprep.mubr.f32.mxu0 0.0
    %438 = vmatmul.mubr.f32.gmra.mrb[0].mxu0 %v362
    %v439 = vpop.f32.mrb[0].mxu0
    %v440 = vadd.f32 0.0, %v439
    %v441 = vpop.f32.mrb[0].mxu0
    %442 = vdwg.mxu0
    %v443 = vmul.f32 %v435, 0.5
    %v444 = vmul.f32 %v440, 0.5
    %v445 = vadd.f32 %v443, %v40
    %v446 = vadd.f32 %v444, %v41
    %v447 = vsel %vm67, %v445, -inf
    %448 = vmax.xlane.f32.xlu0 %v447
    %v449 = vpop.xlane.xlu0 %448
    %v450 = vsel %vm67, %v446, -inf
    %451 = vmax.xlane.f32.xlu0 %v450
    %v452 = vpop.xlane.xlu0 %451
    %v453 = vsub.f32 %v445, %v449
    %v454 = vsub.f32 %v446, %v452
    %v455 = vmul.f32 %v453, 1.442695
    %v456 = vpow.pop %v455
    %v457 = vmul.f32 %v454, 1.442695
    %v458 = vpow.pop %v457
    %v459 = vsel %vm67, %v456, 0.0
    %460 = vadd.xlane.f32.xlu0 %v459
    %v461 = vpop.xlane.xlu0 %460
    %v462 = vsel %vm67, %v458, 0.0
    %463 = vadd.xlane.f32.xlu0 %v462
    %v464 = vpop.xlane.xlu0 %463
    %v465 = vrcp.pop %v461
    %v466 = vrcp.pop %v464
    %v467 = vmul.f32 %v456, %v465
    %v468 = vmul.f32 %v458, %v466
    %469 = vrot.lane.b32.xlu0 %v141, 92
    %v470 = vpop.permute.xlu0 %469
    %471 = vrot.lane.b32.xlu0 %v146, 92
    %v472 = vpop.permute.xlu0 %471
    %v476 = vsel %vm67, %v467, 0
    %v479 = vsel %vm67, %v468, 0
    %481 = vmatprep.subr.mxu0 0.0
    %482 = vmatpush1.msra.mxu0 %v470
    %483 = vmatprep.subr.mxu0 0.0
    %484 = vmatpush1.msra.mxu0 %v472
    %485 = vmatprep.subr.mxu0 0.0
    %486 = vmatpush1.msra.mxu0 0.0
    %487 = vmatprep.subr.mxu0 0.0
    %488 = vmatpush1.msra.mxu0 0.0
    %489 = vmatprep.subr.mxu0 0.0
    %490 = vmatpush1.msra.mxu0 0.0
    %491 = vmatprep.subr.mxu0 0.0
    %492 = vmatpush1.msra.mxu0 0.0
    %493 = vmatprep.subr.mxu0 0.0
    %494 = vmatpush1.msra.mxu0 0.0
    %495 = vmatprep.subr.mxu0 0.0
    %496 = vmatpush1.msra.mxu0 0.0
    %497 = vmatprep.subr.mxu0 0.0
    %498 = vmatpush1.msra.mxu0 0.0
    %499 = vmatprep.subr.mxu0 0.0
    %500 = vmatpush1.msra.mxu0 0.0
    %501 = vmatprep.subr.mxu0 0.0
    %502 = vmatpush1.msra.mxu0 0.0
    %503 = vmatprep.subr.mxu0 0.0
    %504 = vmatpush1.msra.mxu0 0.0
    %505 = vmatprep.subr.mxu0 0.0
    %506 = vmatpush1.msra.mxu0 0.0
    %507 = vmatprep.subr.mxu0 0.0
    %508 = vmatpush1.msra.mxu0 0.0
    %509 = vmatprep.subr.mxu0 0.0
    %510 = vmatpush1.msra.mxu0 0.0
    %511 = vmatprep.subr.mxu0 0.0
    %512 = vmatpush1.msra.mxu0 0.0
    %513 = vmatprep.subr.mxu0 0.0
    %514 = vmatpush1.msra.mxu0 0.0
    %515 = vmatprep.subr.mxu0 0.0
    %516 = vmatpush1.msra.mxu0 0.0
    %517 = vmatprep.subr.mxu0 0.0
    %518 = vmatpush1.msra.mxu0 0.0
    %519 = vmatprep.subr.mxu0 0.0
    %520 = vmatpush1.msra.mxu0 0.0
    %521 = vmatprep.subr.mxu0 0.0
    %522 = vmatpush1.msra.mxu0 0.0
    %523 = vmatprep.subr.mxu0 0.0
    %524 = vmatpush1.msra.mxu0 0.0
    %525 = vmatprep.subr.mxu0 0.0
    %526 = vmatpush1.msra.mxu0 0.0
    %527 = vmatprep.subr.mxu0 0.0
    %528 = vmatpush1.msra.mxu0 0.0
    %529 = vmatprep.subr.mxu0 0.0
    %530 = vmatpush1.msra.mxu0 0.0
    %531 = vmatprep.subr.mxu0 0.0
    %532 = vmatpush1.msra.mxu0 0.0
    %533 = vmatprep.subr.mxu0 0.0
    %534 = vmatpush1.msra.mxu0 0.0
    %535 = vmatprep.subr.mxu0 0.0
    %536 = vmatpush1.msra.mxu0 0.0
    %537 = vmatprep.subr.mxu0 0.0
    %538 = vmatpush1.msra.mxu0 0.0
    %539 = vmatprep.subr.mxu0 0.0
    %540 = vmatpush1.msra.mxu0 0.0
    %541 = vmatprep.subr.mxu0 0.0
    %542 = vmatpush1.msra.mxu0 0.0
    %543 = vmatprep.subr.mxu0 0.0
    %544 = vmatpush1.msra.mxu0 0.0
    %545 = vmatprep.mubr.f32.mxu0 0.0
    %546 = vmatmul.mubr.f32.gmra.mrb[0].mxu0 %v476
    %v547 = vpop.f32.mrb[0].mxu0
    %v548 = vadd.f32 0.0, %v547
    %v549 = vpop.f32.mrb[0].mxu0
    %550 = vmatprep.mubr.f32.mxu0 0.0
    %551 = vmatmul.mubr.f32.gmra.mrb[0].mxu0 %v479
    %v552 = vpop.f32.mrb[0].mxu0
    %v553 = vadd.f32 0.0, %v552
    %v554 = vpop.f32.mrb[0].mxu0
    %555 = vdwg.mxu0
    %556 = vrot.lane.b32.xlu0 %v141, 120
    %v557 = vpop.permute.xlu0 %556
    %558 = vrot.lane.b32.xlu0 %v146, 120
    %v559 = vpop.permute.xlu0 %558
    %560 = vrot.lane.b32.xlu0 %v141, 104
    %v561 = vpop.permute.xlu0 %560
    %562 = vrot.lane.b32.xlu0 %v146, 104
    %v563 = vpop.permute.xlu0 %562
    %v564 = vsel %vm155, %v557, 0
    %v566 = vsel %vm155, %v559, 0
    %v568 = vsel %vm155, %v561, 0
    %v570 = vsel %vm155, %v563, 0
    %572 = vmatprep.subr.mxu0 0.0
    %573 = vmatpush1.xpose.msra.mxu0 %v568
    %574 = vmatprep.subr.mxu0 0.0
    %575 = vmatpush1.xpose.msra.mxu0 %v570
    %576 = vmatprep.subr.mxu0 0.0
    %577 = vmatpush1.xpose.msra.mxu0 0.0
    %578 = vmatprep.subr.mxu0 0.0
    %579 = vmatpush1.xpose.msra.mxu0 0.0
    %580 = vmatprep.subr.mxu0 0.0
    %581 = vmatpush1.xpose.msra.mxu0 0.0
    %582 = vmatprep.subr.mxu0 0.0
    %583 = vmatpush1.xpose.msra.mxu0 0.0
    %584 = vmatprep.subr.mxu0 0.0
    %585 = vmatpush1.xpose.msra.mxu0 0.0
    %586 = vmatprep.subr.mxu0 0.0
    %587 = vmatpush1.xpose.msra.mxu0 0.0
    %588 = vmatprep.subr.mxu0 0.0
    %589 = vmatpush1.xpose.msra.mxu0 0.0
    %590 = vmatprep.subr.mxu0 0.0
    %591 = vmatpush1.xpose.msra.mxu0 0.0
    %592 = vmatprep.subr.mxu0 0.0
    %593 = vmatpush1.xpose.msra.mxu0 0.0
    %594 = vmatprep.subr.mxu0 0.0
    %595 = vmatpush1.xpose.msra.mxu0 0.0
    %596 = vmatprep.subr.mxu0 0.0
    %597 = vmatpush1.xpose.msra.mxu0 0.0
    %598 = vmatprep.subr.mxu0 0.0
    %599 = vmatpush1.xpose.msra.mxu0 0.0
    %600 = vmatprep.subr.mxu0 0.0
    %601 = vmatpush1.xpose.msra.mxu0 0.0
    %602 = vmatprep.subr.mxu0 0.0
    %603 = vmatpush1.xpose.msra.mxu0 0.0
    %604 = vmatprep.subr.mxu0 0.0
    %605 = vmatpush1.xpose.msra.mxu0 0.0
    %606 = vmatprep.subr.mxu0 0.0
    %607 = vmatpush1.xpose.msra.mxu0 0.0
    %608 = vmatprep.subr.mxu0 0.0
    %609 = vmatpush1.xpose.msra.mxu0 0.0
    %610 = vmatprep.subr.mxu0 0.0
    %611 = vmatpush1.xpose.msra.mxu0 0.0
    %612 = vmatprep.subr.mxu0 0.0
    %613 = vmatpush1.xpose.msra.mxu0 0.0
    %614 = vmatprep.subr.mxu0 0.0
    %615 = vmatpush1.xpose.msra.mxu0 0.0
    %616 = vmatprep.subr.mxu0 0.0
    %617 = vmatpush1.xpose.msra.mxu0 0.0
    %618 = vmatprep.subr.mxu0 0.0
    %619 = vmatpush1.xpose.msra.mxu0 0.0
    %620 = vmatprep.subr.mxu0 0.0
    %621 = vmatpush1.xpose.msra.mxu0 0.0
    %622 = vmatprep.subr.mxu0 0.0
    %623 = vmatpush1.xpose.msra.mxu0 0.0
    %624 = vmatprep.subr.mxu0 0.0
    %625 = vmatpush1.xpose.msra.mxu0 0.0
    %626 = vmatprep.subr.mxu0 0.0
    %627 = vmatpush1.xpose.msra.mxu0 0.0
    %628 = vmatprep.subr.mxu0 0.0
    %629 = vmatpush1.xpose.msra.mxu0 0.0
    %630 = vmatprep.subr.mxu0 0.0
    %631 = vmatpush1.xpose.msra.mxu0 0.0
    %632 = vmatprep.subr.mxu0 0.0
    %633 = vmatpush1.xpose.msra.mxu0 0.0
    %634 = vmatprep.subr.mxu0 0.0
    %635 = vmatpush1.xpose.msra.mxu0 0.0
    %636 = vmatprep.mubr.f32.mxu0 0.0
    %637 = vmatmul.mubr.f32.gmra.mrb[0].mxu0 %v564
    %v638 = vpop.f32.mrb[0].mxu0
    %v639 = vadd.f32 0.0, %v638
    %v640 = vpop.f32.mrb[0].mxu0
    %641 = vmatprep.mubr.f32.mxu0 0.0
    %642 = vmatmul.mubr.f32.gmra.mrb[0].mxu0 %v566
    %v643 = vpop.f32.mrb[0].mxu0
    %v644 = vadd.f32 0.0, %v643
    %v645 = vpop.f32.mrb[0].mxu0
    %646 = vdwg.mxu0
    %v647 = vmul.f32 %v639, 0.5
    %v648 = vmul.f32 %v644, 0.5
    %v649 = vadd.f32 %v647, %v40
    %v650 = vadd.f32 %v648, %v41
    %v651 = vsel %vm67, %v649, -inf
    %652 = vmax.xlane.f32.xlu0 %v651
    %v653 = vpop.xlane.xlu0 %652
    %v654 = vsel %vm67, %v650, -inf
    %655 = vmax.xlane.f32.xlu0 %v654
    %v656 = vpop.xlane.xlu0 %655
    %v657 = vsub.f32 %v649, %v653
    %v658 = vsub.f32 %v650, %v656
    %v659 = vmul.f32 %v657, 1.442695
    %v660 = vpow.pop %v659
    %v661 = vmul.f32 %v658, 1.442695
    %v662 = vpow.pop %v661
    %v663 = vsel %vm67, %v660, 0.0
    %664 = vadd.xlane.f32.xlu0 %v663
    %v665 = vpop.xlane.xlu0 %664
    %v666 = vsel %vm67, %v662, 0.0
    %667 = vadd.xlane.f32.xlu0 %v666
    %v668 = vpop.xlane.xlu0 %667
    %v669 = vrcp.pop %v665
    %v670 = vrcp.pop %v668
    %v671 = vmul.f32 %v660, %v669
    %v672 = vmul.f32 %v662, %v670
    %673 = vrot.lane.b32.xlu0 %v141, 88
    %v674 = vpop.permute.xlu0 %673
    %675 = vrot.lane.b32.xlu0 %v146, 88
    %v676 = vpop.permute.xlu0 %675
    %v680 = vsel %vm67, %v671, 0
    %v683 = vsel %vm67, %v672, 0
    %685 = vmatprep.subr.mxu0 0.0
    %686 = vmatpush1.msra.mxu0 %v674
    %687 = vmatprep.subr.mxu0 0.0
    %688 = vmatpush1.msra.mxu0 %v676
    %689 = vmatprep.subr.mxu0 0.0
    %690 = vmatpush1.msra.mxu0 0.0
    %691 = vmatprep.subr.mxu0 0.0
    %692 = vmatpush1.msra.mxu0 0.0
    %693 = vmatprep.subr.mxu0 0.0
    %694 = vmatpush1.msra.mxu0 0.0
    %695 = vmatprep.subr.mxu0 0.0
    %696 = vmatpush1.msra.mxu0 0.0
    %697 = vmatprep.subr.mxu0 0.0
    %698 = vmatpush1.msra.mxu0 0.0
    %699 = vmatprep.subr.mxu0 0.0
    %700 = vmatpush1.msra.mxu0 0.0
    %701 = vmatprep.subr.mxu0 0.0
    %702 = vmatpush1.msra.mxu0 0.0
    %703 = vmatprep.subr.mxu0 0.0
    %704 = vmatpush1.msra.mxu0 0.0
    %705 = vmatprep.subr.mxu0 0.0
    %706 = vmatpush1.msra.mxu0 0.0
    %707 = vmatprep.subr.mxu0 0.0
    %708 = vmatpush1.msra.mxu0 0.0
    %709 = vmatprep.subr.mxu0 0.0
    %710 = vmatpush1.msra.mxu0 0.0
    %711 = vmatprep.subr.mxu0 0.0
    %712 = vmatpush1.msra.mxu0 0.0
    %713 = vmatprep.subr.mxu0 0.0
    %714 = vmatpush1.msra.mxu0 0.0
    %715 = vmatprep.subr.mxu0 0.0
    %716 = vmatpush1.msra.mxu0 0.0
    %717 = vmatprep.subr.mxu0 0.0
    %718 = vmatpush1.msra.mxu0 0.0
    %719 = vmatprep.subr.mxu0 0.0
    %720 = vmatpush1.msra.mxu0 0.0
    %721 = vmatprep.subr.mxu0 0.0
    %722 = vmatpush1.msra.mxu0 0.0
    %723 = vmatprep.subr.mxu0 0.0
    %724 = vmatpush1.msra.mxu0 0.0
    %725 = vmatprep.subr.mxu0 0.0
    %726 = vmatpush1.msra.mxu0 0.0
    %727 = vmatprep.subr.mxu0 0.0
    %728 = vmatpush1.msra.mxu0 0.0
    %729 = vmatprep.subr.mxu0 0.0
    %730 = vmatpush1.msra.mxu0 0.0
    %731 = vmatprep.subr.mxu0 0.0
    %732 = vmatpush1.msra.mxu0 0.0
    %733 = vmatprep.subr.mxu0 0.0
    %734 = vmatpush1.msra.mxu0 0.0
    %735 = vmatprep.subr.mxu0 0.0
    %736 = vmatpush1.msra.mxu0 0.0
    %737 = vmatprep.subr.mxu0 0.0
    %738 = vmatpush1.msra.mxu0 0.0
    %739 = vmatprep.subr.mxu0 0.0
    %740 = vmatpush1.msra.mxu0 0.0
    %741 = vmatprep.subr.mxu0 0.0
    %742 = vmatpush1.msra.mxu0 0.0
    %743 = vmatprep.subr.mxu0 0.0
    %744 = vmatpush1.msra.mxu0 0.0
    %745 = vmatprep.subr.mxu0 0.0
    %746 = vmatpush1.msra.mxu0 0.0
    %747 = vmatprep.subr.mxu0 0.0
    %748 = vmatpush1.msra.mxu0 0.0
    %749 = vmatprep.mubr.f32.mxu0 0.0
    %750 = vmatmul.mubr.f32.gmra.mrb[0].mxu0 %v680
    %v751 = vpop.f32.mrb[0].mxu0
    %v752 = vadd.f32 0.0, %v751
    %v753 = vpop.f32.mrb[0].mxu0
    %754 = vmatprep.mubr.f32.mxu0 0.0
    %755 = vmatmul.mubr.f32.gmra.mrb[0].mxu0 %v683
    %v756 = vpop.f32.mrb[0].mxu0
    %v757 = vadd.f32 0.0, %v756
    %v758 = vpop.f32.mrb[0].mxu0
    %759 = vdwg.mxu0
    %760 = vrot.lane.b32.xlu0 %v141, 116
    %v761 = vpop.permute.xlu0 %760
    %762 = vrot.lane.b32.xlu0 %v146, 116
    %v763 = vpop.permute.xlu0 %762
    %764 = vrot.lane.b32.xlu0 %v141, 100
    %v765 = vpop.permute.xlu0 %764
    %766 = vrot.lane.b32.xlu0 %v146, 100
    %v767 = vpop.permute.xlu0 %766
    %v768 = vsel %vm155, %v761, 0
    %v770 = vsel %vm155, %v763, 0
    %v772 = vsel %vm155, %v765, 0
    %v774 = vsel %vm155, %v767, 0
    %776 = vmatprep.subr.mxu0 0.0
    %777 = vmatpush1.xpose.msra.mxu0 %v772
    %778 = vmatprep.subr.mxu0 0.0
    %779 = vmatpush1.xpose.msra.mxu0 %v774
    %780 = vmatprep.subr.mxu0 0.0
    %781 = vmatpush1.xpose.msra.mxu0 0.0
    %782 = vmatprep.subr.mxu0 0.0
    %783 = vmatpush1.xpose.msra.mxu0 0.0
    %784 = vmatprep.subr.mxu0 0.0
    %785 = vmatpush1.xpose.msra.mxu0 0.0
    %786 = vmatprep.subr.mxu0 0.0
    %787 = vmatpush1.xpose.msra.mxu0 0.0
    %788 = vmatprep.subr.mxu0 0.0
    %789 = vmatpush1.xpose.msra.mxu0 0.0
    %790 = vmatprep.subr.mxu0 0.0
    %791 = vmatpush1.xpose.msra.mxu0 0.0
    %792 = vmatprep.subr.mxu0 0.0
    %793 = vmatpush1.xpose.msra.mxu0 0.0
    %794 = vmatprep.subr.mxu0 0.0
    %795 = vmatpush1.xpose.msra.mxu0 0.0
    %796 = vmatprep.subr.mxu0 0.0
    %797 = vmatpush1.xpose.msra.mxu0 0.0
    %798 = vmatprep.subr.mxu0 0.0
    %799 = vmatpush1.xpose.msra.mxu0 0.0
    %800 = vmatprep.subr.mxu0 0.0
    %801 = vmatpush1.xpose.msra.mxu0 0.0
    %802 = vmatprep.subr.mxu0 0.0
    %803 = vmatpush1.xpose.msra.mxu0 0.0
    %804 = vmatprep.subr.mxu0 0.0
    %805 = vmatpush1.xpose.msra.mxu0 0.0
    %806 = vmatprep.subr.mxu0 0.0
    %807 = vmatpush1.xpose.msra.mxu0 0.0
    %808 = vmatprep.subr.mxu0 0.0
    %809 = vmatpush1.xpose.msra.mxu0 0.0
    %810 = vmatprep.subr.mxu0 0.0
    %811 = vmatpush1.xpose.msra.mxu0 0.0
    %812 = vmatprep.subr.mxu0 0.0
    %813 = vmatpush1.xpose.msra.mxu0 0.0
    %814 = vmatprep.subr.mxu0 0.0
    %815 = vmatpush1.xpose.msra.mxu0 0.0
    %816 = vmatprep.subr.mxu0 0.0
    %817 = vmatpush1.xpose.msra.mxu0 0.0
    %818 = vmatprep.subr.mxu0 0.0
    %819 = vmatpush1.xpose.msra.mxu0 0.0
    %820 = vmatprep.subr.mxu0 0.0
    %821 = vmatpush1.xpose.msra.mxu0 0.0
    %822 = vmatprep.subr.mxu0 0.0
    %823 = vmatpush1.xpose.msra.mxu0 0.0
    %824 = vmatprep.subr.mxu0 0.0
    %825 = vmatpush1.xpose.msra.mxu0 0.0
    %826 = vmatprep.subr.mxu0 0.0
    %827 = vmatpush1.xpose.msra.mxu0 0.0
    %828 = vmatprep.subr.mxu0 0.0
    %829 = vmatpush1.xpose.msra.mxu0 0.0
    %830 = vmatprep.subr.mxu0 0.0
    %831 = vmatpush1.xpose.msra.mxu0 0.0
    %832 = vmatprep.subr.mxu0 0.0
    %833 = vmatpush1.xpose.msra.mxu0 0.0
    %834 = vmatprep.subr.mxu0 0.0
    %835 = vmatpush1.xpose.msra.mxu0 0.0
    %836 = vmatprep.subr.mxu0 0.0
    %837 = vmatpush1.xpose.msra.mxu0 0.0
    %838 = vmatprep.subr.mxu0 0.0
    %839 = vmatpush1.xpose.msra.mxu0 0.0
    %840 = vmatprep.mubr.f32.mxu0 0.0
    %841 = vmatmul.mubr.f32.gmra.mrb[0].mxu0 %v768
    %v842 = vpop.f32.mrb[0].mxu0
    %v843 = vadd.f32 0.0, %v842
    %v844 = vpop.f32.mrb[0].mxu0
    %845 = vmatprep.mubr.f32.mxu0 0.0
    %846 = vmatmul.mubr.f32.gmra.mrb[0].mxu0 %v770
    %v847 = vpop.f32.mrb[0].mxu0
    %v848 = vadd.f32 0.0, %v847
    %v849 = vpop.f32.mrb[0].mxu0
    %850 = vdwg.mxu0
    %v851 = vmul.f32 %v843, 0.5
    %v852 = vmul.f32 %v848, 0.5
    %v853 = vadd.f32 %v851, %v40
    %v854 = vadd.f32 %v852, %v41
    %v855 = vsel %vm67, %v853, -inf
    %856 = vmax.xlane.f32.xlu0 %v855
    %v857 = vpop.xlane.xlu0 %856
    %v858 = vsel %vm67, %v854, -inf
    %859 = vmax.xlane.f32.xlu0 %v858
    %v860 = vpop.xlane.xlu0 %859
    %v861 = vsub.f32 %v853, %v857
    %v862 = vsub.f32 %v854, %v860
    %v863 = vmul.f32 %v861, 1.442695
    %v864 = vpow.pop %v863
    %v865 = vmul.f32 %v862, 1.442695
    %v866 = vpow.pop %v865
    %v867 = vsel %vm67, %v864, 0.0
    %868 = vadd.xlane.f32.xlu0 %v867
    %v869 = vpop.xlane.xlu0 %868
    %v870 = vsel %vm67, %v866, 0.0
    %871 = vadd.xlane.f32.xlu0 %v870
    %v872 = vpop.xlane.xlu0 %871
    %v873 = vrcp.pop %v869
    %v874 = vrcp.pop %v872
    %v875 = vmul.f32 %v864, %v873
    %v876 = vmul.f32 %v866, %v874
    %877 = vrot.lane.b32.xlu0 %v141, 84
    %v878 = vpop.permute.xlu0 %877
    %879 = vrot.lane.b32.xlu0 %v146, 84
    %v880 = vpop.permute.xlu0 %879
    %v884 = vsel %vm67, %v875, 0
    %v887 = vsel %vm67, %v876, 0
    %889 = vmatprep.subr.mxu0 0.0
    %890 = vmatpush1.msra.mxu0 %v878
    %891 = vmatprep.subr.mxu0 0.0
    %892 = vmatpush1.msra.mxu0 %v880
    %893 = vmatprep.subr.mxu0 0.0
    %894 = vmatpush1.msra.mxu0 0.0
    %895 = vmatprep.subr.mxu0 0.0
    %896 = vmatpush1.msra.mxu0 0.0
    %897 = vmatprep.subr.mxu0 0.0
    %898 = vmatpush1.msra.mxu0 0.0
    %899 = vmatprep.subr.mxu0 0.0
    %900 = vmatpush1.msra.mxu0 0.0
    %901 = vmatprep.subr.mxu0 0.0
    %902 = vmatpush1.msra.mxu0 0.0
    %903 = vmatprep.subr.mxu0 0.0
    %904 = vmatpush1.msra.mxu0 0.0
    %905 = vmatprep.subr.mxu0 0.0
    %906 = vmatpush1.msra.mxu0 0.0
    %907 = vmatprep.subr.mxu0 0.0
    %908 = vmatpush1.msra.mxu0 0.0
    %909 = vmatprep.subr.mxu0 0.0
    %910 = vmatpush1.msra.mxu0 0.0
    %911 = vmatprep.subr.mxu0 0.0
    %912 = vmatpush1.msra.mxu0 0.0
    %913 = vmatprep.subr.mxu0 0.0
    %914 = vmatpush1.msra.mxu0 0.0
    %915 = vmatprep.subr.mxu0 0.0
    %916 = vmatpush1.msra.mxu0 0.0
    %917 = vmatprep.subr.mxu0 0.0
    %918 = vmatpush1.msra.mxu0 0.0
    %919 = vmatprep.subr.mxu0 0.0
    %920 = vmatpush1.msra.mxu0 0.0
    %921 = vmatprep.subr.mxu0 0.0
    %922 = vmatpush1.msra.mxu0 0.0
    %923 = vmatprep.subr.mxu0 0.0
    %924 = vmatpush1.msra.mxu0 0.0
    %925 = vmatprep.subr.mxu0 0.0
    %926 = vmatpush1.msra.mxu0 0.0
    %927 = vmatprep.subr.mxu0 0.0
    %928 = vmatpush1.msra.mxu0 0.0
    %929 = vmatprep.subr.mxu0 0.0
    %930 = vmatpush1.msra.mxu0 0.0
    %931 = vmatprep.subr.mxu0 0.0
    %932 = vmatpush1.msra.mxu0 0.0
    %933 = vmatprep.subr.mxu0 0.0
    %934 = vmatpush1.msra.mxu0 0.0
    %935 = vmatprep.subr.mxu0 0.0
    %936 = vmatpush1.msra.mxu0 0.0
    %937 = vmatprep.subr.mxu0 0.0
    %938 = vmatpush1.msra.mxu0 0.0
    %939 = vmatprep.subr.mxu0 0.0
    %940 = vmatpush1.msra.mxu0 0.0
    %941 = vmatprep.subr.mxu0 0.0
    %942 = vmatpush1.msra.mxu0 0.0
    %943 = vmatprep.subr.mxu0 0.0
    %944 = vmatpush1.msra.mxu0 0.0
    %945 = vmatprep.subr.mxu0 0.0
    %946 = vmatpush1.msra.mxu0 0.0
    %947 = vmatprep.subr.mxu0 0.0
    %948 = vmatpush1.msra.mxu0 0.0
    %949 = vmatprep.subr.mxu0 0.0
    %950 = vmatpush1.msra.mxu0 0.0
    %951 = vmatprep.subr.mxu0 0.0
    %952 = vmatpush1.msra.mxu0 0.0
    %953 = vmatprep.mubr.f32.mxu0 0.0
    %954 = vmatmul.mubr.f32.gmra.mrb[0].mxu0 %v884
    %v955 = vpop.f32.mrb[0].mxu0
    %v956 = vadd.f32 0.0, %v955
    %v957 = vpop.f32.mrb[0].mxu0
    %958 = vmatprep.mubr.f32.mxu0 0.0
    %959 = vmatmul.mubr.f32.gmra.mrb[0].mxu0 %v887
    %v960 = vpop.f32.mrb[0].mxu0
    %v961 = vadd.f32 0.0, %v960
    %v962 = vpop.f32.mrb[0].mxu0
    %963 = vdwg.mxu0
    %966 = vrot.lane.b32.xlu0 %v548, 4
    %v967 = vpop.permute.xlu0 %966
    %968 = vrot.lane.b32.xlu0 %v553, 4
    %v969 = vpop.permute.xlu0 %968
    %974 = vrot.lane.b32.xlu0 %v752, 8
    %v975 = vpop.permute.xlu0 %974
    %976 = vrot.lane.b32.xlu0 %v757, 8
    %v977 = vpop.permute.xlu0 %976
    %982 = vrot.lane.b32.xlu0 %v956, 12
    %v983 = vpop.permute.xlu0 %982
    %984 = vrot.lane.b32.xlu0 %v961, 12
    %v985 = vpop.permute.xlu0 %984
    %v988 = vsel %vm155, %v344, %v967
    %v989 = vsel %vm155, %v349, %v969
    %vm990 = vcmask 64512
    %v991 = vsel %vm990, %v988, %v975
    %v992 = vsel %vm990, %v989, %v977
    %vm993 = vcmask 97280
    %v994 = vsel %vm993, %v991, %v983
    %v995 = vsel %vm993, %v992, %v985
    %v996 = vlaneseq
    %v997 = vshrl.u32 %v996, 7
    %v998 = vsub.s32 0, %v997
    %v999 = vrot.slane %v56, %v998
    %v1001 = vsel %vm67, %v994, 0
    %v1004 = vsel %vm67, %v995, 0
    %1006 = vmatprep.subr.mxu0 0.0
    %1007 = vmatpush1.msra.mxu0 %v45
    %1008 = vmatprep.subr.mxu0 0.0
    %1009 = vmatpush1.msra.mxu0 %v46
    %1010 = vmatprep.subr.mxu0 0.0
    %1011 = vmatpush1.msra.mxu0 0.0
    %1012 = vmatprep.subr.mxu0 0.0
    %1013 = vmatpush1.msra.mxu0 0.0
    %1014 = vmatprep.subr.mxu0 0.0
    %1015 = vmatpush1.msra.mxu0 0.0
    %1016 = vmatprep.subr.mxu0 0.0
    %1017 = vmatpush1.msra.mxu0 0.0
    %1018 = vmatprep.subr.mxu0 0.0
    %1019 = vmatpush1.msra.mxu0 0.0
    %1020 = vmatprep.subr.mxu0 0.0
    %1021 = vmatpush1.msra.mxu0 0.0
    %1022 = vmatprep.subr.mxu0 0.0
    %1023 = vmatpush1.msra.mxu0 0.0
    %1024 = vmatprep.subr.mxu0 0.0
    %1025 = vmatpush1.msra.mxu0 0.0
    %1026 = vmatprep.subr.mxu0 0.0
    %1027 = vmatpush1.msra.mxu0 0.0
    %1028 = vmatprep.subr.mxu0 0.0
    %1029 = vmatpush1.msra.mxu0 0.0
    %1030 = vmatprep.subr.mxu0 0.0
    %1031 = vmatpush1.msra.mxu0 0.0
    %1032 = vmatprep.subr.mxu0 0.0
    %1033 = vmatpush1.msra.mxu0 0.0
    %1034 = vmatprep.subr.mxu0 0.0
    %1035 = vmatpush1.msra.mxu0 0.0
    %1036 = vmatprep.subr.mxu0 0.0
    %1037 = vmatpush1.msra.mxu0 0.0
    %1038 = vmatprep.subr.mxu0 0.0
    %1039 = vmatpush1.msra.mxu0 0.0
    %1040 = vmatprep.subr.mxu0 0.0
    %1041 = vmatpush1.msra.mxu0 0.0
    %1042 = vmatprep.subr.mxu0 0.0
    %1043 = vmatpush1.msra.mxu0 0.0
    %1044 = vmatprep.subr.mxu0 0.0
    %1045 = vmatpush1.msra.mxu0 0.0
    %1046 = vmatprep.subr.mxu0 0.0
    %1047 = vmatpush1.msra.mxu0 0.0
    %1048 = vmatprep.subr.mxu0 0.0
    %1049 = vmatpush1.msra.mxu0 0.0
    %1050 = vmatprep.subr.mxu0 0.0
    %1051 = vmatpush1.msra.mxu0 0.0
    %1052 = vmatprep.subr.mxu0 0.0
    %1053 = vmatpush1.msra.mxu0 0.0
    %1054 = vmatprep.subr.mxu0 0.0
    %1055 = vmatpush1.msra.mxu0 0.0
    %1056 = vmatprep.subr.mxu0 0.0
    %1057 = vmatpush1.msra.mxu0 0.0
    %1058 = vmatprep.subr.mxu0 0.0
    %1059 = vmatpush1.msra.mxu0 0.0
    %1060 = vmatprep.subr.mxu0 0.0
    %1061 = vmatpush1.msra.mxu0 0.0
    %1062 = vmatprep.subr.mxu0 0.0
    %1063 = vmatpush1.msra.mxu0 0.0
    %1064 = vmatprep.subr.mxu0 0.0
    %1065 = vmatpush1.msra.mxu0 0.0
    %1066 = vmatprep.subr.mxu0 0.0
    %1067 = vmatpush1.msra.mxu0 0.0
    %1068 = vmatprep.subr.mxu0 0.0
    %1069 = vmatpush1.msra.mxu0 0.0
    %1070 = vmatprep.mubr.f32.mxu0 0.0
    %1071 = vmatmul.mubr.f32.gmra.mrb[0].mxu0 %v1001
    %v1072 = vpop.f32.mrb[0].mxu0
    %v1073 = vadd.f32 %v999, %v1072
    %v1074 = vpop.f32.mrb[0].mxu0
    %1075 = vmatprep.mubr.f32.mxu0 0.0
    %1076 = vmatmul.mubr.f32.gmra.mrb[0].mxu0 %v1004
    %v1077 = vpop.f32.mrb[0].mxu0
    %v1078 = vadd.f32 %v999, %v1077
    %v1079 = vpop.f32.mrb[0].mxu0
    %1080 = vdwg.mxu0
    %v1081 = vadd.f32 %v23, %v1073
    %v1082 = vadd.f32 %v24, %v1078
    %v1083 = vsel %vm67, %v1081, 0.0
    %1084 = vadd.xlane.f32.xlu0 %v1083
    %v1085 = vpop.xlane.xlu0 %1084
    %v1086 = vsel %vm67, %v1082, 0.0
    %1087 = vadd.xlane.f32.xlu0 %v1086
    %v1088 = vpop.xlane.xlu0 %1087
    %v1089 = vrcp.pop 16.0
    %v1090 = vmul.f32 %v1085, %v1089
    %v1091 = vmul.f32 %v1088, %v1089
    %v1092 = vsub.f32 %v1081, %v1090
    %v1093 = vsub.f32 %v1082, %v1091
    %v1094 = vmul.f32 %v1092, %v1092
    %v1095 = vmul.f32 %v1093, %v1093
    %v1096 = vsel %vm67, %v1094, 0.0
    %1097 = vadd.xlane.f32.xlu0 %v1096
    %v1098 = vpop.xlane.xlu0 %1097
    %v1099 = vsel %vm67, %v1095, 0.0
    %1100 = vadd.xlane.f32.xlu0 %v1099
    %v1101 = vpop.xlane.xlu0 %1100
    %v1102 = vmul.f32 %v1098, %v1089
    %v1103 = vmul.f32 %v1101, %v1089
    %v1104 = vadd.f32 %v1102, 1e-05
    %v1105 = vadd.f32 %v1103, 1e-05
    %v1106 = vrsqrt.pop %v1104
    %v1107 = vrsqrt.pop %v1105
    %v1108 = vmul.f32 %v1092, %v1106
    %v1109 = vmul.f32 %v1093, %v1107
    %v1110 = vlaneseq
    %v1111 = vshrl.u32 %v1110, 7
    %v1112 = vsub.s32 0, %v1111
    %v1113 = vrot.slane %v57, %v1112
    %v1114 = vmul.f32 %v1108, %v1113
    %v1115 = vmul.f32 %v1109, %v1113
    %v1116 = vlaneseq
    %v1117 = vshrl.u32 %v1116, 7
    %v1118 = vsub.s32 0, %v1117
    %v1119 = vrot.slane %v58, %v1118
    %v1120 = vadd.f32 %v1114, %v1119
    %v1121 = vadd.f32 %v1115, %v1119
    %v1122 = vlaneseq
    %v1123 = vshrl.u32 %v1122, 7
    %v1124 = vsub.s32 0, %v1123
    %v1125 = vrot.slane %v59, %v1124
    %v1127 = vsel %vm67, %v1120, 0
    %v1130 = vsel %vm67, %v1121, 0
    %1132 = vmatprep.subr.mxu0 0.0
    %1133 = vmatpush1.msra.mxu0 %v48
    %1134 = vmatprep.subr.mxu0 0.0
    %1135 = vmatpush1.msra.mxu0 %v49
    %1136 = vmatprep.subr.mxu0 0.0
    %1137 = vmatpush1.msra.mxu0 0.0
    %1138 = vmatprep.subr.mxu0 0.0
    %1139 = vmatpush1.msra.mxu0 0.0
    %1140 = vmatprep.subr.mxu0 0.0
    %1141 = vmatpush1.msra.mxu0 0.0
    %1142 = vmatprep.subr.mxu0 0.0
    %1143 = vmatpush1.msra.mxu0 0.0
    %1144 = vmatprep.subr.mxu0 0.0
    %1145 = vmatpush1.msra.mxu0 0.0
    %1146 = vmatprep.subr.mxu0 0.0
    %1147 = vmatpush1.msra.mxu0 0.0
    %1148 = vmatprep.subr.mxu0 0.0
    %1149 = vmatpush1.msra.mxu0 0.0
    %1150 = vmatprep.subr.mxu0 0.0
    %1151 = vmatpush1.msra.mxu0 0.0
    %1152 = vmatprep.subr.mxu0 0.0
    %1153 = vmatpush1.msra.mxu0 0.0
    %1154 = vmatprep.subr.mxu0 0.0
    %1155 = vmatpush1.msra.mxu0 0.0
    %1156 = vmatprep.subr.mxu0 0.0
    %1157 = vmatpush1.msra.mxu0 0.0
    %1158 = vmatprep.subr.mxu0 0.0
    %1159 = vmatpush1.msra.mxu0 0.0
    %1160 = vmatprep.subr.mxu0 0.0
    %1161 = vmatpush1.msra.mxu0 0.0
    %1162 = vmatprep.subr.mxu0 0.0
    %1163 = vmatpush1.msra.mxu0 0.0
    %1164 = vmatprep.subr.mxu0 0.0
    %1165 = vmatpush1.msra.mxu0 0.0
    %1166 = vmatprep.subr.mxu0 0.0
    %1167 = vmatpush1.msra.mxu0 0.0
    %1168 = vmatprep.subr.mxu0 0.0
    %1169 = vmatpush1.msra.mxu0 0.0
    %1170 = vmatprep.subr.mxu0 0.0
    %1171 = vmatpush1.msra.mxu0 0.0
    %1172 = vmatprep.subr.mxu0 0.0
    %1173 = vmatpush1.msra.mxu0 0.0
    %1174 = vmatprep.subr.mxu0 0.0
    %1175 = vmatpush1.msra.mxu0 0.0
    %1176 = vmatprep.subr.mxu0 0.0
    %1177 = vmatpush1.msra.mxu0 0.0
    %1178 = vmatprep.subr.mxu0 0.0
    %1179 = vmatpush1.msra.mxu0 0.0
    %1180 = vmatprep.subr.mxu0 0.0
    %1181 = vmatpush1.msra.mxu0 0.0
    %1182 = vmatprep.subr.mxu0 0.0
    %1183 = vmatpush1.msra.mxu0 0.0
    %1184 = vmatprep.subr.mxu0 0.0
    %1185 = vmatpush1.msra.mxu0 0.0
    %1186 = vmatprep.subr.mxu0 0.0
    %1187 = vmatpush1.msra.mxu0 0.0
    %1188 = vmatprep.subr.mxu0 0.0
    %1189 = vmatpush1.msra.mxu0 0.0
    %1190 = vmatprep.subr.mxu0 0.0
    %1191 = vmatpush1.msra.mxu0 0.0
    %1192 = vmatprep.subr.mxu0 0.0
    %1193 = vmatpush1.msra.mxu0 0.0
    %1194 = vmatprep.subr.mxu0 0.0
    %1195 = vmatpush1.msra.mxu0 0.0
    %1196 = vmatprep.mubr.f32.mxu0 0.0
    %1197 = vmatmul.mubr.f32.gmra.mrb[0].mxu0 %v1127
    %v1198 = vpop.f32.mrb[0].mxu0
    %v1199 = vadd.f32 %v1125, %v1198
    %v1200 = vpop.f32.mrb[0].mxu0
    %1201 = vmatprep.mubr.f32.mxu0 0.0
    %1202 = vmatmul.mubr.f32.gmra.mrb[0].mxu0 %v1130
    %v1203 = vpop.f32.mrb[0].mxu0
    %v1204 = vadd.f32 %v1125, %v1203
    %v1205 = vpop.f32.mrb[0].mxu0
    %1206 = vdwg.mxu0
    %v1207 = vmax.f32 %v1199, 0.0
    %v1208 = vmax.f32 %v1204, 0.0
    %v1209 = vlaneseq
    %v1210 = vshrl.u32 %v1209, 7
    %v1211 = vsub.s32 0, %v1210
    %v1212 = vrot.slane %v60, %v1211
    %vm1213 = vcmask 261120
    %v1215 = vsel %vm1213, %v1207, 0
    %v1218 = vsel %vm1213, %v1208, 0
    %1220 = vmatprep.subr.mxu0 0.0
    %1221 = vmatpush1.msra.mxu0 %v51
    %1222 = vmatprep.subr.mxu0 0.0
    %1223 = vmatpush1.msra.mxu0 %v52
    %1224 = vmatprep.subr.mxu0 0.0
    %1225 = vmatpush1.msra.mxu0 %v53
    %1226 = vmatprep.subr.mxu0 0.0
    %1227 = vmatpush1.msra.mxu0 %v54
    %1228 = vmatprep.subr.mxu0 0.0
    %1229 = vmatpush1.msra.mxu0 0.0
    %1230 = vmatprep.subr.mxu0 0.0
    %1231 = vmatpush1.msra.mxu0 0.0
    %1232 = vmatprep.subr.mxu0 0.0
    %1233 = vmatpush1.msra.mxu0 0.0
    %1234 = vmatprep.subr.mxu0 0.0
    %1235 = vmatpush1.msra.mxu0 0.0
    %1236 = vmatprep.subr.mxu0 0.0
    %1237 = vmatpush1.msra.mxu0 0.0
    %1238 = vmatprep.subr.mxu0 0.0
    %1239 = vmatpush1.msra.mxu0 0.0
    %1240 = vmatprep.subr.mxu0 0.0
    %1241 = vmatpush1.msra.mxu0 0.0
    %1242 = vmatprep.subr.mxu0 0.0
    %1243 = vmatpush1.msra.mxu0 0.0
    %1244 = vmatprep.subr.mxu0 0.0
    %1245 = vmatpush1.msra.mxu0 0.0
    %1246 = vmatprep.subr.mxu0 0.0
    %1247 = vmatpush1.msra.mxu0 0.0
    %1248 = vmatprep.subr.mxu0 0.0
    %1249 = vmatpush1.msra.mxu0 0.0
    %1250 = vmatprep.subr.mxu0 0.0
    %1251 = vmatpush1.msra.mxu0 0.0
    %1252 = vmatprep.subr.mxu0 0.0
    %1253 = vmatpush1.msra.mxu0 0.0
    %1254 = vmatprep.subr.mxu0 0.0
    %1255 = vmatpush1.msra.mxu0 0.0
    %1256 = vmatprep.subr.mxu0 0.0
    %1257 = vmatpush1.msra.mxu0 0.0
    %1258 = vmatprep.subr.mxu0 0.0
    %1259 = vmatpush1.msra.mxu0 0.0
    %1260 = vmatprep.subr.mxu0 0.0
    %1261 = vmatpush1.msra.mxu0 0.0
    %1262 = vmatprep.subr.mxu0 0.0
    %1263 = vmatpush1.msra.mxu0 0.0
    %1264 = vmatprep.subr.mxu0 0.0
    %1265 = vmatpush1.msra.mxu0 0.0
    %1266 = vmatprep.subr.mxu0 0.0
    %1267 = vmatpush1.msra.mxu0 0.0
    %1268 = vmatprep.subr.mxu0 0.0
    %1269 = vmatpush1.msra.mxu0 0.0
    %1270 = vmatprep.subr.mxu0 0.0
    %1271 = vmatpush1.msra.mxu0 0.0
    %1272 = vmatprep.subr.mxu0 0.0
    %1273 = vmatpush1.msra.mxu0 0.0
    %1274 = vmatprep.subr.mxu0 0.0
    %1275 = vmatpush1.msra.mxu0 0.0
    %1276 = vmatprep.subr.mxu0 0.0
    %1277 = vmatpush1.msra.mxu0 0.0
    %1278 = vmatprep.subr.mxu0 0.0
    %1279 = vmatpush1.msra.mxu0 0.0
    %1280 = vmatprep.subr.mxu0 0.0
    %1281 = vmatpush1.msra.mxu0 0.0
    %1282 = vmatprep.subr.mxu0 0.0
    %1283 = vmatpush1.msra.mxu0 0.0
    %1284 = vmatprep.mubr.f32.mxu0 0.0
    %1285 = vmatmul.mubr.f32.gmra.mrb[0].mxu0 %v1215
    %v1286 = vpop.f32.mrb[0].mxu0
    %v1287 = vadd.f32 %v1212, %v1286
    %v1288 = vpop.f32.mrb[0].mxu0
    %1289 = vmatprep.mubr.f32.mxu0 0.0
    %1290 = vmatmul.mubr.f32.gmra.mrb[0].mxu0 %v1218
    %v1291 = vpop.f32.mrb[0].mxu0
    %v1292 = vadd.f32 %v1212, %v1291
    %v1293 = vpop.f32.mrb[0].mxu0
    %1294 = vdwg.mxu0
    %v1295 = vadd.f32 %v1120, %v1287
    %v1296 = vadd.f32 %v1121, %v1292
    %v1297 = vsel %vm67, %v1295, 0.0
    %1298 = vadd.xlane.f32.xlu0 %v1297
    %v1299 = vpop.xlane.xlu0 %1298
    %v1300 = vsel %vm67, %v1296, 0.0
    %1301 = vadd.xlane.f32.xlu0 %v1300
    %v1302 = vpop.xlane.xlu0 %1301
    %v1303 = vmul.f32 %v1299, %v1089
    %v1304 = vmul.f32 %v1302, %v1089
    %v1305 = vsub.f32 %v1295, %v1303
    %v1306 = vsub.f32 %v1296, %v1304
    %v1307 = vmul.f32 %v1305, %v1305
    %v1308 = vmul.f32 %v1306, %v1306
    %v1309 = vsel %vm67, %v1307, 0.0
    %1310 = vadd.xlane.f32.xlu0 %v1309
    %v1311 = vpop.xlane.xlu0 %1310
    %v1312 = vsel %vm67, %v1308, 0.0
    %1313 = vadd.xlane.f32.xlu0 %v1312
    %v1314 = vpop.xlane.xlu0 %1313
    %v1315 = vmul.f32 %v1311, %v1089
    %v1316 = vmul.f32 %v1314, %v1089
    %v1317 = vadd.f32 %v1315, 1e-05
    %v1318 = vadd.f32 %v1316, 1e-05
    %v1319 = vrsqrt.pop %v1317
    %v1320 = vrsqrt.pop %v1318
    %v1321 = vmul.f32 %v1305, %v1319
    %v1322 = vmul.f32 %v1306, %v1320
    %v1323 = vlaneseq
    %v1324 = vshrl.u32 %v1323, 7
    %v1325 = vsub.s32 0, %v1324
    %v1326 = vrot.slane %v61, %v1325
    %v1327 = vmul.f32 %v1321, %v1326
    %v1328 = vmul.f32 %v1322, %v1326
    %v1329 = vlaneseq
    %v1330 = vshrl.u32 %v1329, 7
    %v1331 = vsub.s32 0, %v1330
    %v1332 = vrot.slane %v62, %v1331
    %v1333 = vadd.f32 %v1327, %v1332
    %v1334 = vadd.f32 %v1328, %v1332
    %s1335 = scalar_lea.vmem %s1, 128
    %v1336 = vld [vmem:[%s1335] sm:$0xff]
    %v1337 = vld [vmem:[%s1335 + $0x8] sm:$0xff]
    %s1338 = scalar_lea.vmem %s1, 160
    %v1339 = vld [vmem:[%s1338] sm:$0xff]
    %v1340 = vld [vmem:[%s1338 + $0x8] sm:$0xff]
    %s1341 = scalar_lea.vmem %s1, 192
    %v1342 = vld [vmem:[%s1341] sm:$0xff]
    %v1343 = vld [vmem:[%s1341 + $0x8] sm:$0xff]
    %s1344 = scalar_lea.vmem %s1, 224
    %v1345 = vld [vmem:[%s1344] sm:$0xff]
    %v1346 = vld [vmem:[%s1344 + $0x8] sm:$0xff]
    %v1347 = vld [vmem:[%s1344 + $0x10] sm:$0xff]
    %v1348 = vld [vmem:[%s1344 + $0x18] sm:$0xff]
    %v1349 = vld [vmem:[%s2 + $0x8] sm:$0x1]
    %v1350 = vld [vmem:[%s2 + $0x9] sm:$0x1]
    %v1351 = vld [vmem:[%s2 + $0xa] sm:$0x1]
    %v1352 = vld [vmem:[%s2 + $0xb] sm:$0x1]
    %v1353 = vld [vmem:[%s2 + $0xc] sm:$0x1]
    %v1354 = vld [vmem:[%s2 + $0xd] sm:$0x1]
    %v1355 = vld [vmem:[%s2 + $0xe] sm:$0x1]
    %v1356 = vld [vmem:[%s2 + $0xf] sm:$0x1]
    %v1357 = vlaneseq
    %v1358 = vshrl.u32 %v1357, 7
    %v1359 = vsub.s32 0, %v1358
    %v1360 = vrot.slane %v1349, %v1359
    %v1362 = vsel %vm67, %v1333, 0
    %v1365 = vsel %vm67, %v1334, 0
    %1367 = vmatprep.subr.mxu0 0.0
    %1368 = vmatpush1.msra.mxu0 %v1336
    %1369 = vmatprep.subr.mxu0 0.0
    %1370 = vmatpush1.msra.mxu0 %v1337
    %1371 = vmatprep.subr.mxu0 0.0
    %1372 = vmatpush1.msra.mxu0 0.0
    %1373 = vmatprep.subr.mxu0 0.0
    %1374 = vmatpush1.msra.mxu0 0.0
    %1375 = vmatprep.subr.mxu0 0.0
    %1376 = vmatpush1.msra.mxu0 0.0
    %1377 = vmatprep.subr.mxu0 0.0
    %1378 = vmatpush1.msra.mxu0 0.0
    %1379 = vmatprep.subr.mxu0 0.0
    %1380 = vmatpush1.msra.mxu0 0.0
    %1381 = vmatprep.subr.mxu0 0.0
    %1382 = vmatpush1.msra.mxu0 0.0
    %1383 = vmatprep.subr.mxu0 0.0
    %1384 = vmatpush1.msra.mxu0 0.0
    %1385 = vmatprep.subr.mxu0 0.0
    %1386 = vmatpush1.msra.mxu0 0.0
    %1387 = vmatprep.subr.mxu0 0.0
    %1388 = vmatpush1.msra.mxu0 0.0
    %1389 = vmatprep.subr.mxu0 0.0
    %1390 = vmatpush1.msra.mxu0 0.0
    %1391 = vmatprep.subr.mxu0 0.0
    %1392 = vmatpush1.msra.mxu0 0.0
    %1393 = vmatprep.subr.mxu0 0.0
    %1394 = vmatpush1.msra.mxu0 0.0
    %1395 = vmatprep.subr.mxu0 0.0
    %1396 = vmatpush1.msra.mxu0 0.0
    %1397 = vmatprep.subr.mxu0 0.0
    %1398 = vmatpush1.msra.mxu0 0.0
    %1399 = vmatprep.subr.mxu0 0.0
    %1400 = vmatpush1.msra.mxu0 0.0
    %1401 = vmatprep.subr.mxu0 0.0
    %1402 = vmatpush1.msra.mxu0 0.0
    %1403 = vmatprep.subr.mxu0 0.0
    %1404 = vmatpush1.msra.mxu0 0.0
    %1405 = vmatprep.subr.mxu0 0.0
    %1406 = vmatpush1.msra.mxu0 0.0
    %1407 = vmatprep.subr.mxu0 0.0
    %1408 = vmatpush1.msra.mxu0 0.0
    %1409 = vmatprep.subr.mxu0 0.0
    %1410 = vmatpush1.msra.mxu0 0.0
    %1411 = vmatprep.subr.mxu0 0.0
    %1412 = vmatpush1.msra.mxu0 0.0
    %1413 = vmatprep.subr.mxu0 0.0
    %1414 = vmatpush1.msra.mxu0 0.0
    %1415 = vmatprep.subr.mxu0 0.0
    %1416 = vmatpush1.msra.mxu0 0.0
    %1417 = vmatprep.subr.mxu0 0.0
    %1418 = vmatpush1.msra.mxu0 0.0
    %1419 = vmatprep.subr.mxu0 0.0
    %1420 = vmatpush1.msra.mxu0 0.0
    %1421 = vmatprep.subr.mxu0 0.0
    %1422 = vmatpush1.msra.mxu0 0.0
    %1423 = vmatprep.subr.mxu0 0.0
    %1424 = vmatpush1.msra.mxu0 0.0
    %1425 = vmatprep.subr.mxu0 0.0
    %1426 = vmatpush1.msra.mxu0 0.0
    %1427 = vmatprep.subr.mxu0 0.0
    %1428 = vmatpush1.msra.mxu0 0.0
    %1429 = vmatprep.subr.mxu0 0.0
    %1430 = vmatpush1.msra.mxu0 0.0
    %1431 = vmatprep.mubr.f32.mxu0 0.0
    %1432 = vmatmul.mubr.f32.gmra.mrb[0].mxu0 %v1362
    %v1433 = vpop.f32.mrb[0].mxu0
    %v1434 = vadd.f32 %v1360, %v1433
    %v1435 = vpop.f32.mrb[0].mxu0
    %1436 = vmatprep.mubr.f32.mxu0 0.0
    %1437 = vmatmul.mubr.f32.gmra.mrb[0].mxu0 %v1365
    %v1438 = vpop.f32.mrb[0].mxu0
    %v1439 = vadd.f32 %v1360, %v1438
    %v1440 = vpop.f32.mrb[0].mxu0
    %1441 = vdwg.mxu0
    %1444 = vrot.lane.b32.xlu0 %v1434, 112
    %v1445 = vpop.permute.xlu0 %1444
    %1446 = vrot.lane.b32.xlu0 %v1439, 112
    %v1447 = vpop.permute.xlu0 %1446
    %v1448 = vsel %vm155, %v1434, 0
    %v1450 = vsel %vm155, %v1439, 0
    %v1452 = vsel %vm155, %v1445, 0
    %v1454 = vsel %vm155, %v1447, 0
    %1456 = vmatprep.subr.mxu0 0.0
    %1457 = vmatpush1.xpose.msra.mxu0 %v1452
    %1458 = vmatprep.subr.mxu0 0.0
    %1459 = vmatpush1.xpose.msra.mxu0 %v1454
    %1460 = vmatprep.subr.mxu0 0.0
    %1461 = vmatpush1.xpose.msra.mxu0 0.0
    %1462 = vmatprep.subr.mxu0 0.0
    %1463 = vmatpush1.xpose.msra.mxu0 0.0
    %1464 = vmatprep.subr.mxu0 0.0
    %1465 = vmatpush1.xpose.msra.mxu0 0.0
    %1466 = vmatprep.subr.mxu0 0.0
    %1467 = vmatpush1.xpose.msra.mxu0 0.0
    %1468 = vmatprep.subr.mxu0 0.0
    %1469 = vmatpush1.xpose.msra.mxu0 0.0
    %1470 = vmatprep.subr.mxu0 0.0
    %1471 = vmatpush1.xpose.msra.mxu0 0.0
    %1472 = vmatprep.subr.mxu0 0.0
    %1473 = vmatpush1.xpose.msra.mxu0 0.0
    %1474 = vmatprep.subr.mxu0 0.0
    %1475 = vmatpush1.xpose.msra.mxu0 0.0
    %1476 = vmatprep.subr.mxu0 0.0
    %1477 = vmatpush1.xpose.msra.mxu0 0.0
    %1478 = vmatprep.subr.mxu0 0.0
    %1479 = vmatpush1.xpose.msra.mxu0 0.0
    %1480 = vmatprep.subr.mxu0 0.0
    %1481 = vmatpush1.xpose.msra.mxu0 0.0
    %1482 = vmatprep.subr.mxu0 0.0
    %1483 = vmatpush1.xpose.msra.mxu0 0.0
    %1484 = vmatprep.subr.mxu0 0.0
    %1485 = vmatpush1.xpose.msra.mxu0 0.0
    %1486 = vmatprep.subr.mxu0 0.0
    %1487 = vmatpush1.xpose.msra.mxu0 0.0
    %1488 = vmatprep.subr.mxu0 0.0
    %1489 = vmatpush1.xpose.msra.mxu0 0.0
    %1490 = vmatprep.subr.mxu0 0.0
    %1491 = vmatpush1.xpose.msra.mxu0 0.0
    %1492 = vmatprep.subr.mxu0 0.0
    %1493 = vmatpush1.xpose.msra.mxu0 0.0
    %1494 = vmatprep.subr.mxu0 0.0
    %1495 = vmatpush1.xpose.msra.mxu0 0.0
    %1496 = vmatprep.subr.mxu0 0.0
    %1497 = vmatpush1.xpose.msra.mxu0 0.0
    %1498 = vmatprep.subr.mxu0 0.0
    %1499 = vmatpush1.xpose.msra.mxu0 0.0
    %1500 = vmatprep.subr.mxu0 0.0
    %1501 = vmatpush1.xpose.msra.mxu0 0.0
    %1502 = vmatprep.subr.mxu0 0.0
    %1503 = vmatpush1.xpose.msra.mxu0 0.0
    %1504 = vmatprep.subr.mxu0 0.0
    %1505 = vmatpush1.xpose.msra.mxu0 0.0
    %1506 = vmatprep.subr.mxu0 0.0
    %1507 = vmatpush1.xpose.msra.mxu0 0.0
    %1508 = vmatprep.subr.mxu0 0.0
    %1509 = vmatpush1.xpose.msra.mxu0 0.0
    %1510 = vmatprep.subr.mxu0 0.0
    %1511 = vmatpush1.xpose.msra.mxu0 0.0
    %1512 = vmatprep.subr.mxu0 0.0
    %1513 = vmatpush1.xpose.msra.mxu0 0.0
    %1514 = vmatprep.subr.mxu0 0.0
    %1515 = vmatpush1.xpose.msra.mxu0 0.0
    %1516 = vmatprep.subr.mxu0 0.0
    %1517 = vmatpush1.xpose.msra.mxu0 0.0
    %1518 = vmatprep.subr.mxu0 0.0
    %1519 = vmatpush1.xpose.msra.mxu0 0.0
    %1520 = vmatprep.mubr.f32.mxu0 0.0
    %1521 = vmatmul.mubr.f32.gmra.mrb[0].mxu0 %v1448
    %v1522 = vpop.f32.mrb[0].mxu0
    %v1523 = vadd.f32 0.0, %v1522
    %v1524 = vpop.f32.mrb[0].mxu0
    %1525 = vmatprep.mubr.f32.mxu0 0.0
    %1526 = vmatmul.mubr.f32.gmra.mrb[0].mxu0 %v1450
    %v1527 = vpop.f32.mrb[0].mxu0
    %v1528 = vadd.f32 0.0, %v1527
    %v1529 = vpop.f32.mrb[0].mxu0
    %1530 = vdwg.mxu0
    %v1531 = vmul.f32 %v1523, 0.5
    %v1532 = vmul.f32 %v1528, 0.5
    %v1533 = vadd.f32 %v1531, %v40
    %v1534 = vadd.f32 %v1532, %v41
    %v1535 = vsel %vm67, %v1533, -inf
    %1536 = vmax.xlane.f32.xlu0 %v1535
    %v1537 = vpop.xlane.xlu0 %1536
    %v1538 = vsel %vm67, %v1534, -inf
    %1539 = vmax.xlane.f32.xlu0 %v1538
    %v1540 = vpop.xlane.xlu0 %1539
    %v1541 = vsub.f32 %v1533, %v1537
    %v1542 = vsub.f32 %v1534, %v1540
    %v1543 = vmul.f32 %v1541, 1.442695
    %v1544 = vpow.pop %v1543
    %v1545 = vmul.f32 %v1542, 1.442695
    %v1546 = vpow.pop %v1545
    %v1547 = vsel %vm67, %v1544, 0.0
    %1548 = vadd.xlane.f32.xlu0 %v1547
    %v1549 = vpop.xlane.xlu0 %1548
    %v1550 = vsel %vm67, %v1546, 0.0
    %1551 = vadd.xlane.f32.xlu0 %v1550
    %v1552 = vpop.xlane.xlu0 %1551
    %v1553 = vrcp.pop %v1549
    %v1554 = vrcp.pop %v1552
    %v1555 = vmul.f32 %v1544, %v1553
    %v1556 = vmul.f32 %v1546, %v1554
    %1557 = vrot.lane.b32.xlu0 %v1434, 96
    %v1558 = vpop.permute.xlu0 %1557
    %1559 = vrot.lane.b32.xlu0 %v1439, 96
    %v1560 = vpop.permute.xlu0 %1559
    %v1564 = vsel %vm67, %v1555, 0
    %v1567 = vsel %vm67, %v1556, 0
    %1569 = vmatprep.subr.mxu0 0.0
    %1570 = vmatpush1.msra.mxu0 %v1558
    %1571 = vmatprep.subr.mxu0 0.0
    %1572 = vmatpush1.msra.mxu0 %v1560
    %1573 = vmatprep.subr.mxu0 0.0
    %1574 = vmatpush1.msra.mxu0 0.0
    %1575 = vmatprep.subr.mxu0 0.0
    %1576 = vmatpush1.msra.mxu0 0.0
    %1577 = vmatprep.subr.mxu0 0.0
    %1578 = vmatpush1.msra.mxu0 0.0
    %1579 = vmatprep.subr.mxu0 0.0
    %1580 = vmatpush1.msra.mxu0 0.0
    %1581 = vmatprep.subr.mxu0 0.0
    %1582 = vmatpush1.msra.mxu0 0.0
    %1583 = vmatprep.subr.mxu0 0.0
    %1584 = vmatpush1.msra.mxu0 0.0
    %1585 = vmatprep.subr.mxu0 0.0
    %1586 = vmatpush1.msra.mxu0 0.0
    %1587 = vmatprep.subr.mxu0 0.0
    %1588 = vmatpush1.msra.mxu0 0.0
    %1589 = vmatprep.subr.mxu0 0.0
    %1590 = vmatpush1.msra.mxu0 0.0
    %1591 = vmatprep.subr.mxu0 0.0
    %1592 = vmatpush1.msra.mxu0 0.0
    %1593 = vmatprep.subr.mxu0 0.0
    %1594 = vmatpush1.msra.mxu0 0.0
    %1595 = vmatprep.subr.mxu0 0.0
    %1596 = vmatpush1.msra.mxu0 0.0
    %1597 = vmatprep.subr.mxu0 0.0
    %1598 = vmatpush1.msra.mxu0 0.0
    %1599 = vmatprep.subr.mxu0 0.0
    %1600 = vmatpush1.msra.mxu0 0.0
    %1601 = vmatprep.subr.mxu0 0.0
    %1602 = vmatpush1.msra.mxu0 0.0
    %1603 = vmatprep.subr.mxu0 0.0
    %1604 = vmatpush1.msra.mxu0 0.0
    %1605 = vmatprep.subr.mxu0 0.0
    %1606 = vmatpush1.msra.mxu0 0.0
    %1607 = vmatprep.subr.mxu0 0.0
    %1608 = vmatpush1.msra.mxu0 0.0
    %1609 = vmatprep.subr.mxu0 0.0
    %1610 = vmatpush1.msra.mxu0 0.0
    %1611 = vmatprep.subr.mxu0 0.0
    %1612 = vmatpush1.msra.mxu0 0.0
    %1613 = vmatprep.subr.mxu0 0.0
    %1614 = vmatpush1.msra.mxu0 0.0
    %1615 = vmatprep.subr.mxu0 0.0
    %1616 = vmatpush1.msra.mxu0 0.0
    %1617 = vmatprep.subr.mxu0 0.0
    %1618 = vmatpush1.msra.mxu0 0.0
    %1619 = vmatprep.subr.mxu0 0.0
    %1620 = vmatpush1.msra.mxu0 0.0
    %1621 = vmatprep.subr.mxu0 0.0
    %1622 = vmatpush1.msra.mxu0 0.0
    %1623 = vmatprep.subr.mxu0 0.0
    %1624 = vmatpush1.msra.mxu0 0.0
    %1625 = vmatprep.subr.mxu0 0.0
    %1626 = vmatpush1.msra.mxu0 0.0
    %1627 = vmatprep.subr.mxu0 0.0
    %1628 = vmatpush1.msra.mxu0 0.0
    %1629 = vmatprep.subr.mxu0 0.0
    %1630 = vmatpush1.msra.mxu0 0.0
    %1631 = vmatprep.subr.mxu0 0.0
    %1632 = vmatpush1.msra.mxu0 0.0
    %1633 = vmatprep.mubr.f32.mxu0 0.0
    %1634 = vmatmul.mubr.f32.gmra.mrb[0].mxu0 %v1564
    %v1635 = vpop.f32.mrb[0].mxu0
    %v1636 = vadd.f32 0.0, %v1635
    %v1637 = vpop.f32.mrb[0].mxu0
    %1638 = vmatprep.mubr.f32.mxu0 0.0
    %1639 = vmatmul.mubr.f32.gmra.mrb[0].mxu0 %v1567
    %v1640 = vpop.f32.mrb[0].mxu0
    %v1641 = vadd.f32 0.0, %v1640
    %v1642 = vpop.f32.mrb[0].mxu0
    %1643 = vdwg.mxu0
    %1644 = vrot.lane.b32.xlu0 %v1434, 124
    %v1645 = vpop.permute.xlu0 %1644
    %1646 = vrot.lane.b32.xlu0 %v1439, 124
    %v1647 = vpop.permute.xlu0 %1646
    %1648 = vrot.lane.b32.xlu0 %v1434, 108
    %v1649 = vpop.permute.xlu0 %1648
    %1650 = vrot.lane.b32.xlu0 %v1439, 108
    %v1651 = vpop.permute.xlu0 %1650
    %v1652 = vsel %vm155, %v1645, 0
    %v1654 = vsel %vm155, %v1647, 0
    %v1656 = vsel %vm155, %v1649, 0
    %v1658 = vsel %vm155, %v1651, 0
    %1660 = vmatprep.subr.mxu0 0.0
    %1661 = vmatpush1.xpose.msra.mxu0 %v1656
    %1662 = vmatprep.subr.mxu0 0.0
    %1663 = vmatpush1.xpose.msra.mxu0 %v1658
    %1664 = vmatprep.subr.mxu0 0.0
    %1665 = vmatpush1.xpose.msra.mxu0 0.0
    %1666 = vmatprep.subr.mxu0 0.0
    %1667 = vmatpush1.xpose.msra.mxu0 0.0
    %1668 = vmatprep.subr.mxu0 0.0
    %1669 = vmatpush1.xpose.msra.mxu0 0.0
    %1670 = vmatprep.subr.mxu0 0.0
    %1671 = vmatpush1.xpose.msra.mxu0 0.0
    %1672 = vmatprep.subr.mxu0 0.0
    %1673 = vmatpush1.xpose.msra.mxu0 0.0
    %1674 = vmatprep.subr.mxu0 0.0
    %1675 = vmatpush1.xpose.msra.mxu0 0.0
    %1676 = vmatprep.subr.mxu0 0.0
    %1677 = vmatpush1.xpose.msra.mxu0 0.0
    %1678 = vmatprep.subr.mxu0 0.0
    %1679 = vmatpush1.xpose.msra.mxu0 0.0
    %1680 = vmatprep.subr.mxu0 0.0
    %1681 = vmatpush1.xpose.msra.mxu0 0.0
    %1682 = vmatprep.subr.mxu0 0.0
    %1683 = vmatpush1.xpose.msra.mxu0 0.0
    %1684 = vmatprep.subr.mxu0 0.0
    %1685 = vmatpush1.xpose.msra.mxu0 0.0
    %1686 = vmatprep.subr.mxu0 0.0
    %1687 = vmatpush1.xpose.msra.mxu0 0.0
    %1688 = vmatprep.subr.mxu0 0.0
    %1689 = vmatpush1.xpose.msra.mxu0 0.0
    %1690 = vmatprep.subr.mxu0 0.0
    %1691 = vmatpush1.xpose.msra.mxu0 0.0
    %1692 = vmatprep.subr.mxu0 0.0
    %1693 = vmatpush1.xpose.msra.mxu0 0.0
    %1694 = vmatprep.subr.mxu0 0.0
    %1695 = vmatpush1.xpose.msra.mxu0 0.0
    %1696 = vmatprep.subr.mxu0 0.0
    %1697 = vmatpush1.xpose.msra.mxu0 0.0
    %1698 = vmatprep.subr.mxu0 0.0
    %1699 = vmatpush1.xpose.msra.mxu0 0.0
    %1700 = vmatprep.subr.mxu0 0.0
    %1701 = vmatpush1.xpose.msra.mxu0 0.0
    %1702 = vmatprep.subr.mxu0 0.0
    %1703 = vmatpush1.xpose.msra.mxu0 0.0
    %1704 = vmatprep.subr.mxu0 0.0
    %1705 = vmatpush1.xpose.msra.mxu0 0.0
    %1706 = vmatprep.subr.mxu0 0.0
    %1707 = vmatpush1.xpose.msra.mxu0 0.0
    %1708 = vmatprep.subr.mxu0 0.0
    %1709 = vmatpush1.xpose.msra.mxu0 0.0
    %1710 = vmatprep.subr.mxu0 0.0
    %1711 = vmatpush1.xpose.msra.mxu0 0.0
    %1712 = vmatprep.subr.mxu0 0.0
    %1713 = vmatpush1.xpose.msra.mxu0 0.0
    %1714 = vmatprep.subr.mxu0 0.0
    %1715 = vmatpush1.xpose.msra.mxu0 0.0
    %1716 = vmatprep.subr.mxu0 0.0
    %1717 = vmatpush1.xpose.msra.mxu0 0.0
    %1718 = vmatprep.subr.mxu0 0.0
    %1719 = vmatpush1.xpose.msra.mxu0 0.0
    %1720 = vmatprep.subr.mxu0 0.0
    %1721 = vmatpush1.xpose.msra.mxu0 0.0
    %1722 = vmatprep.subr.mxu0 0.0
    %1723 = vmatpush1.xpose.msra.mxu0 0.0
    %1724 = vmatprep.mubr.f32.mxu0 0.0
    %1725 = vmatmul.mubr.f32.gmra.mrb[0].mxu0 %v1652
    %v1726 = vpop.f32.mrb[0].mxu0
    %v1727 = vadd.f32 0.0, %v1726
    %v1728 = vpop.f32.mrb[0].mxu0
    %1729 = vmatprep.mubr.f32.mxu0 0.0
    %1730 = vmatmul.mubr.f32.gmra.mrb[0].mxu0 %v1654
    %v1731 = vpop.f32.mrb[0].mxu0
    %v1732 = vadd.f32 0.0, %v1731
    %v1733 = vpop.f32.mrb[0].mxu0
    %1734 = vdwg.mxu0
    %v1735 = vmul.f32 %v1727, 0.5
    %v1736 = vmul.f32 %v1732, 0.5
    %v1737 = vadd.f32 %v1735, %v40
    %v1738 = vadd.f32 %v1736, %v41
    %v1739 = vsel %vm67, %v1737, -inf
    %1740 = vmax.xlane.f32.xlu0 %v1739
    %v1741 = vpop.xlane.xlu0 %1740
    %v1742 = vsel %vm67, %v1738, -inf
    %1743 = vmax.xlane.f32.xlu0 %v1742
    %v1744 = vpop.xlane.xlu0 %1743
    %v1745 = vsub.f32 %v1737, %v1741
    %v1746 = vsub.f32 %v1738, %v1744
    %v1747 = vmul.f32 %v1745, 1.442695
    %v1748 = vpow.pop %v1747
    %v1749 = vmul.f32 %v1746, 1.442695
    %v1750 = vpow.pop %v1749
    %v1751 = vsel %vm67, %v1748, 0.0
    %1752 = vadd.xlane.f32.xlu0 %v1751
    %v1753 = vpop.xlane.xlu0 %1752
    %v1754 = vsel %vm67, %v1750, 0.0
    %1755 = vadd.xlane.f32.xlu0 %v1754
    %v1756 = vpop.xlane.xlu0 %1755
    %v1757 = vrcp.pop %v1753
    %v1758 = vrcp.pop %v1756
    %v1759 = vmul.f32 %v1748, %v1757
    %v1760 = vmul.f32 %v1750, %v1758
    %1761 = vrot.lane.b32.xlu0 %v1434, 92
    %v1762 = vpop.permute.xlu0 %1761
    %1763 = vrot.lane.b32.xlu0 %v1439, 92
    %v1764 = vpop.permute.xlu0 %1763
    %v1768 = vsel %vm67, %v1759, 0
    %v1771 = vsel %vm67, %v1760, 0
    %1773 = vmatprep.subr.mxu0 0.0
    %1774 = vmatpush1.msra.mxu0 %v1762
    %1775 = vmatprep.subr.mxu0 0.0
    %1776 = vmatpush1.msra.mxu0 %v1764
    %1777 = vmatprep.subr.mxu0 0.0
    %1778 = vmatpush1.msra.mxu0 0.0
    %1779 = vmatprep.subr.mxu0 0.0
    %1780 = vmatpush1.msra.mxu0 0.0
    %1781 = vmatprep.subr.mxu0 0.0
    %1782 = vmatpush1.msra.mxu0 0.0
    %1783 = vmatprep.subr.mxu0 0.0
    %1784 = vmatpush1.msra.mxu0 0.0
    %1785 = vmatprep.subr.mxu0 0.0
    %1786 = vmatpush1.msra.mxu0 0.0
    %1787 = vmatprep.subr.mxu0 0.0
    %1788 = vmatpush1.msra.mxu0 0.0
    %1789 = vmatprep.subr.mxu0 0.0
    %1790 = vmatpush1.msra.mxu0 0.0
    %1791 = vmatprep.subr.mxu0 0.0
    %1792 = vmatpush1.msra.mxu0 0.0
    %1793 = vmatprep.subr.mxu0 0.0
    %1794 = vmatpush1.msra.mxu0 0.0
    %1795 = vmatprep.subr.mxu0 0.0
    %1796 = vmatpush1.msra.mxu0 0.0
    %1797 = vmatprep.subr.mxu0 0.0
    %1798 = vmatpush1.msra.mxu0 0.0
    %1799 = vmatprep.subr.mxu0 0.0
    %1800 = vmatpush1.msra.mxu0 0.0
    %1801 = vmatprep.subr.mxu0 0.0
    %1802 = vmatpush1.msra.mxu0 0.0
    %1803 = vmatprep.subr.mxu0 0.0
    %1804 = vmatpush1.msra.mxu0 0.0
    %1805 = vmatprep.subr.mxu0 0.0
    %1806 = vmatpush1.msra.mxu0 0.0
    %1807 = vmatprep.subr.mxu0 0.0
    %1808 = vmatpush1.msra.mxu0 0.0
    %1809 = vmatprep.subr.mxu0 0.0
    %1810 = vmatpush1.msra.mxu0 0.0
    %1811 = vmatprep.subr.mxu0 0.0
    %1812 = vmatpush1.msra.mxu0 0.0
    %1813 = vmatprep.subr.mxu0 0.0
    %1814 = vmatpush1.msra.mxu0 0.0
    %1815 = vmatprep.subr.mxu0 0.0
    %1816 = vmatpush1.msra.mxu0 0.0
    %1817 = vmatprep.subr.mxu0 0.0
    %1818 = vmatpush1.msra.mxu0 0.0
    %1819 = vmatprep.subr.mxu0 0.0
    %1820 = vmatpush1.msra.mxu0 0.0
    %1821 = vmatprep.subr.mxu0 0.0
    %1822 = vmatpush1.msra.mxu0 0.0
    %1823 = vmatprep.subr.mxu0 0.0
    %1824 = vmatpush1.msra.mxu0 0.0
    %1825 = vmatprep.subr.mxu0 0.0
    %1826 = vmatpush1.msra.mxu0 0.0
    %1827 = vmatprep.subr.mxu0 0.0
    %1828 = vmatpush1.msra.mxu0 0.0
    %1829 = vmatprep.subr.mxu0 0.0
    %1830 = vmatpush1.msra.mxu0 0.0
    %1831 = vmatprep.subr.mxu0 0.0
    %1832 = vmatpush1.msra.mxu0 0.0
    %1833 = vmatprep.subr.mxu0 0.0
    %1834 = vmatpush1.msra.mxu0 0.0
    %1835 = vmatprep.subr.mxu0 0.0
    %1836 = vmatpush1.msra.mxu0 0.0
    %1837 = vmatprep.mubr.f32.mxu0 0.0
    %1838 = vmatmul.mubr.f32.gmra.mrb[0].mxu0 %v1768
    %v1839 = vpop.f32.mrb[0].mxu0
    %v1840 = vadd.f32 0.0, %v1839
    %v1841 = vpop.f32.mrb[0].mxu0
    %1842 = vmatprep.mubr.f32.mxu0 0.0
    %1843 = vmatmul.mubr.f32.gmra.mrb[0].mxu0 %v1771
    %v1844 = vpop.f32.mrb[0].mxu0
    %v1845 = vadd.f32 0.0, %v1844
    %v1846 = vpop.f32.mrb[0].mxu0
    %1847 = vdwg.mxu0
    %1848 = vrot.lane.b32.xlu0 %v1434, 120
    %v1849 = vpop.permute.xlu0 %1848
    %1850 = vrot.lane.b32.xlu0 %v1439, 120
    %v1851 = vpop.permute.xlu0 %1850
    %1852 = vrot.lane.b32.xlu0 %v1434, 104
    %v1853 = vpop.permute.xlu0 %1852
    %1854 = vrot.lane.b32.xlu0 %v1439, 104
    %v1855 = vpop.permute.xlu0 %1854
    %v1856 = vsel %vm155, %v1849, 0
    %v1858 = vsel %vm155, %v1851, 0
    %v1860 = vsel %vm155, %v1853, 0
    %v1862 = vsel %vm155, %v1855, 0
    %1864 = vmatprep.subr.mxu0 0.0
    %1865 = vmatpush1.xpose.msra.mxu0 %v1860
    %1866 = vmatprep.subr.mxu0 0.0
    %1867 = vmatpush1.xpose.msra.mxu0 %v1862
    %1868 = vmatprep.subr.mxu0 0.0
    %1869 = vmatpush1.xpose.msra.mxu0 0.0
    %1870 = vmatprep.subr.mxu0 0.0
    %1871 = vmatpush1.xpose.msra.mxu0 0.0
    %1872 = vmatprep.subr.mxu0 0.0
    %1873 = vmatpush1.xpose.msra.mxu0 0.0
    %1874 = vmatprep.subr.mxu0 0.0
    %1875 = vmatpush1.xpose.msra.mxu0 0.0
    %1876 = vmatprep.subr.mxu0 0.0
    %1877 = vmatpush1.xpose.msra.mxu0 0.0
    %1878 = vmatprep.subr.mxu0 0.0
    %1879 = vmatpush1.xpose.msra.mxu0 0.0
    %1880 = vmatprep.subr.mxu0 0.0
    %1881 = vmatpush1.xpose.msra.mxu0 0.0
    %1882 = vmatprep.subr.mxu0 0.0
    %1883 = vmatpush1.xpose.msra.mxu0 0.0
    %1884 = vmatprep.subr.mxu0 0.0
    %1885 = vmatpush1.xpose.msra.mxu0 0.0
    %1886 = vmatprep.subr.mxu0 0.0
    %1887 = vmatpush1.xpose.msra.mxu0 0.0
    %1888 = vmatprep.subr.mxu0 0.0
    %1889 = vmatpush1.xpose.msra.mxu0 0.0
    %1890 = vmatprep.subr.mxu0 0.0
    %1891 = vmatpush1.xpose.msra.mxu0 0.0
    %1892 = vmatprep.subr.mxu0 0.0
    %1893 = vmatpush1.xpose.msra.mxu0 0.0
    %1894 = vmatprep.subr.mxu0 0.0
    %1895 = vmatpush1.xpose.msra.mxu0 0.0
    %1896 = vmatprep.subr.mxu0 0.0
    %1897 = vmatpush1.xpose.msra.mxu0 0.0
    %1898 = vmatprep.subr.mxu0 0.0
    %1899 = vmatpush1.xpose.msra.mxu0 0.0
    %1900 = vmatprep.subr.mxu0 0.0
    %1901 = vmatpush1.xpose.msra.mxu0 0.0
    %1902 = vmatprep.subr.mxu0 0.0
    %1903 = vmatpush1.xpose.msra.mxu0 0.0
    %1904 = vmatprep.subr.mxu0 0.0
    %1905 = vmatpush1.xpose.msra.mxu0 0.0
    %1906 = vmatprep.subr.mxu0 0.0
    %1907 = vmatpush1.xpose.msra.mxu0 0.0
    %1908 = vmatprep.subr.mxu0 0.0
    %1909 = vmatpush1.xpose.msra.mxu0 0.0
    %1910 = vmatprep.subr.mxu0 0.0
    %1911 = vmatpush1.xpose.msra.mxu0 0.0
    %1912 = vmatprep.subr.mxu0 0.0
    %1913 = vmatpush1.xpose.msra.mxu0 0.0
    %1914 = vmatprep.subr.mxu0 0.0
    %1915 = vmatpush1.xpose.msra.mxu0 0.0
    %1916 = vmatprep.subr.mxu0 0.0
    %1917 = vmatpush1.xpose.msra.mxu0 0.0
    %1918 = vmatprep.subr.mxu0 0.0
    %1919 = vmatpush1.xpose.msra.mxu0 0.0
    %1920 = vmatprep.subr.mxu0 0.0
    %1921 = vmatpush1.xpose.msra.mxu0 0.0
    %1922 = vmatprep.subr.mxu0 0.0
    %1923 = vmatpush1.xpose.msra.mxu0 0.0
    %1924 = vmatprep.subr.mxu0 0.0
    %1925 = vmatpush1.xpose.msra.mxu0 0.0
    %1926 = vmatprep.subr.mxu0 0.0
    %1927 = vmatpush1.xpose.msra.mxu0 0.0
    %1928 = vmatprep.mubr.f32.mxu0 0.0
    %1929 = vmatmul.mubr.f32.gmra.mrb[0].mxu0 %v1856
    %v1930 = vpop.f32.mrb[0].mxu0
    %v1931 = vadd.f32 0.0, %v1930
    %v1932 = vpop.f32.mrb[0].mxu0
    %1933 = vmatprep.mubr.f32.mxu0 0.0
    %1934 = vmatmul.mubr.f32.gmra.mrb[0].mxu0 %v1858
    %v1935 = vpop.f32.mrb[0].mxu0
    %v1936 = vadd.f32 0.0, %v1935
    %v1937 = vpop.f32.mrb[0].mxu0
    %1938 = vdwg.mxu0
    %v1939 = vmul.f32 %v1931, 0.5
    %v1940 = vmul.f32 %v1936, 0.5
    %v1941 = vadd.f32 %v1939, %v40
    %v1942 = vadd.f32 %v1940, %v41
    %v1943 = vsel %vm67, %v1941, -inf
    %1944 = vmax.xlane.f32.xlu0 %v1943
    %v1945 = vpop.xlane.xlu0 %1944
    %v1946 = vsel %vm67, %v1942, -inf
    %1947 = vmax.xlane.f32.xlu0 %v1946
    %v1948 = vpop.xlane.xlu0 %1947
    %v1949 = vsub.f32 %v1941, %v1945
    %v1950 = vsub.f32 %v1942, %v1948
    %v1951 = vmul.f32 %v1949, 1.442695
    %v1952 = vpow.pop %v1951
    %v1953 = vmul.f32 %v1950, 1.442695
    %v1954 = vpow.pop %v1953
    %v1955 = vsel %vm67, %v1952, 0.0
    %1956 = vadd.xlane.f32.xlu0 %v1955
    %v1957 = vpop.xlane.xlu0 %1956
    %v1958 = vsel %vm67, %v1954, 0.0
    %1959 = vadd.xlane.f32.xlu0 %v1958
    %v1960 = vpop.xlane.xlu0 %1959
    %v1961 = vrcp.pop %v1957
    %v1962 = vrcp.pop %v1960
    %v1963 = vmul.f32 %v1952, %v1961
    %v1964 = vmul.f32 %v1954, %v1962
    %1965 = vrot.lane.b32.xlu0 %v1434, 88
    %v1966 = vpop.permute.xlu0 %1965
    %1967 = vrot.lane.b32.xlu0 %v1439, 88
    %v1968 = vpop.permute.xlu0 %1967
    %v1972 = vsel %vm67, %v1963, 0
    %v1975 = vsel %vm67, %v1964, 0
    %1977 = vmatprep.subr.mxu0 0.0
    %1978 = vmatpush1.msra.mxu0 %v1966
    %1979 = vmatprep.subr.mxu0 0.0
    %1980 = vmatpush1.msra.mxu0 %v1968
    %1981 = vmatprep.subr.mxu0 0.0
    %1982 = vmatpush1.msra.mxu0 0.0
    %1983 = vmatprep.subr.mxu0 0.0
    %1984 = vmatpush1.msra.mxu0 0.0
    %1985 = vmatprep.subr.mxu0 0.0
    %1986 = vmatpush1.msra.mxu0 0.0
    %1987 = vmatprep.subr.mxu0 0.0
    %1988 = vmatpush1.msra.mxu0 0.0
    %1989 = vmatprep.subr.mxu0 0.0
    %1990 = vmatpush1.msra.mxu0 0.0
    %1991 = vmatprep.subr.mxu0 0.0
    %1992 = vmatpush1.msra.mxu0 0.0
    %1993 = vmatprep.subr.mxu0 0.0
    %1994 = vmatpush1.msra.mxu0 0.0
    %1995 = vmatprep.subr.mxu0 0.0
    %1996 = vmatpush1.msra.mxu0 0.0
    %1997 = vmatprep.subr.mxu0 0.0
    %1998 = vmatpush1.msra.mxu0 0.0
    %1999 = vmatprep.subr.mxu0 0.0
    %2000 = vmatpush1.msra.mxu0 0.0
    %2001 = vmatprep.subr.mxu0 0.0
    %2002 = vmatpush1.msra.mxu0 0.0
    %2003 = vmatprep.subr.mxu0 0.0
    %2004 = vmatpush1.msra.mxu0 0.0
    %2005 = vmatprep.subr.mxu0 0.0
    %2006 = vmatpush1.msra.mxu0 0.0
    %2007 = vmatprep.subr.mxu0 0.0
    %2008 = vmatpush1.msra.mxu0 0.0
    %2009 = vmatprep.subr.mxu0 0.0
    %2010 = vmatpush1.msra.mxu0 0.0
    %2011 = vmatprep.subr.mxu0 0.0
    %2012 = vmatpush1.msra.mxu0 0.0
    %2013 = vmatprep.subr.mxu0 0.0
    %2014 = vmatpush1.msra.mxu0 0.0
    %2015 = vmatprep.subr.mxu0 0.0
    %2016 = vmatpush1.msra.mxu0 0.0
    %2017 = vmatprep.subr.mxu0 0.0
    %2018 = vmatpush1.msra.mxu0 0.0
    %2019 = vmatprep.subr.mxu0 0.0
    %2020 = vmatpush1.msra.mxu0 0.0
    %2021 = vmatprep.subr.mxu0 0.0
    %2022 = vmatpush1.msra.mxu0 0.0
    %2023 = vmatprep.subr.mxu0 0.0
    %2024 = vmatpush1.msra.mxu0 0.0
    %2025 = vmatprep.subr.mxu0 0.0
    %2026 = vmatpush1.msra.mxu0 0.0
    %2027 = vmatprep.subr.mxu0 0.0
    %2028 = vmatpush1.msra.mxu0 0.0
    %2029 = vmatprep.subr.mxu0 0.0
    %2030 = vmatpush1.msra.mxu0 0.0
    %2031 = vmatprep.subr.mxu0 0.0
    %2032 = vmatpush1.msra.mxu0 0.0
    %2033 = vmatprep.subr.mxu0 0.0
    %2034 = vmatpush1.msra.mxu0 0.0
    %2035 = vmatprep.subr.mxu0 0.0
    %2036 = vmatpush1.msra.mxu0 0.0
    %2037 = vmatprep.subr.mxu0 0.0
    %2038 = vmatpush1.msra.mxu0 0.0
    %2039 = vmatprep.subr.mxu0 0.0
    %2040 = vmatpush1.msra.mxu0 0.0
    %2041 = vmatprep.mubr.f32.mxu0 0.0
    %2042 = vmatmul.mubr.f32.gmra.mrb[0].mxu0 %v1972
    %v2043 = vpop.f32.mrb[0].mxu0
    %v2044 = vadd.f32 0.0, %v2043
    %v2045 = vpop.f32.mrb[0].mxu0
    %2046 = vmatprep.mubr.f32.mxu0 0.0
    %2047 = vmatmul.mubr.f32.gmra.mrb[0].mxu0 %v1975
    %v2048 = vpop.f32.mrb[0].mxu0
    %v2049 = vadd.f32 0.0, %v2048
    %v2050 = vpop.f32.mrb[0].mxu0
    %2051 = vdwg.mxu0
    %2052 = vrot.lane.b32.xlu0 %v1434, 116
    %v2053 = vpop.permute.xlu0 %2052
    %2054 = vrot.lane.b32.xlu0 %v1439, 116
    %v2055 = vpop.permute.xlu0 %2054
    %2056 = vrot.lane.b32.xlu0 %v1434, 100
    %v2057 = vpop.permute.xlu0 %2056
    %2058 = vrot.lane.b32.xlu0 %v1439, 100
    %v2059 = vpop.permute.xlu0 %2058
    %v2060 = vsel %vm155, %v2053, 0
    %v2062 = vsel %vm155, %v2055, 0
    %v2064 = vsel %vm155, %v2057, 0
    %v2066 = vsel %vm155, %v2059, 0
    %2068 = vmatprep.subr.mxu0 0.0
    %2069 = vmatpush1.xpose.msra.mxu0 %v2064
    %2070 = vmatprep.subr.mxu0 0.0
    %2071 = vmatpush1.xpose.msra.mxu0 %v2066
    %2072 = vmatprep.subr.mxu0 0.0
    %2073 = vmatpush1.xpose.msra.mxu0 0.0
    %2074 = vmatprep.subr.mxu0 0.0
    %2075 = vmatpush1.xpose.msra.mxu0 0.0
    %2076 = vmatprep.subr.mxu0 0.0
    %2077 = vmatpush1.xpose.msra.mxu0 0.0
    %2078 = vmatprep.subr.mxu0 0.0
    %2079 = vmatpush1.xpose.msra.mxu0 0.0
    %2080 = vmatprep.subr.mxu0 0.0
    %2081 = vmatpush1.xpose.msra.mxu0 0.0
    %2082 = vmatprep.subr.mxu0 0.0
    %2083 = vmatpush1.xpose.msra.mxu0 0.0
    %2084 = vmatprep.subr.mxu0 0.0
    %2085 = vmatpush1.xpose.msra.mxu0 0.0
    %2086 = vmatprep.subr.mxu0 0.0
    %2087 = vmatpush1.xpose.msra.mxu0 0.0
    %2088 = vmatprep.subr.mxu0 0.0
    %2089 = vmatpush1.xpose.msra.mxu0 0.0
    %2090 = vmatprep.subr.mxu0 0.0
    %2091 = vmatpush1.xpose.msra.mxu0 0.0
    %2092 = vmatprep.subr.mxu0 0.0
    %2093 = vmatpush1.xpose.msra.mxu0 0.0
    %2094 = vmatprep.subr.mxu0 0.0
    %2095 = vmatpush1.xpose.msra.mxu0 0.0
    %2096 = vmatprep.subr.mxu0 0.0
    %2097 = vmatpush1.xpose.msra.mxu0 0.0
    %2098 = vmatprep.subr.mxu0 0.0
    %2099 = vmatpush1.xpose.msra.mxu0 0.0
    %2100 = vmatprep.subr.mxu0 0.0
    %2101 = vmatpush1.xpose.msra.mxu0 0.0
    %2102 = vmatprep.subr.mxu0 0.0
    %2103 = vmatpush1.xpose.msra.mxu0 0.0
    %2104 = vmatprep.subr.mxu0 0.0
    %2105 = vmatpush1.xpose.msra.mxu0 0.0
    %2106 = vmatprep.subr.mxu0 0.0
    %2107 = vmatpush1.xpose.msra.mxu0 0.0
    %2108 = vmatprep.subr.mxu0 0.0
    %2109 = vmatpush1.xpose.msra.mxu0 0.0
    %2110 = vmatprep.subr.mxu0 0.0
    %2111 = vmatpush1.xpose.msra.mxu0 0.0
    %2112 = vmatprep.subr.mxu0 0.0
    %2113 = vmatpush1.xpose.msra.mxu0 0.0
    %2114 = vmatprep.subr.mxu0 0.0
    %2115 = vmatpush1.xpose.msra.mxu0 0.0
    %2116 = vmatprep.subr.mxu0 0.0
    %2117 = vmatpush1.xpose.msra.mxu0 0.0
    %2118 = vmatprep.subr.mxu0 0.0
    %2119 = vmatpush1.xpose.msra.mxu0 0.0
    %2120 = vmatprep.subr.mxu0 0.0
    %2121 = vmatpush1.xpose.msra.mxu0 0.0
    %2122 = vmatprep.subr.mxu0 0.0
    %2123 = vmatpush1.xpose.msra.mxu0 0.0
    %2124 = vmatprep.subr.mxu0 0.0
    %2125 = vmatpush1.xpose.msra.mxu0 0.0
    %2126 = vmatprep.subr.mxu0 0.0
    %2127 = vmatpush1.xpose.msra.mxu0 0.0
    %2128 = vmatprep.subr.mxu0 0.0
    %2129 = vmatpush1.xpose.msra.mxu0 0.0
    %2130 = vmatprep.subr.mxu0 0.0
    %2131 = vmatpush1.xpose.msra.mxu0 0.0
    %2132 = vmatprep.mubr.f32.mxu0 0.0
    %2133 = vmatmul.mubr.f32.gmra.mrb[0].mxu0 %v2060
    %v2134 = vpop.f32.mrb[0].mxu0
    %v2135 = vadd.f32 0.0, %v2134
    %v2136 = vpop.f32.mrb[0].mxu0
    %2137 = vmatprep.mubr.f32.mxu0 0.0
    %2138 = vmatmul.mubr.f32.gmra.mrb[0].mxu0 %v2062
    %v2139 = vpop.f32.mrb[0].mxu0
    %v2140 = vadd.f32 0.0, %v2139
    %v2141 = vpop.f32.mrb[0].mxu0
    %2142 = vdwg.mxu0
    %v2143 = vmul.f32 %v2135, 0.5
    %v2144 = vmul.f32 %v2140, 0.5
    %v2145 = vadd.f32 %v2143, %v40
    %v2146 = vadd.f32 %v2144, %v41
    %v2147 = vsel %vm67, %v2145, -inf
    %2148 = vmax.xlane.f32.xlu0 %v2147
    %v2149 = vpop.xlane.xlu0 %2148
    %v2150 = vsel %vm67, %v2146, -inf
    %2151 = vmax.xlane.f32.xlu0 %v2150
    %v2152 = vpop.xlane.xlu0 %2151
    %v2153 = vsub.f32 %v2145, %v2149
    %v2154 = vsub.f32 %v2146, %v2152
    %v2155 = vmul.f32 %v2153, 1.442695
    %v2156 = vpow.pop %v2155
    %v2157 = vmul.f32 %v2154, 1.442695
    %v2158 = vpow.pop %v2157
    %v2159 = vsel %vm67, %v2156, 0.0
    %2160 = vadd.xlane.f32.xlu0 %v2159
    %v2161 = vpop.xlane.xlu0 %2160
    %v2162 = vsel %vm67, %v2158, 0.0
    %2163 = vadd.xlane.f32.xlu0 %v2162
    %v2164 = vpop.xlane.xlu0 %2163
    %v2165 = vrcp.pop %v2161
    %v2166 = vrcp.pop %v2164
    %v2167 = vmul.f32 %v2156, %v2165
    %v2168 = vmul.f32 %v2158, %v2166
    %2169 = vrot.lane.b32.xlu0 %v1434, 84
    %v2170 = vpop.permute.xlu0 %2169
    %2171 = vrot.lane.b32.xlu0 %v1439, 84
    %v2172 = vpop.permute.xlu0 %2171
    %v2176 = vsel %vm67, %v2167, 0
    %v2179 = vsel %vm67, %v2168, 0
    %2181 = vmatprep.subr.mxu0 0.0
    %2182 = vmatpush1.msra.mxu0 %v2170
    %2183 = vmatprep.subr.mxu0 0.0
    %2184 = vmatpush1.msra.mxu0 %v2172
    %2185 = vmatprep.subr.mxu0 0.0
    %2186 = vmatpush1.msra.mxu0 0.0
    %2187 = vmatprep.subr.mxu0 0.0
    %2188 = vmatpush1.msra.mxu0 0.0
    %2189 = vmatprep.subr.mxu0 0.0
    %2190 = vmatpush1.msra.mxu0 0.0
    %2191 = vmatprep.subr.mxu0 0.0
    %2192 = vmatpush1.msra.mxu0 0.0
    %2193 = vmatprep.subr.mxu0 0.0
    %2194 = vmatpush1.msra.mxu0 0.0
    %2195 = vmatprep.subr.mxu0 0.0
    %2196 = vmatpush1.msra.mxu0 0.0
    %2197 = vmatprep.subr.mxu0 0.0
    %2198 = vmatpush1.msra.mxu0 0.0
    %2199 = vmatprep.subr.mxu0 0.0
    %2200 = vmatpush1.msra.mxu0 0.0
    %2201 = vmatprep.subr.mxu0 0.0
    %2202 = vmatpush1.msra.mxu0 0.0
    %2203 = vmatprep.subr.mxu0 0.0
    %2204 = vmatpush1.msra.mxu0 0.0
    %2205 = vmatprep.subr.mxu0 0.0
    %2206 = vmatpush1.msra.mxu0 0.0
    %2207 = vmatprep.subr.mxu0 0.0
    %2208 = vmatpush1.msra.mxu0 0.0
    %2209 = vmatprep.subr.mxu0 0.0
    %2210 = vmatpush1.msra.mxu0 0.0
    %2211 = vmatprep.subr.mxu0 0.0
    %2212 = vmatpush1.msra.mxu0 0.0
    %2213 = vmatprep.subr.mxu0 0.0
    %2214 = vmatpush1.msra.mxu0 0.0
    %2215 = vmatprep.subr.mxu0 0.0
    %2216 = vmatpush1.msra.mxu0 0.0
    %2217 = vmatprep.subr.mxu0 0.0
    %2218 = vmatpush1.msra.mxu0 0.0
    %2219 = vmatprep.subr.mxu0 0.0
    %2220 = vmatpush1.msra.mxu0 0.0
    %2221 = vmatprep.subr.mxu0 0.0
    %2222 = vmatpush1.msra.mxu0 0.0
    %2223 = vmatprep.subr.mxu0 0.0
    %2224 = vmatpush1.msra.mxu0 0.0
    %2225 = vmatprep.subr.mxu0 0.0
    %2226 = vmatpush1.msra.mxu0 0.0
    %2227 = vmatprep.subr.mxu0 0.0
    %2228 = vmatpush1.msra.mxu0 0.0
    %2229 = vmatprep.subr.mxu0 0.0
    %2230 = vmatpush1.msra.mxu0 0.0
    %2231 = vmatprep.subr.mxu0 0.0
    %2232 = vmatpush1.msra.mxu0 0.0
    %2233 = vmatprep.subr.mxu0 0.0
    %2234 = vmatpush1.msra.mxu0 0.0
    %2235 = vmatprep.subr.mxu0 0.0
    %2236 = vmatpush1.msra.mxu0 0.0
    %2237 = vmatprep.subr.mxu0 0.0
    %2238 = vmatpush1.msra.mxu0 0.0
    %2239 = vmatprep.subr.mxu0 0.0
    %2240 = vmatpush1.msra.mxu0 0.0
    %2241 = vmatprep.subr.mxu0 0.0
    %2242 = vmatpush1.msra.mxu0 0.0
    %2243 = vmatprep.subr.mxu0 0.0
    %2244 = vmatpush1.msra.mxu0 0.0
    %2245 = vmatprep.mubr.f32.mxu0 0.0
    %2246 = vmatmul.mubr.f32.gmra.mrb[0].mxu0 %v2176
    %v2247 = vpop.f32.mrb[0].mxu0
    %v2248 = vadd.f32 0.0, %v2247
    %v2249 = vpop.f32.mrb[0].mxu0
    %2250 = vmatprep.mubr.f32.mxu0 0.0
    %2251 = vmatmul.mubr.f32.gmra.mrb[0].mxu0 %v2179
    %v2252 = vpop.f32.mrb[0].mxu0
    %v2253 = vadd.f32 0.0, %v2252
    %v2254 = vpop.f32.mrb[0].mxu0
    %2255 = vdwg.mxu0
    %2258 = vrot.lane.b32.xlu0 %v1840, 4
    %v2259 = vpop.permute.xlu0 %2258
    %2260 = vrot.lane.b32.xlu0 %v1845, 4
    %v2261 = vpop.permute.xlu0 %2260
    %2266 = vrot.lane.b32.xlu0 %v2044, 8
    %v2267 = vpop.permute.xlu0 %2266
    %2268 = vrot.lane.b32.xlu0 %v2049, 8
    %v2269 = vpop.permute.xlu0 %2268
    %2274 = vrot.lane.b32.xlu0 %v2248, 12
    %v2275 = vpop.permute.xlu0 %2274
    %2276 = vrot.lane.b32.xlu0 %v2253, 12
    %v2277 = vpop.permute.xlu0 %2276
    %v2280 = vsel %vm155, %v1636, %v2259
    %v2281 = vsel %vm155, %v1641, %v2261
    %v2282 = vsel %vm990, %v2280, %v2267
    %v2283 = vsel %vm990, %v2281, %v2269
    %v2284 = vsel %vm993, %v2282, %v2275
    %v2285 = vsel %vm993, %v2283, %v2277
    %v2286 = vlaneseq
    %v2287 = vshrl.u32 %v2286, 7
    %v2288 = vsub.s32 0, %v2287
    %v2289 = vrot.slane %v1350, %v2288
    %v2291 = vsel %vm67, %v2284, 0
    %v2294 = vsel %vm67, %v2285, 0
    %2296 = vmatprep.subr.mxu0 0.0
    %2297 = vmatpush1.msra.mxu0 %v1339
    %2298 = vmatprep.subr.mxu0 0.0
    %2299 = vmatpush1.msra.mxu0 %v1340
    %2300 = vmatprep.subr.mxu0 0.0
    %2301 = vmatpush1.msra.mxu0 0.0
    %2302 = vmatprep.subr.mxu0 0.0
    %2303 = vmatpush1.msra.mxu0 0.0
    %2304 = vmatprep.subr.mxu0 0.0
    %2305 = vmatpush1.msra.mxu0 0.0
    %2306 = vmatprep.subr.mxu0 0.0
    %2307 = vmatpush1.msra.mxu0 0.0
    %2308 = vmatprep.subr.mxu0 0.0
    %2309 = vmatpush1.msra.mxu0 0.0
    %2310 = vmatprep.subr.mxu0 0.0
    %2311 = vmatpush1.msra.mxu0 0.0
    %2312 = vmatprep.subr.mxu0 0.0
    %2313 = vmatpush1.msra.mxu0 0.0
    %2314 = vmatprep.subr.mxu0 0.0
    %2315 = vmatpush1.msra.mxu0 0.0
    %2316 = vmatprep.subr.mxu0 0.0
    %2317 = vmatpush1.msra.mxu0 0.0
    %2318 = vmatprep.subr.mxu0 0.0
    %2319 = vmatpush1.msra.mxu0 0.0
    %2320 = vmatprep.subr.mxu0 0.0
    %2321 = vmatpush1.msra.mxu0 0.0
    %2322 = vmatprep.subr.mxu0 0.0
    %2323 = vmatpush1.msra.mxu0 0.0
    %2324 = vmatprep.subr.mxu0 0.0
    %2325 = vmatpush1.msra.mxu0 0.0
    %2326 = vmatprep.subr.mxu0 0.0
    %2327 = vmatpush1.msra.mxu0 0.0
    %2328 = vmatprep.subr.mxu0 0.0
    %2329 = vmatpush1.msra.mxu0 0.0
    %2330 = vmatprep.subr.mxu0 0.0
    %2331 = vmatpush1.msra.mxu0 0.0
    %2332 = vmatprep.subr.mxu0 0.0
    %2333 = vmatpush1.msra.mxu0 0.0
    %2334 = vmatprep.subr.mxu0 0.0
    %2335 = vmatpush1.msra.mxu0 0.0
    %2336 = vmatprep.subr.mxu0 0.0
    %2337 = vmatpush1.msra.mxu0 0.0
    %2338 = vmatprep.subr.mxu0 0.0
    %2339 = vmatpush1.msra.mxu0 0.0
    %2340 = vmatprep.subr.mxu0 0.0
    %2341 = vmatpush1.msra.mxu0 0.0
    %2342 = vmatprep.subr.mxu0 0.0
    %2343 = vmatpush1.msra.mxu0 0.0
    %2344 = vmatprep.subr.mxu0 0.0
    %2345 = vmatpush1.msra.mxu0 0.0
    %2346 = vmatprep.subr.mxu0 0.0
    %2347 = vmatpush1.msra.mxu0 0.0
    %2348 = vmatprep.subr.mxu0 0.0
    %2349 = vmatpush1.msra.mxu0 0.0
    %2350 = vmatprep.subr.mxu0 0.0
    %2351 = vmatpush1.msra.mxu0 0.0
    %2352 = vmatprep.subr.mxu0 0.0
    %2353 = vmatpush1.msra.mxu0 0.0
    %2354 = vmatprep.subr.mxu0 0.0
    %2355 = vmatpush1.msra.mxu0 0.0
    %2356 = vmatprep.subr.mxu0 0.0
    %2357 = vmatpush1.msra.mxu0 0.0
    %2358 = vmatprep.subr.mxu0 0.0
    %2359 = vmatpush1.msra.mxu0 0.0
    %2360 = vmatprep.mubr.f32.mxu0 0.0
    %2361 = vmatmul.mubr.f32.gmra.mrb[0].mxu0 %v2291
    %v2362 = vpop.f32.mrb[0].mxu0
    %v2363 = vadd.f32 %v2289, %v2362
    %v2364 = vpop.f32.mrb[0].mxu0
    %2365 = vmatprep.mubr.f32.mxu0 0.0
    %2366 = vmatmul.mubr.f32.gmra.mrb[0].mxu0 %v2294
    %v2367 = vpop.f32.mrb[0].mxu0
    %v2368 = vadd.f32 %v2289, %v2367
    %v2369 = vpop.f32.mrb[0].mxu0
    %2370 = vdwg.mxu0
    %v2371 = vadd.f32 %v1333, %v2363
    %v2372 = vadd.f32 %v1334, %v2368
    %v2373 = vsel %vm67, %v2371, 0.0
    %2374 = vadd.xlane.f32.xlu0 %v2373
    %v2375 = vpop.xlane.xlu0 %2374
    %v2376 = vsel %vm67, %v2372, 0.0
    %2377 = vadd.xlane.f32.xlu0 %v2376
    %v2378 = vpop.xlane.xlu0 %2377
    %v2379 = vmul.f32 %v2375, %v1089
    %v2380 = vmul.f32 %v2378, %v1089
    %v2381 = vsub.f32 %v2371, %v2379
    %v2382 = vsub.f32 %v2372, %v2380
    %v2383 = vmul.f32 %v2381, %v2381
    %v2384 = vmul.f32 %v2382, %v2382
    %v2385 = vsel %vm67, %v2383, 0.0
    %2386 = vadd.xlane.f32.xlu0 %v2385
    %v2387 = vpop.xlane.xlu0 %2386
    %v2388 = vsel %vm67, %v2384, 0.0
    %2389 = vadd.xlane.f32.xlu0 %v2388
    %v2390 = vpop.xlane.xlu0 %2389
    %v2391 = vmul.f32 %v2387, %v1089
    %v2392 = vmul.f32 %v2390, %v1089
    %v2393 = vadd.f32 %v2391, 1e-05
    %v2394 = vadd.f32 %v2392, 1e-05
    %v2395 = vrsqrt.pop %v2393
    %v2396 = vrsqrt.pop %v2394
    %v2397 = vmul.f32 %v2381, %v2395
    %v2398 = vmul.f32 %v2382, %v2396
    %v2399 = vlaneseq
    %v2400 = vshrl.u32 %v2399, 7
    %v2401 = vsub.s32 0, %v2400
    %v2402 = vrot.slane %v1351, %v2401
    %v2403 = vmul.f32 %v2397, %v2402
    %v2404 = vmul.f32 %v2398, %v2402
    %v2405 = vlaneseq
    %v2406 = vshrl.u32 %v2405, 7
    %v2407 = vsub.s32 0, %v2406
    %v2408 = vrot.slane %v1352, %v2407
    %v2409 = vadd.f32 %v2403, %v2408
    %v2410 = vadd.f32 %v2404, %v2408
    %v2411 = vlaneseq
    %v2412 = vshrl.u32 %v2411, 7
    %v2413 = vsub.s32 0, %v2412
    %v2414 = vrot.slane %v1353, %v2413
    %v2416 = vsel %vm67, %v2409, 0
    %v2419 = vsel %vm67, %v2410, 0
    %2421 = vmatprep.subr.mxu0 0.0
    %2422 = vmatpush1.msra.mxu0 %v1342
    %2423 = vmatprep.subr.mxu0 0.0
    %2424 = vmatpush1.msra.mxu0 %v1343
    %2425 = vmatprep.subr.mxu0 0.0
    %2426 = vmatpush1.msra.mxu0 0.0
    %2427 = vmatprep.subr.mxu0 0.0
    %2428 = vmatpush1.msra.mxu0 0.0
    %2429 = vmatprep.subr.mxu0 0.0
    %2430 = vmatpush1.msra.mxu0 0.0
    %2431 = vmatprep.subr.mxu0 0.0
    %2432 = vmatpush1.msra.mxu0 0.0
    %2433 = vmatprep.subr.mxu0 0.0
    %2434 = vmatpush1.msra.mxu0 0.0
    %2435 = vmatprep.subr.mxu0 0.0
    %2436 = vmatpush1.msra.mxu0 0.0
    %2437 = vmatprep.subr.mxu0 0.0
    %2438 = vmatpush1.msra.mxu0 0.0
    %2439 = vmatprep.subr.mxu0 0.0
    %2440 = vmatpush1.msra.mxu0 0.0
    %2441 = vmatprep.subr.mxu0 0.0
    %2442 = vmatpush1.msra.mxu0 0.0
    %2443 = vmatprep.subr.mxu0 0.0
    %2444 = vmatpush1.msra.mxu0 0.0
    %2445 = vmatprep.subr.mxu0 0.0
    %2446 = vmatpush1.msra.mxu0 0.0
    %2447 = vmatprep.subr.mxu0 0.0
    %2448 = vmatpush1.msra.mxu0 0.0
    %2449 = vmatprep.subr.mxu0 0.0
    %2450 = vmatpush1.msra.mxu0 0.0
    %2451 = vmatprep.subr.mxu0 0.0
    %2452 = vmatpush1.msra.mxu0 0.0
    %2453 = vmatprep.subr.mxu0 0.0
    %2454 = vmatpush1.msra.mxu0 0.0
    %2455 = vmatprep.subr.mxu0 0.0
    %2456 = vmatpush1.msra.mxu0 0.0
    %2457 = vmatprep.subr.mxu0 0.0
    %2458 = vmatpush1.msra.mxu0 0.0
    %2459 = vmatprep.subr.mxu0 0.0
    %2460 = vmatpush1.msra.mxu0 0.0
    %2461 = vmatprep.subr.mxu0 0.0
    %2462 = vmatpush1.msra.mxu0 0.0
    %2463 = vmatprep.subr.mxu0 0.0
    %2464 = vmatpush1.msra.mxu0 0.0
    %2465 = vmatprep.subr.mxu0 0.0
    %2466 = vmatpush1.msra.mxu0 0.0
    %2467 = vmatprep.subr.mxu0 0.0
    %2468 = vmatpush1.msra.mxu0 0.0
    %2469 = vmatprep.subr.mxu0 0.0
    %2470 = vmatpush1.msra.mxu0 0.0
    %2471 = vmatprep.subr.mxu0 0.0
    %2472 = vmatpush1.msra.mxu0 0.0
    %2473 = vmatprep.subr.mxu0 0.0
    %2474 = vmatpush1.msra.mxu0 0.0
    %2475 = vmatprep.subr.mxu0 0.0
    %2476 = vmatpush1.msra.mxu0 0.0
    %2477 = vmatprep.subr.mxu0 0.0
    %2478 = vmatpush1.msra.mxu0 0.0
    %2479 = vmatprep.subr.mxu0 0.0
    %2480 = vmatpush1.msra.mxu0 0.0
    %2481 = vmatprep.subr.mxu0 0.0
    %2482 = vmatpush1.msra.mxu0 0.0
    %2483 = vmatprep.subr.mxu0 0.0
    %2484 = vmatpush1.msra.mxu0 0.0
    %2485 = vmatprep.mubr.f32.mxu0 0.0
    %2486 = vmatmul.mubr.f32.gmra.mrb[0].mxu0 %v2416
    %v2487 = vpop.f32.mrb[0].mxu0
    %v2488 = vadd.f32 %v2414, %v2487
    %v2489 = vpop.f32.mrb[0].mxu0
    %2490 = vmatprep.mubr.f32.mxu0 0.0
    %2491 = vmatmul.mubr.f32.gmra.mrb[0].mxu0 %v2419
    %v2492 = vpop.f32.mrb[0].mxu0
    %v2493 = vadd.f32 %v2414, %v2492
    %v2494 = vpop.f32.mrb[0].mxu0
    %2495 = vdwg.mxu0
    %v2496 = vmax.f32 %v2488, 0.0
    %v2497 = vmax.f32 %v2493, 0.0
    %v2498 = vlaneseq
    %v2499 = vshrl.u32 %v2498, 7
    %v2500 = vsub.s32 0, %v2499
    %v2501 = vrot.slane %v1354, %v2500
    %v2503 = vsel %vm1213, %v2496, 0
    %v2506 = vsel %vm1213, %v2497, 0
    %2508 = vmatprep.subr.mxu0 0.0
    %2509 = vmatpush1.msra.mxu0 %v1345
    %2510 = vmatprep.subr.mxu0 0.0
    %2511 = vmatpush1.msra.mxu0 %v1346
    %2512 = vmatprep.subr.mxu0 0.0
    %2513 = vmatpush1.msra.mxu0 %v1347
    %2514 = vmatprep.subr.mxu0 0.0
    %2515 = vmatpush1.msra.mxu0 %v1348
    %2516 = vmatprep.subr.mxu0 0.0
    %2517 = vmatpush1.msra.mxu0 0.0
    %2518 = vmatprep.subr.mxu0 0.0
    %2519 = vmatpush1.msra.mxu0 0.0
    %2520 = vmatprep.subr.mxu0 0.0
    %2521 = vmatpush1.msra.mxu0 0.0
    %2522 = vmatprep.subr.mxu0 0.0
    %2523 = vmatpush1.msra.mxu0 0.0
    %2524 = vmatprep.subr.mxu0 0.0
    %2525 = vmatpush1.msra.mxu0 0.0
    %2526 = vmatprep.subr.mxu0 0.0
    %2527 = vmatpush1.msra.mxu0 0.0
    %2528 = vmatprep.subr.mxu0 0.0
    %2529 = vmatpush1.msra.mxu0 0.0
    %2530 = vmatprep.subr.mxu0 0.0
    %2531 = vmatpush1.msra.mxu0 0.0
    %2532 = vmatprep.subr.mxu0 0.0
    %2533 = vmatpush1.msra.mxu0 0.0
    %2534 = vmatprep.subr.mxu0 0.0
    %2535 = vmatpush1.msra.mxu0 0.0
    %2536 = vmatprep.subr.mxu0 0.0
    %2537 = vmatpush1.msra.mxu0 0.0
    %2538 = vmatprep.subr.mxu0 0.0
    %2539 = vmatpush1.msra.mxu0 0.0
    %2540 = vmatprep.subr.mxu0 0.0
    %2541 = vmatpush1.msra.mxu0 0.0
    %2542 = vmatprep.subr.mxu0 0.0
    %2543 = vmatpush1.msra.mxu0 0.0
    %2544 = vmatprep.subr.mxu0 0.0
    %2545 = vmatpush1.msra.mxu0 0.0
    %2546 = vmatprep.subr.mxu0 0.0
    %2547 = vmatpush1.msra.mxu0 0.0
    %2548 = vmatprep.subr.mxu0 0.0
    %2549 = vmatpush1.msra.mxu0 0.0
    %2550 = vmatprep.subr.mxu0 0.0
    %2551 = vmatpush1.msra.mxu0 0.0
    %2552 = vmatprep.subr.mxu0 0.0
    %2553 = vmatpush1.msra.mxu0 0.0
    %2554 = vmatprep.subr.mxu0 0.0
    %2555 = vmatpush1.msra.mxu0 0.0
    %2556 = vmatprep.subr.mxu0 0.0
    %2557 = vmatpush1.msra.mxu0 0.0
    %2558 = vmatprep.subr.mxu0 0.0
    %2559 = vmatpush1.msra.mxu0 0.0
    %2560 = vmatprep.subr.mxu0 0.0
    %2561 = vmatpush1.msra.mxu0 0.0
    %2562 = vmatprep.subr.mxu0 0.0
    %2563 = vmatpush1.msra.mxu0 0.0
    %2564 = vmatprep.subr.mxu0 0.0
    %2565 = vmatpush1.msra.mxu0 0.0
    %2566 = vmatprep.subr.mxu0 0.0
    %2567 = vmatpush1.msra.mxu0 0.0
    %2568 = vmatprep.subr.mxu0 0.0
    %2569 = vmatpush1.msra.mxu0 0.0
    %2570 = vmatprep.subr.mxu0 0.0
    %2571 = vmatpush1.msra.mxu0 0.0
    %2572 = vmatprep.mubr.f32.mxu0 0.0
    %2573 = vmatmul.mubr.f32.gmra.mrb[0].mxu0 %v2503
    %v2574 = vpop.f32.mrb[0].mxu0
    %v2575 = vadd.f32 %v2501, %v2574
    %v2576 = vpop.f32.mrb[0].mxu0
    %2577 = vmatprep.mubr.f32.mxu0 0.0
    %2578 = vmatmul.mubr.f32.gmra.mrb[0].mxu0 %v2506
    %v2579 = vpop.f32.mrb[0].mxu0
    %v2580 = vadd.f32 %v2501, %v2579
    %v2581 = vpop.f32.mrb[0].mxu0
    %2582 = vdwg.mxu0
    %v2583 = vadd.f32 %v2409, %v2575
    %v2584 = vadd.f32 %v2410, %v2580
    %v2585 = vsel %vm67, %v2583, 0.0
    %2586 = vadd.xlane.f32.xlu0 %v2585
    %v2587 = vpop.xlane.xlu0 %2586
    %v2588 = vsel %vm67, %v2584, 0.0
    %2589 = vadd.xlane.f32.xlu0 %v2588
    %v2590 = vpop.xlane.xlu0 %2589
    %v2591 = vmul.f32 %v2587, %v1089
    %v2592 = vmul.f32 %v2590, %v1089
    %v2593 = vsub.f32 %v2583, %v2591
    %v2594 = vsub.f32 %v2584, %v2592
    %v2595 = vmul.f32 %v2593, %v2593
    %v2596 = vmul.f32 %v2594, %v2594
    %v2597 = vsel %vm67, %v2595, 0.0
    %2598 = vadd.xlane.f32.xlu0 %v2597
    %v2599 = vpop.xlane.xlu0 %2598
    %v2600 = vsel %vm67, %v2596, 0.0
    %2601 = vadd.xlane.f32.xlu0 %v2600
    %v2602 = vpop.xlane.xlu0 %2601
    %v2603 = vmul.f32 %v2599, %v1089
    %v2604 = vmul.f32 %v2602, %v1089
    %v2605 = vadd.f32 %v2603, 1e-05
    %v2606 = vadd.f32 %v2604, 1e-05
    %v2607 = vrsqrt.pop %v2605
    %v2608 = vrsqrt.pop %v2606
    %v2609 = vmul.f32 %v2593, %v2607
    %v2610 = vmul.f32 %v2594, %v2608
    %v2611 = vlaneseq
    %v2612 = vshrl.u32 %v2611, 7
    %v2613 = vsub.s32 0, %v2612
    %v2614 = vrot.slane %v1355, %v2613
    %v2615 = vmul.f32 %v2609, %v2614
    %v2616 = vmul.f32 %v2610, %v2614
    %v2617 = vlaneseq
    %v2618 = vshrl.u32 %v2617, 7
    %v2619 = vsub.s32 0, %v2618
    %v2620 = vrot.slane %v1356, %v2619
    %v2621 = vadd.f32 %v2615, %v2620
    %v2622 = vadd.f32 %v2616, %v2620
    %v2623 = vld [vmem:[%s3] sm:$0xff]
    %v2624 = vld [vmem:[%s3 + $0x8] sm:$0xff]
    %v2625 = vld [vmem:[%s3 + $0x10] sm:$0xff]
    %v2626 = vld [vmem:[%s3 + $0x18] sm:$0xff]
    %v2627 = vld [vmem:[%s3 + $0x20] sm:$0xff]
    %v2628 = vld [vmem:[%s3 + $0x28] sm:$0xff]
    %v2629 = vld [vmem:[%s2 + $0x10] sm:$0x1]
    %2631 = vrot.lane.b32.xlu0 %v2621, 16
    %v2632 = vpop.permute.xlu0 %2631
    %2635 = vrot.lane.b32.xlu0 %v2622, 32
    %v2636 = vpop.permute.xlu0 %2635
    %v2638 = vsel %vm67, 0.0, %v2632
    %v2639 = vsel %vm1213, %v2638, %v2636
    %v2640 = vlaneseq
    %v2641 = vshrl.u32 %v2640, 7
    %v2642 = vsub.s32 0, %v2641
    %v2643 = vrot.slane %v2629, %v2642
    %vm2644 = vcmask 392192
    %v2646 = vsel %vm2644, %v2639, 0
    %2648 = vmatprep.subr.mxu0 0.0
    %2649 = vmatpush1.msra.mxu0 %v2623
    %2650 = vmatprep.subr.mxu0 0.0
    %2651 = vmatpush1.msra.mxu0 %v2624
    %2652 = vmatprep.subr.mxu0 0.0
    %2653 = vmatpush1.msra.mxu0 %v2625
    %2654 = vmatprep.subr.mxu0 0.0
    %2655 = vmatpush1.msra.mxu0 %v2626
    %2656 = vmatprep.subr.mxu0 0.0
    %2657 = vmatpush1.msra.mxu0 %v2627
    %2658 = vmatprep.subr.mxu0 0.0
    %2659 = vmatpush1.msra.mxu0 %v2628
    %2660 = vmatprep.subr.mxu0 0.0
    %2661 = vmatpush1.msra.mxu0 0.0
    %2662 = vmatprep.subr.mxu0 0.0
    %2663 = vmatpush1.msra.mxu0 0.0
    %2664 = vmatprep.subr.mxu0 0.0
    %2665 = vmatpush1.msra.mxu0 0.0
    %2666 = vmatprep.subr.mxu0 0.0
    %2667 = vmatpush1.msra.mxu0 0.0
    %2668 = vmatprep.subr.mxu0 0.0
    %2669 = vmatpush1.msra.mxu0 0.0
    %2670 = vmatprep.subr.mxu0 0.0
    %2671 = vmatpush1.msra.mxu0 0.0
    %2672 = vmatprep.subr.mxu0 0.0
    %2673 = vmatpush1.msra.mxu0 0.0
    %2674 = vmatprep.subr.mxu0 0.0
    %2675 = vmatpush1.msra.mxu0 0.0
    %2676 = vmatprep.subr.mxu0 0.0
    %2677 = vmatpush1.msra.mxu0 0.0
    %2678 = vmatprep.subr.mxu0 0.0
    %2679 = vmatpush1.msra.mxu0 0.0
    %2680 = vmatprep.subr.mxu0 0.0
    %2681 = vmatpush1.msra.mxu0 0.0
    %2682 = vmatprep.subr.mxu0 0.0
    %2683 = vmatpush1.msra.mxu0 0.0
    %2684 = vmatprep.subr.mxu0 0.0
    %2685 = vmatpush1.msra.mxu0 0.0
    %2686 = vmatprep.subr.mxu0 0.0
    %2687 = vmatpush1.msra.mxu0 0.0
    %2688 = vmatprep.subr.mxu0 0.0
    %2689 = vmatpush1.msra.mxu0 0.0
    %2690 = vmatprep.subr.mxu0 0.0
    %2691 = vmatpush1.msra.mxu0 0.0
    %2692 = vmatprep.subr.mxu0 0.0
    %2693 = vmatpush1.msra.mxu0 0.0
    %2694 = vmatprep.subr.mxu0 0.0
    %2695 = vmatpush1.msra.mxu0 0.0
    %2696 = vmatprep.subr.mxu0 0.0
    %2697 = vmatpush1.msra.mxu0 0.0
    %2698 = vmatprep.subr.mxu0 0.0
    %2699 = vmatpush1.msra.mxu0 0.0
    %2700 = vmatprep.subr.mxu0 0.0
    %2701 = vmatpush1.msra.mxu0 0.0
    %2702 = vmatprep.subr.mxu0 0.0
    %2703 = vmatpush1.msra.mxu0 0.0
    %2704 = vmatprep.subr.mxu0 0.0
    %2705 = vmatpush1.msra.mxu0 0.0
    %2706 = vmatprep.subr.mxu0 0.0
    %2707 = vmatpush1.msra.mxu0 0.0
    %2708 = vmatprep.subr.mxu0 0.0
    %2709 = vmatpush1.msra.mxu0 0.0
    %2710 = vmatprep.subr.mxu0 0.0
    %2711 = vmatpush1.msra.mxu0 0.0
    %2712 = vmatprep.mubr.f32.mxu0 0.0
    %2713 = vmatmul.mubr.f32.gmra.mrb[0].mxu0 %v2646
    %v2714 = vpop.f32.mrb[0].mxu0
    %v2715 = vadd.f32 %v2643, %v2714
    %v2716 = vpop.f32.mrb[0].mxu0
    %2717 = vdwg.mxu0
    %v2718 = vmax.f32 %v2715, 0.0
    %2719 = vrot.lane.b32.xlu0 %v2622, 16
    %v2720 = vpop.permute.xlu0 %2719
    %v2722 = vsel %vm67, %v2621, %v2720
    %v2723 = vsel %vm1213, %v2722, 0.0
    %v2725 = vsel %vm2644, %v2723, 0
    %2727 = vmatprep.subr.mxu0 0.0
    %2728 = vmatpush1.msra.mxu0 %v2623
    %2729 = vmatprep.subr.mxu0 0.0
    %2730 = vmatpush1.msra.mxu0 %v2624
    %2731 = vmatprep.subr.mxu0 0.0
    %2732 = vmatpush1.msra.mxu0 %v2625
    %2733 = vmatprep.subr.mxu0 0.0
    %2734 = vmatpush1.msra.mxu0 %v2626
    %2735 = vmatprep.subr.mxu0 0.0
    %2736 = vmatpush1.msra.mxu0 %v2627
    %2737 = vmatprep.subr.mxu0 0.0
    %2738 = vmatpush1.msra.mxu0 %v2628
    %2739 = vmatprep.subr.mxu0 0.0
    %2740 = vmatpush1.msra.mxu0 0.0
    %2741 = vmatprep.subr.mxu0 0.0
    %2742 = vmatpush1.msra.mxu0 0.0
    %2743 = vmatprep.subr.mxu0 0.0
    %2744 = vmatpush1.msra.mxu0 0.0
    %2745 = vmatprep.subr.mxu0 0.0
    %2746 = vmatpush1.msra.mxu0 0.0
    %2747 = vmatprep.subr.mxu0 0.0
    %2748 = vmatpush1.msra.mxu0 0.0
    %2749 = vmatprep.subr.mxu0 0.0
    %2750 = vmatpush1.msra.mxu0 0.0
    %2751 = vmatprep.subr.mxu0 0.0
    %2752 = vmatpush1.msra.mxu0 0.0
    %2753 = vmatprep.subr.mxu0 0.0
    %2754 = vmatpush1.msra.mxu0 0.0
    %2755 = vmatprep.subr.mxu0 0.0
    %2756 = vmatpush1.msra.mxu0 0.0
    %2757 = vmatprep.subr.mxu0 0.0
    %2758 = vmatpush1.msra.mxu0 0.0
    %2759 = vmatprep.subr.mxu0 0.0
    %2760 = vmatpush1.msra.mxu0 0.0
    %2761 = vmatprep.subr.mxu0 0.0
    %2762 = vmatpush1.msra.mxu0 0.0
    %2763 = vmatprep.subr.mxu0 0.0
    %2764 = vmatpush1.msra.mxu0 0.0
    %2765 = vmatprep.subr.mxu0 0.0
    %2766 = vmatpush1.msra.mxu0 0.0
    %2767 = vmatprep.subr.mxu0 0.0
    %2768 = vmatpush1.msra.mxu0 0.0
    %2769 = vmatprep.subr.mxu0 0.0
    %2770 = vmatpush1.msra.mxu0 0.0
    %2771 = vmatprep.subr.mxu0 0.0
    %2772 = vmatpush1.msra.mxu0 0.0
    %2773 = vmatprep.subr.mxu0 0.0
    %2774 = vmatpush1.msra.mxu0 0.0
    %2775 = vmatprep.subr.mxu0 0.0
    %2776 = vmatpush1.msra.mxu0 0.0
    %2777 = vmatprep.subr.mxu0 0.0
    %2778 = vmatpush1.msra.mxu0 0.0
    %2779 = vmatprep.subr.mxu0 0.0
    %2780 = vmatpush1.msra.mxu0 0.0
    %2781 = vmatprep.subr.mxu0 0.0
    %2782 = vmatpush1.msra.mxu0 0.0
    %2783 = vmatprep.subr.mxu0 0.0
    %2784 = vmatpush1.msra.mxu0 0.0
    %2785 = vmatprep.subr.mxu0 0.0
    %2786 = vmatpush1.msra.mxu0 0.0
    %2787 = vmatprep.subr.mxu0 0.0
    %2788 = vmatpush1.msra.mxu0 0.0
    %2789 = vmatprep.subr.mxu0 0.0
    %2790 = vmatpush1.msra.mxu0 0.0
    %2791 = vmatprep.mubr.f32.mxu0 0.0
    %2792 = vmatmul.mubr.f32.gmra.mrb[0].mxu0 %v2725
    %v2793 = vpop.f32.mrb[0].mxu0
    %v2794 = vadd.f32 %v2643, %v2793
    %v2795 = vpop.f32.mrb[0].mxu0
    %2796 = vdwg.mxu0
    %v2797 = vmax.f32 %v2794, 0.0
    %s2798 = scalar_lea.vmem %s3, 48
    %v2799 = vld [vmem:[%s2798] sm:$0xff]
    %v2800 = vld [vmem:[%s2798 + $0x8] sm:$0xff]
    %v2801 = vld [vmem:[%s2798 + $0x10] sm:$0xff]
    %v2802 = vld [vmem:[%s2 + $0x11] sm:$0x1]
    %2804 = vrot.lane.b32.xlu0 %v2718, 8
    %v2805 = vpop.permute.xlu0 %2804
    %2808 = vrot.lane.b32.xlu0 %v2797, 16
    %v2809 = vpop.permute.xlu0 %2808
    %v2811 = vsel %vm990, 0.0, %v2805
    %v2812 = vsel %vm67, %v2811, %v2809
    %v2813 = vlaneseq
    %v2814 = vshrl.u32 %v2813, 7
    %v2815 = vsub.s32 0, %v2814
    %v2816 = vrot.slane %v2802, %v2815
    %vm2817 = vcmask 195584
    %v2819 = vsel %vm2817, %v2812, 0
    %2821 = vmatprep.subr.mxu0 0.0
    %2822 = vmatpush1.msra.mxu0 %v2799
    %2823 = vmatprep.subr.mxu0 0.0
    %2824 = vmatpush1.msra.mxu0 %v2800
    %2825 = vmatprep.subr.mxu0 0.0
    %2826 = vmatpush1.msra.mxu0 %v2801
    %2827 = vmatprep.subr.mxu0 0.0
    %2828 = vmatpush1.msra.mxu0 0.0
    %2829 = vmatprep.subr.mxu0 0.0
    %2830 = vmatpush1.msra.mxu0 0.0
    %2831 = vmatprep.subr.mxu0 0.0
    %2832 = vmatpush1.msra.mxu0 0.0
    %2833 = vmatprep.subr.mxu0 0.0
    %2834 = vmatpush1.msra.mxu0 0.0
    %2835 = vmatprep.subr.mxu0 0.0
    %2836 = vmatpush1.msra.mxu0 0.0
    %2837 = vmatprep.subr.mxu0 0.0
    %2838 = vmatpush1.msra.mxu0 0.0
    %2839 = vmatprep.subr.mxu0 0.0
    %2840 = vmatpush1.msra.mxu0 0.0
    %2841 = vmatprep.subr.mxu0 0.0
    %2842 = vmatpush1.msra.mxu0 0.0
    %2843 = vmatprep.subr.mxu0 0.0
    %2844 = vmatpush1.msra.mxu0 0.0
    %2845 = vmatprep.subr.mxu0 0.0
    %2846 = vmatpush1.msra.mxu0 0.0
    %2847 = vmatprep.subr.mxu0 0.0
    %2848 = vmatpush1.msra.mxu0 0.0
    %2849 = vmatprep.subr.mxu0 0.0
    %2850 = vmatpush1.msra.mxu0 0.0
    %2851 = vmatprep.subr.mxu0 0.0
    %2852 = vmatpush1.msra.mxu0 0.0
    %2853 = vmatprep.subr.mxu0 0.0
    %2854 = vmatpush1.msra.mxu0 0.0
    %2855 = vmatprep.subr.mxu0 0.0
    %2856 = vmatpush1.msra.mxu0 0.0
    %2857 = vmatprep.subr.mxu0 0.0
    %2858 = vmatpush1.msra.mxu0 0.0
    %2859 = vmatprep.subr.mxu0 0.0
    %2860 = vmatpush1.msra.mxu0 0.0
    %2861 = vmatprep.subr.mxu0 0.0
    %2862 = vmatpush1.msra.mxu0 0.0
    %2863 = vmatprep.subr.mxu0 0.0
    %2864 = vmatpush1.msra.mxu0 0.0
    %2865 = vmatprep.subr.mxu0 0.0
    %2866 = vmatpush1.msra.mxu0 0.0
    %2867 = vmatprep.subr.mxu0 0.0
    %2868 = vmatpush1.msra.mxu0 0.0
    %2869 = vmatprep.subr.mxu0 0.0
    %2870 = vmatpush1.msra.mxu0 0.0
    %2871 = vmatprep.subr.mxu0 0.0
    %2872 = vmatpush1.msra.mxu0 0.0
    %2873 = vmatprep.subr.mxu0 0.0
    %2874 = vmatpush1.msra.mxu0 0.0
    %2875 = vmatprep.subr.mxu0 0.0
    %2876 = vmatpush1.msra.mxu0 0.0
    %2877 = vmatprep.subr.mxu0 0.0
    %2878 = vmatpush1.msra.mxu0 0.0
    %2879 = vmatprep.subr.mxu0 0.0
    %2880 = vmatpush1.msra.mxu0 0.0
    %2881 = vmatprep.subr.mxu0 0.0
    %2882 = vmatpush1.msra.mxu0 0.0
    %2883 = vmatprep.subr.mxu0 0.0
    %2884 = vmatpush1.msra.mxu0 0.0
    %2885 = vmatprep.mubr.f32.mxu0 0.0
    %2886 = vmatmul.mubr.f32.gmra.mrb[0].mxu0 %v2819
    %v2887 = vpop.f32.mrb[0].mxu0
    %v2888 = vadd.f32 %v2816, %v2887
    %v2889 = vpop.f32.mrb[0].mxu0
    %2890 = vdwg.mxu0
    %v2891 = vmax.f32 %v2888, 0.0
    %s2892 = scalar_lea.vmem %s3, 96
    %v2893 = vld [vmem:[%s2892] sm:$0xff]
    %v2894 = vld [vmem:[%s2892 + $0x8] sm:$0xff]
    %v2895 = vld [vmem:[%s2892 + $0x10] sm:$0xff]
    %v2896 = vld [vmem:[%s2 + $0x12] sm:$0x1]
    %2898 = vrot.lane.b32.xlu0 %v2891, 8
    %v2899 = vpop.permute.xlu0 %2898
    %v2901 = vsel %vm990, 0.0, %v2899
    %v2902 = vsel %vm67, %v2901, 0.0
    %v2903 = vlaneseq
    %v2904 = vshrl.u32 %v2903, 7
    %v2905 = vsub.s32 0, %v2904
    %v2906 = vrot.slane %v2896, %v2905
    %v2908 = vsel %vm2817, %v2902, 0
    %2910 = vmatprep.subr.mxu0 0.0
    %2911 = vmatpush1.msra.mxu0 %v2893
    %2912 = vmatprep.subr.mxu0 0.0
    %2913 = vmatpush1.msra.mxu0 %v2894
    %2914 = vmatprep.subr.mxu0 0.0
    %2915 = vmatpush1.msra.mxu0 %v2895
    %2916 = vmatprep.subr.mxu0 0.0
    %2917 = vmatpush1.msra.mxu0 0.0
    %2918 = vmatprep.subr.mxu0 0.0
    %2919 = vmatpush1.msra.mxu0 0.0
    %2920 = vmatprep.subr.mxu0 0.0
    %2921 = vmatpush1.msra.mxu0 0.0
    %2922 = vmatprep.subr.mxu0 0.0
    %2923 = vmatpush1.msra.mxu0 0.0
    %2924 = vmatprep.subr.mxu0 0.0
    %2925 = vmatpush1.msra.mxu0 0.0
    %2926 = vmatprep.subr.mxu0 0.0
    %2927 = vmatpush1.msra.mxu0 0.0
    %2928 = vmatprep.subr.mxu0 0.0
    %2929 = vmatpush1.msra.mxu0 0.0
    %2930 = vmatprep.subr.mxu0 0.0
    %2931 = vmatpush1.msra.mxu0 0.0
    %2932 = vmatprep.subr.mxu0 0.0
    %2933 = vmatpush1.msra.mxu0 0.0
    %2934 = vmatprep.subr.mxu0 0.0
    %2935 = vmatpush1.msra.mxu0 0.0
    %2936 = vmatprep.subr.mxu0 0.0
    %2937 = vmatpush1.msra.mxu0 0.0
    %2938 = vmatprep.subr.mxu0 0.0
    %2939 = vmatpush1.msra.mxu0 0.0
    %2940 = vmatprep.subr.mxu0 0.0
    %2941 = vmatpush1.msra.mxu0 0.0
    %2942 = vmatprep.subr.mxu0 0.0
    %2943 = vmatpush1.msra.mxu0 0.0
    %2944 = vmatprep.subr.mxu0 0.0
    %2945 = vmatpush1.msra.mxu0 0.0
    %2946 = vmatprep.subr.mxu0 0.0
    %2947 = vmatpush1.msra.mxu0 0.0
    %2948 = vmatprep.subr.mxu0 0.0
    %2949 = vmatpush1.msra.mxu0 0.0
    %2950 = vmatprep.subr.mxu0 0.0
    %2951 = vmatpush1.msra.mxu0 0.0
    %2952 = vmatprep.subr.mxu0 0.0
    %2953 = vmatpush1.msra.mxu0 0.0
    %2954 = vmatprep.subr.mxu0 0.0
    %2955 = vmatpush1.msra.mxu0 0.0
    %2956 = vmatprep.subr.mxu0 0.0
    %2957 = vmatpush1.msra.mxu0 0.0
    %2958 = vmatprep.subr.mxu0 0.0
    %2959 = vmatpush1.msra.mxu0 0.0
    %2960 = vmatprep.subr.mxu0 0.0
    %2961 = vmatpush1.msra.mxu0 0.0
    %2962 = vmatprep.subr.mxu0 0.0
    %2963 = vmatpush1.msra.mxu0 0.0
    %2964 = vmatprep.subr.mxu0 0.0
    %2965 = vmatpush1.msra.mxu0 0.0
    %2966 = vmatprep.subr.mxu0 0.0
    %2967 = vmatpush1.msra.mxu0 0.0
    %2968 = vmatprep.subr.mxu0 0.0
    %2969 = vmatpush1.msra.mxu0 0.0
    %2970 = vmatprep.subr.mxu0 0.0
    %2971 = vmatpush1.msra.mxu0 0.0
    %2972 = vmatprep.subr.mxu0 0.0
    %2973 = vmatpush1.msra.mxu0 0.0
    %2974 = vmatprep.mubr.f32.mxu0 0.0
    %2975 = vmatmul.mubr.f32.gmra.mrb[0].mxu0 %v2908
    %v2976 = vpop.f32.mrb[0].mxu0
    %v2977 = vadd.f32 %v2906, %v2976
    %v2978 = vpop.f32.mrb[0].mxu0
    %2979 = vdwg.mxu0
    %v2980 = vmax.f32 %v2977, 0.0
    %s2981 = scalar_lea.vmem %s3, 144
    %v2982 = vld [vmem:[%s2981] sm:$0xff]
    %v2983 = vld [vmem:[%s2981 + $0x8] sm:$0xff]
    %v2984 = vld [vmem:[%s2981 + $0x10] sm:$0xff]
    %v2985 = vld [vmem:[%s2 + $0x13] sm:$0x1]
    %2987 = vrot.lane.b32.xlu0 %v2980, 8
    %v2988 = vpop.permute.xlu0 %2987
    %v2990 = vsel %vm990, 0.0, %v2988
    %v2991 = vsel %vm67, %v2990, 0.0
    %v2992 = vlaneseq
    %v2993 = vshrl.u32 %v2992, 7
    %v2994 = vsub.s32 0, %v2993
    %v2995 = vrot.slane %v2985, %v2994
    %v2997 = vsel %vm2817, %v2991, 0
    %2999 = vmatprep.subr.mxu0 0.0
    %3000 = vmatpush1.msra.mxu0 %v2982
    %3001 = vmatprep.subr.mxu0 0.0
    %3002 = vmatpush1.msra.mxu0 %v2983
    %3003 = vmatprep.subr.mxu0 0.0
    %3004 = vmatpush1.msra.mxu0 %v2984
    %3005 = vmatprep.subr.mxu0 0.0
    %3006 = vmatpush1.msra.mxu0 0.0
    %3007 = vmatprep.subr.mxu0 0.0
    %3008 = vmatpush1.msra.mxu0 0.0
    %3009 = vmatprep.subr.mxu0 0.0
    %3010 = vmatpush1.msra.mxu0 0.0
    %3011 = vmatprep.subr.mxu0 0.0
    %3012 = vmatpush1.msra.mxu0 0.0
    %3013 = vmatprep.subr.mxu0 0.0
    %3014 = vmatpush1.msra.mxu0 0.0
    %3015 = vmatprep.subr.mxu0 0.0
    %3016 = vmatpush1.msra.mxu0 0.0
    %3017 = vmatprep.subr.mxu0 0.0
    %3018 = vmatpush1.msra.mxu0 0.0
    %3019 = vmatprep.subr.mxu0 0.0
    %3020 = vmatpush1.msra.mxu0 0.0
    %3021 = vmatprep.subr.mxu0 0.0
    %3022 = vmatpush1.msra.mxu0 0.0
    %3023 = vmatprep.subr.mxu0 0.0
    %3024 = vmatpush1.msra.mxu0 0.0
    %3025 = vmatprep.subr.mxu0 0.0
    %3026 = vmatpush1.msra.mxu0 0.0
    %3027 = vmatprep.subr.mxu0 0.0
    %3028 = vmatpush1.msra.mxu0 0.0
    %3029 = vmatprep.subr.mxu0 0.0
    %3030 = vmatpush1.msra.mxu0 0.0
    %3031 = vmatprep.subr.mxu0 0.0
    %3032 = vmatpush1.msra.mxu0 0.0
    %3033 = vmatprep.subr.mxu0 0.0
    %3034 = vmatpush1.msra.mxu0 0.0
    %3035 = vmatprep.subr.mxu0 0.0
    %3036 = vmatpush1.msra.mxu0 0.0
    %3037 = vmatprep.subr.mxu0 0.0
    %3038 = vmatpush1.msra.mxu0 0.0
    %3039 = vmatprep.subr.mxu0 0.0
    %3040 = vmatpush1.msra.mxu0 0.0
    %3041 = vmatprep.subr.mxu0 0.0
    %3042 = vmatpush1.msra.mxu0 0.0
    %3043 = vmatprep.subr.mxu0 0.0
    %3044 = vmatpush1.msra.mxu0 0.0
    %3045 = vmatprep.subr.mxu0 0.0
    %3046 = vmatpush1.msra.mxu0 0.0
    %3047 = vmatprep.subr.mxu0 0.0
    %3048 = vmatpush1.msra.mxu0 0.0
    %3049 = vmatprep.subr.mxu0 0.0
    %3050 = vmatpush1.msra.mxu0 0.0
    %3051 = vmatprep.subr.mxu0 0.0
    %3052 = vmatpush1.msra.mxu0 0.0
    %3053 = vmatprep.subr.mxu0 0.0
    %3054 = vmatpush1.msra.mxu0 0.0
    %3055 = vmatprep.subr.mxu0 0.0
    %3056 = vmatpush1.msra.mxu0 0.0
    %3057 = vmatprep.subr.mxu0 0.0
    %3058 = vmatpush1.msra.mxu0 0.0
    %3059 = vmatprep.subr.mxu0 0.0
    %3060 = vmatpush1.msra.mxu0 0.0
    %3061 = vmatprep.subr.mxu0 0.0
    %3062 = vmatpush1.msra.mxu0 0.0
    %3063 = vmatprep.mubr.f32.mxu0 0.0
    %3064 = vmatmul.mubr.f32.gmra.mrb[0].mxu0 %v2997
    %v3065 = vpop.f32.mrb[0].mxu0
    %v3066 = vadd.f32 %v2995, %v3065
    %v3067 = vpop.f32.mrb[0].mxu0
    %3068 = vdwg.mxu0
    %v3069 = vmax.f32 %v3066, 0.0
    %s3070 = scalar_lea.vmem %s3, 192
    %v3071 = vld [vmem:[%s3070] sm:$0xff]
    %v3072 = vld [vmem:[%s3070 + $0x8] sm:$0xff]
    %v3073 = vld [vmem:[%s3070 + $0x10] sm:$0xff]
    %v3074 = vld [vmem:[%s2 + $0x14] sm:$0x1]
    %3076 = vrot.lane.b32.xlu0 %v3069, 8
    %v3077 = vpop.permute.xlu0 %3076
    %v3079 = vsel %vm990, 0.0, %v3077
    %v3080 = vsel %vm67, %v3079, 0.0
    %v3081 = vlaneseq
    %v3082 = vshrl.u32 %v3081, 7
    %v3083 = vsub.s32 0, %v3082
    %v3084 = vrot.slane %v3074, %v3083
    %v3086 = vsel %vm2817, %v3080, 0
    %3088 = vmatprep.subr.mxu0 0.0
    %3089 = vmatpush1.msra.mxu0 %v3071
    %3090 = vmatprep.subr.mxu0 0.0
    %3091 = vmatpush1.msra.mxu0 %v3072
    %3092 = vmatprep.subr.mxu0 0.0
    %3093 = vmatpush1.msra.mxu0 %v3073
    %3094 = vmatprep.subr.mxu0 0.0
    %3095 = vmatpush1.msra.mxu0 0.0
    %3096 = vmatprep.subr.mxu0 0.0
    %3097 = vmatpush1.msra.mxu0 0.0
    %3098 = vmatprep.subr.mxu0 0.0
    %3099 = vmatpush1.msra.mxu0 0.0
    %3100 = vmatprep.subr.mxu0 0.0
    %3101 = vmatpush1.msra.mxu0 0.0
    %3102 = vmatprep.subr.mxu0 0.0
    %3103 = vmatpush1.msra.mxu0 0.0
    %3104 = vmatprep.subr.mxu0 0.0
    %3105 = vmatpush1.msra.mxu0 0.0
    %3106 = vmatprep.subr.mxu0 0.0
    %3107 = vmatpush1.msra.mxu0 0.0
    %3108 = vmatprep.subr.mxu0 0.0
    %3109 = vmatpush1.msra.mxu0 0.0
    %3110 = vmatprep.subr.mxu0 0.0
    %3111 = vmatpush1.msra.mxu0 0.0
    %3112 = vmatprep.subr.mxu0 0.0
    %3113 = vmatpush1.msra.mxu0 0.0
    %3114 = vmatprep.subr.mxu0 0.0
    %3115 = vmatpush1.msra.mxu0 0.0
    %3116 = vmatprep.subr.mxu0 0.0
    %3117 = vmatpush1.msra.mxu0 0.0
    %3118 = vmatprep.subr.mxu0 0.0
    %3119 = vmatpush1.msra.mxu0 0.0
    %3120 = vmatprep.subr.mxu0 0.0
    %3121 = vmatpush1.msra.mxu0 0.0
    %3122 = vmatprep.subr.mxu0 0.0
    %3123 = vmatpush1.msra.mxu0 0.0
    %3124 = vmatprep.subr.mxu0 0.0
    %3125 = vmatpush1.msra.mxu0 0.0
    %3126 = vmatprep.subr.mxu0 0.0
    %3127 = vmatpush1.msra.mxu0 0.0
    %3128 = vmatprep.subr.mxu0 0.0
    %3129 = vmatpush1.msra.mxu0 0.0
    %3130 = vmatprep.subr.mxu0 0.0
    %3131 = vmatpush1.msra.mxu0 0.0
    %3132 = vmatprep.subr.mxu0 0.0
    %3133 = vmatpush1.msra.mxu0 0.0
    %3134 = vmatprep.subr.mxu0 0.0
    %3135 = vmatpush1.msra.mxu0 0.0
    %3136 = vmatprep.subr.mxu0 0.0
    %3137 = vmatpush1.msra.mxu0 0.0
    %3138 = vmatprep.subr.mxu0 0.0
    %3139 = vmatpush1.msra.mxu0 0.0
    %3140 = vmatprep.subr.mxu0 0.0
    %3141 = vmatpush1.msra.mxu0 0.0
    %3142 = vmatprep.subr.mxu0 0.0
    %3143 = vmatpush1.msra.mxu0 0.0
    %3144 = vmatprep.subr.mxu0 0.0
    %3145 = vmatpush1.msra.mxu0 0.0
    %3146 = vmatprep.subr.mxu0 0.0
    %3147 = vmatpush1.msra.mxu0 0.0
    %3148 = vmatprep.subr.mxu0 0.0
    %3149 = vmatpush1.msra.mxu0 0.0
    %3150 = vmatprep.subr.mxu0 0.0
    %3151 = vmatpush1.msra.mxu0 0.0
    %3152 = vmatprep.mubr.f32.mxu0 0.0
    %3153 = vmatmul.mubr.f32.gmra.mrb[0].mxu0 %v3086
    %v3154 = vpop.f32.mrb[0].mxu0
    %v3155 = vadd.f32 %v3084, %v3154
    %v3156 = vpop.f32.mrb[0].mxu0
    %3157 = vdwg.mxu0
    %v3158 = vmax.f32 %v3155, 0.0
    %s3159 = scalar_lea.vmem %s3, 240
    %v3160 = vld [vmem:[%s3159] sm:$0xff]
    %v3161 = vld [vmem:[%s3159 + $0x8] sm:$0xff]
    %v3162 = vld [vmem:[%s3159 + $0x10] sm:$0xff]
    %v3163 = vld [vmem:[%s2 + $0x15] sm:$0x1]
    %3165 = vrot.lane.b32.xlu0 %v3158, 8
    %v3166 = vpop.permute.xlu0 %3165
    %v3168 = vsel %vm990, 0.0, %v3166
    %v3169 = vsel %vm67, %v3168, 0.0
    %v3170 = vlaneseq
    %v3171 = vshrl.u32 %v3170, 7
    %v3172 = vsub.s32 0, %v3171
    %v3173 = vrot.slane %v3163, %v3172
    %v3175 = vsel %vm2817, %v3169, 0
    %3177 = vmatprep.subr.mxu0 0.0
    %3178 = vmatpush1.msra.mxu0 %v3160
    %3179 = vmatprep.subr.mxu0 0.0
    %3180 = vmatpush1.msra.mxu0 %v3161
    %3181 = vmatprep.subr.mxu0 0.0
    %3182 = vmatpush1.msra.mxu0 %v3162
    %3183 = vmatprep.subr.mxu0 0.0
    %3184 = vmatpush1.msra.mxu0 0.0
    %3185 = vmatprep.subr.mxu0 0.0
    %3186 = vmatpush1.msra.mxu0 0.0
    %3187 = vmatprep.subr.mxu0 0.0
    %3188 = vmatpush1.msra.mxu0 0.0
    %3189 = vmatprep.subr.mxu0 0.0
    %3190 = vmatpush1.msra.mxu0 0.0
    %3191 = vmatprep.subr.mxu0 0.0
    %3192 = vmatpush1.msra.mxu0 0.0
    %3193 = vmatprep.subr.mxu0 0.0
    %3194 = vmatpush1.msra.mxu0 0.0
    %3195 = vmatprep.subr.mxu0 0.0
    %3196 = vmatpush1.msra.mxu0 0.0
    %3197 = vmatprep.subr.mxu0 0.0
    %3198 = vmatpush1.msra.mxu0 0.0
    %3199 = vmatprep.subr.mxu0 0.0
    %3200 = vmatpush1.msra.mxu0 0.0
    %3201 = vmatprep.subr.mxu0 0.0
    %3202 = vmatpush1.msra.mxu0 0.0
    %3203 = vmatprep.subr.mxu0 0.0
    %3204 = vmatpush1.msra.mxu0 0.0
    %3205 = vmatprep.subr.mxu0 0.0
    %3206 = vmatpush1.msra.mxu0 0.0
    %3207 = vmatprep.subr.mxu0 0.0
    %3208 = vmatpush1.msra.mxu0 0.0
    %3209 = vmatprep.subr.mxu0 0.0
    %3210 = vmatpush1.msra.mxu0 0.0
    %3211 = vmatprep.subr.mxu0 0.0
    %3212 = vmatpush1.msra.mxu0 0.0
    %3213 = vmatprep.subr.mxu0 0.0
    %3214 = vmatpush1.msra.mxu0 0.0
    %3215 = vmatprep.subr.mxu0 0.0
    %3216 = vmatpush1.msra.mxu0 0.0
    %3217 = vmatprep.subr.mxu0 0.0
    %3218 = vmatpush1.msra.mxu0 0.0
    %3219 = vmatprep.subr.mxu0 0.0
    %3220 = vmatpush1.msra.mxu0 0.0
    %3221 = vmatprep.subr.mxu0 0.0
    %3222 = vmatpush1.msra.mxu0 0.0
    %3223 = vmatprep.subr.mxu0 0.0
    %3224 = vmatpush1.msra.mxu0 0.0
    %3225 = vmatprep.subr.mxu0 0.0
    %3226 = vmatpush1.msra.mxu0 0.0
    %3227 = vmatprep.subr.mxu0 0.0
    %3228 = vmatpush1.msra.mxu0 0.0
    %3229 = vmatprep.subr.mxu0 0.0
    %3230 = vmatpush1.msra.mxu0 0.0
    %3231 = vmatprep.subr.mxu0 0.0
    %3232 = vmatpush1.msra.mxu0 0.0
    %3233 = vmatprep.subr.mxu0 0.0
    %3234 = vmatpush1.msra.mxu0 0.0
    %3235 = vmatprep.subr.mxu0 0.0
    %3236 = vmatpush1.msra.mxu0 0.0
    %3237 = vmatprep.subr.mxu0 0.0
    %3238 = vmatpush1.msra.mxu0 0.0
    %3239 = vmatprep.subr.mxu0 0.0
    %3240 = vmatpush1.msra.mxu0 0.0
    %3241 = vmatprep.mubr.f32.mxu0 0.0
    %3242 = vmatmul.mubr.f32.gmra.mrb[0].mxu0 %v3175
    %v3243 = vpop.f32.mrb[0].mxu0
    %v3244 = vadd.f32 %v3173, %v3243
    %v3245 = vpop.f32.mrb[0].mxu0
    %3246 = vdwg.mxu0
    %v3247 = vld [vmem:[%s4] sm:$0xff]
    %v3248 = vld [vmem:[%s2 + $0x16] sm:$0x1]
    %v3249 = vlaneseq
    %v3250 = vshrl.u32 %v3249, 7
    %v3251 = vsub.s32 0, %v3250
    %v3252 = vrot.slane %v3248, %v3251
    %v3254 = vsel %vm990, %v3244, 0
    %3256 = vmatprep.subr.mxu0 0.0
    %3257 = vmatpush1.msra.mxu0 %v3247
    %3258 = vmatprep.subr.mxu0 0.0
    %3259 = vmatpush1.msra.mxu0 0.0
    %3260 = vmatprep.subr.mxu0 0.0
    %3261 = vmatpush1.msra.mxu0 0.0
    %3262 = vmatprep.subr.mxu0 0.0
    %3263 = vmatpush1.msra.mxu0 0.0
    %3264 = vmatprep.subr.mxu0 0.0
    %3265 = vmatpush1.msra.mxu0 0.0
    %3266 = vmatprep.subr.mxu0 0.0
    %3267 = vmatpush1.msra.mxu0 0.0
    %3268 = vmatprep.subr.mxu0 0.0
    %3269 = vmatpush1.msra.mxu0 0.0
    %3270 = vmatprep.subr.mxu0 0.0
    %3271 = vmatpush1.msra.mxu0 0.0
    %3272 = vmatprep.subr.mxu0 0.0
    %3273 = vmatpush1.msra.mxu0 0.0
    %3274 = vmatprep.subr.mxu0 0.0
    %3275 = vmatpush1.msra.mxu0 0.0
    %3276 = vmatprep.subr.mxu0 0.0
    %3277 = vmatpush1.msra.mxu0 0.0
    %3278 = vmatprep.subr.mxu0 0.0
    %3279 = vmatpush1.msra.mxu0 0.0
    %3280 = vmatprep.subr.mxu0 0.0
    %3281 = vmatpush1.msra.mxu0 0.0
    %3282 = vmatprep.subr.mxu0 0.0
    %3283 = vmatpush1.msra.mxu0 0.0
    %3284 = vmatprep.subr.mxu0 0.0
    %3285 = vmatpush1.msra.mxu0 0.0
    %3286 = vmatprep.subr.mxu0 0.0
    %3287 = vmatpush1.msra.mxu0 0.0
    %3288 = vmatprep.subr.mxu0 0.0
    %3289 = vmatpush1.msra.mxu0 0.0
    %3290 = vmatprep.subr.mxu0 0.0
    %3291 = vmatpush1.msra.mxu0 0.0
    %3292 = vmatprep.subr.mxu0 0.0
    %3293 = vmatpush1.msra.mxu0 0.0
    %3294 = vmatprep.subr.mxu0 0.0
    %3295 = vmatpush1.msra.mxu0 0.0
    %3296 = vmatprep.subr.mxu0 0.0
    %3297 = vmatpush1.msra.mxu0 0.0
    %3298 = vmatprep.subr.mxu0 0.0
    %3299 = vmatpush1.msra.mxu0 0.0
    %3300 = vmatprep.subr.mxu0 0.0
    %3301 = vmatpush1.msra.mxu0 0.0
    %3302 = vmatprep.subr.mxu0 0.0
    %3303 = vmatpush1.msra.mxu0 0.0
    %3304 = vmatprep.subr.mxu0 0.0
    %3305 = vmatpush1.msra.mxu0 0.0
    %3306 = vmatprep.subr.mxu0 0.0
    %3307 = vmatpush1.msra.mxu0 0.0
    %3308 = vmatprep.subr.mxu0 0.0
    %3309 = vmatpush1.msra.mxu0 0.0
    %3310 = vmatprep.subr.mxu0 0.0
    %3311 = vmatpush1.msra.mxu0 0.0
    %3312 = vmatprep.subr.mxu0 0.0
    %3313 = vmatpush1.msra.mxu0 0.0
    %3314 = vmatprep.subr.mxu0 0.0
    %3315 = vmatpush1.msra.mxu0 0.0
    %3316 = vmatprep.subr.mxu0 0.0
    %3317 = vmatpush1.msra.mxu0 0.0
    %3318 = vmatprep.subr.mxu0 0.0
    %3319 = vmatpush1.msra.mxu0 0.0
    %3320 = vmatprep.mubr.f32.mxu0 0.0
    %3321 = vmatmul.mubr.f32.gmra.mrb[0].mxu0 %v3254
    %v3322 = vpop.f32.mrb[0].mxu0
    %v3323 = vadd.f32 %v3252, %v3322
    %v3324 = vpop.f32.mrb[0].mxu0
    %3325 = vdwg.mxu0
    %3326 = vst.msk [vmem:[#allocation2] sm:$0xff] %vm1213, %v3323
    %s3327 = scalar_lea.vmem %s4, 32
    %v3328 = vld [vmem:[%s3327] sm:$0xff]
    %v3329 = vld [vmem:[%s3327 + $0x8] sm:$0xff]
    %v3330 = vld [vmem:[%s3327 + $0x10] sm:$0xff]
    %v3331 = vld [vmem:[%s3327 + $0x18] sm:$0xff]
    %v3332 = vld [vmem:[%s2 + $0x17] sm:$0x1]
    %v3333 = vlaneseq
    %v3334 = vshrl.u32 %v3333, 7
    %v3335 = vsub.s32 0, %v3334
    %v3336 = vrot.slane %v3332, %v3335
    %v3338 = vsel %vm1213, %v3323, 0
    %3340 = vmatprep.subr.mxu0 0.0
    %3341 = vmatpush1.msra.mxu0 %v3328
    %3342 = vmatprep.subr.mxu0 0.0
    %3343 = vmatpush1.msra.mxu0 %v3329
    %3344 = vmatprep.subr.mxu0 0.0
    %3345 = vmatpush1.msra.mxu0 %v3330
    %3346 = vmatprep.subr.mxu0 0.0
    %3347 = vmatpush1.msra.mxu0 %v3331
    %3348 = vmatprep.subr.mxu0 0.0
    %3349 = vmatpush1.msra.mxu0 0.0
    %3350 = vmatprep.subr.mxu0 0.0
    %3351 = vmatpush1.msra.mxu0 0.0
    %3352 = vmatprep.subr.mxu0 0.0
    %3353 = vmatpush1.msra.mxu0 0.0
    %3354 = vmatprep.subr.mxu0 0.0
    %3355 = vmatpush1.msra.mxu0 0.0
    %3356 = vmatprep.subr.mxu0 0.0
    %3357 = vmatpush1.msra.mxu0 0.0
    %3358 = vmatprep.subr.mxu0 0.0
    %3359 = vmatpush1.msra.mxu0 0.0
    %3360 = vmatprep.subr.mxu0 0.0
    %3361 = vmatpush1.msra.mxu0 0.0
    %3362 = vmatprep.subr.mxu0 0.0
    %3363 = vmatpush1.msra.mxu0 0.0
    %3364 = vmatprep.subr.mxu0 0.0
    %3365 = vmatpush1.msra.mxu0 0.0
    %3366 = vmatprep.subr.mxu0 0.0
    %3367 = vmatpush1.msra.mxu0 0.0
    %3368 = vmatprep.subr.mxu0 0.0
    %3369 = vmatpush1.msra.mxu0 0.0
    %3370 = vmatprep.subr.mxu0 0.0
    %3371 = vmatpush1.msra.mxu0 0.0
    %3372 = vmatprep.subr.mxu0 0.0
    %3373 = vmatpush1.msra.mxu0 0.0
    %3374 = vmatprep.subr.mxu0 0.0
    %3375 = vmatpush1.msra.mxu0 0.0
    %3376 = vmatprep.subr.mxu0 0.0
    %3377 = vmatpush1.msra.mxu0 0.0
    %3378 = vmatprep.subr.mxu0 0.0
    %3379 = vmatpush1.msra.mxu0 0.0
    %3380 = vmatprep.subr.mxu0 0.0
    %3381 = vmatpush1.msra.mxu0 0.0
    %3382 = vmatprep.subr.mxu0 0.0
    %3383 = vmatpush1.msra.mxu0 0.0
    %3384 = vmatprep.subr.mxu0 0.0
    %3385 = vmatpush1.msra.mxu0 0.0
    %3386 = vmatprep.subr.mxu0 0.0
    %3387 = vmatpush1.msra.mxu0 0.0
    %3388 = vmatprep.subr.mxu0 0.0
    %3389 = vmatpush1.msra.mxu0 0.0
    %3390 = vmatprep.subr.mxu0 0.0
    %3391 = vmatpush1.msra.mxu0 0.0
    %3392 = vmatprep.subr.mxu0 0.0
    %3393 = vmatpush1.msra.mxu0 0.0
    %3394 = vmatprep.subr.mxu0 0.0
    %3395 = vmatpush1.msra.mxu0 0.0
    %3396 = vmatprep.subr.mxu0 0.0
    %3397 = vmatpush1.msra.mxu0 0.0
    %3398 = vmatprep.subr.mxu0 0.0
    %3399 = vmatpush1.msra.mxu0 0.0
    %3400 = vmatprep.subr.mxu0 0.0
    %3401 = vmatpush1.msra.mxu0 0.0
    %3402 = vmatprep.subr.mxu0 0.0
    %3403 = vmatpush1.msra.mxu0 0.0
    %3404 = vmatprep.mubr.f32.mxu0 0.0
    %3405 = vmatmul.mubr.f32.gmra.mrb[0].mxu0 %v3338
    %v3406 = vpop.f32.mrb[0].mxu0
    %v3407 = vadd.f32 %v3336, %v3406
    %v3408 = vpop.f32.mrb[0].mxu0
    %3409 = vdwg.mxu0
    %v3410 = vmax.f32 %v3407, 0.0
    %s3411 = scalar_lea.vmem %s4, 64
    %v3412 = vld [vmem:[%s3411] sm:$0xff]
    %v3413 = vld [vmem:[%s3411 + $0x8] sm:$0xff]
    %v3414 = vld [vmem:[%s3411 + $0x10] sm:$0xff]
    %v3415 = vld [vmem:[%s3411 + $0x18] sm:$0xff]
    %v3416 = vld [vmem:[%s2 + $0x18] sm:$0x1]
    %v3417 = vlaneseq
    %v3418 = vshrl.u32 %v3417, 7
    %v3419 = vsub.s32 0, %v3418
    %v3420 = vrot.slane %v3416, %v3419
    %v3422 = vsel %vm1213, %v3410, 0
    %3424 = vmatprep.subr.mxu0 0.0
    %3425 = vmatpush1.msra.mxu0 %v3412
    %3426 = vmatprep.subr.mxu0 0.0
    %3427 = vmatpush1.msra.mxu0 %v3413
    %3428 = vmatprep.subr.mxu0 0.0
    %3429 = vmatpush1.msra.mxu0 %v3414
    %3430 = vmatprep.subr.mxu0 0.0
    %3431 = vmatpush1.msra.mxu0 %v3415
    %3432 = vmatprep.subr.mxu0 0.0
    %3433 = vmatpush1.msra.mxu0 0.0
    %3434 = vmatprep.subr.mxu0 0.0
    %3435 = vmatpush1.msra.mxu0 0.0
    %3436 = vmatprep.subr.mxu0 0.0
    %3437 = vmatpush1.msra.mxu0 0.0
    %3438 = vmatprep.subr.mxu0 0.0
    %3439 = vmatpush1.msra.mxu0 0.0
    %3440 = vmatprep.subr.mxu0 0.0
    %3441 = vmatpush1.msra.mxu0 0.0
    %3442 = vmatprep.subr.mxu0 0.0
    %3443 = vmatpush1.msra.mxu0 0.0
    %3444 = vmatprep.subr.mxu0 0.0
    %3445 = vmatpush1.msra.mxu0 0.0
    %3446 = vmatprep.subr.mxu0 0.0
    %3447 = vmatpush1.msra.mxu0 0.0
    %3448 = vmatprep.subr.mxu0 0.0
    %3449 = vmatpush1.msra.mxu0 0.0
    %3450 = vmatprep.subr.mxu0 0.0
    %3451 = vmatpush1.msra.mxu0 0.0
    %3452 = vmatprep.subr.mxu0 0.0
    %3453 = vmatpush1.msra.mxu0 0.0
    %3454 = vmatprep.subr.mxu0 0.0
    %3455 = vmatpush1.msra.mxu0 0.0
    %3456 = vmatprep.subr.mxu0 0.0
    %3457 = vmatpush1.msra.mxu0 0.0
    %3458 = vmatprep.subr.mxu0 0.0
    %3459 = vmatpush1.msra.mxu0 0.0
    %3460 = vmatprep.subr.mxu0 0.0
    %3461 = vmatpush1.msra.mxu0 0.0
    %3462 = vmatprep.subr.mxu0 0.0
    %3463 = vmatpush1.msra.mxu0 0.0
    %3464 = vmatprep.subr.mxu0 0.0
    %3465 = vmatpush1.msra.mxu0 0.0
    %3466 = vmatprep.subr.mxu0 0.0
    %3467 = vmatpush1.msra.mxu0 0.0
    %3468 = vmatprep.subr.mxu0 0.0
    %3469 = vmatpush1.msra.mxu0 0.0
    %3470 = vmatprep.subr.mxu0 0.0
    %3471 = vmatpush1.msra.mxu0 0.0
    %3472 = vmatprep.subr.mxu0 0.0
    %3473 = vmatpush1.msra.mxu0 0.0
    %3474 = vmatprep.subr.mxu0 0.0
    %3475 = vmatpush1.msra.mxu0 0.0
    %3476 = vmatprep.subr.mxu0 0.0
    %3477 = vmatpush1.msra.mxu0 0.0
    %3478 = vmatprep.subr.mxu0 0.0
    %3479 = vmatpush1.msra.mxu0 0.0
    %3480 = vmatprep.subr.mxu0 0.0
    %3481 = vmatpush1.msra.mxu0 0.0
    %3482 = vmatprep.subr.mxu0 0.0
    %3483 = vmatpush1.msra.mxu0 0.0
    %3484 = vmatprep.subr.mxu0 0.0
    %3485 = vmatpush1.msra.mxu0 0.0
    %3486 = vmatprep.subr.mxu0 0.0
    %3487 = vmatpush1.msra.mxu0 0.0
    %3488 = vmatprep.mubr.f32.mxu0 0.0
    %3489 = vmatmul.mubr.f32.gmra.mrb[0].mxu0 %v3422
    %v3490 = vpop.f32.mrb[0].mxu0
    %v3491 = vadd.f32 %v3420, %v3490
    %v3492 = vpop.f32.mrb[0].mxu0
    %3493 = vdwg.mxu0
    %v3494 = vmax.f32 %v3491, 0.0
    %s3495 = scalar_lea.vmem %s4, 96
    %v3496 = vld [vmem:[%s3495] sm:$0xff]
    %v3497 = vld [vmem:[%s3495 + $0x8] sm:$0xff]
    %v3498 = vld [vmem:[%s2 + $0x19] sm:$0x1]
    %v3499 = vlaneseq
    %v3500 = vshrl.u32 %v3499, 7
    %v3501 = vsub.s32 0, %v3500
    %v3502 = vrot.slane %v3498, %v3501
    %v3504 = vsel %vm67, %v3494, 0
    %3506 = vmatprep.subr.mxu0 0.0
    %3507 = vmatpush1.msra.mxu0 %v3496
    %3508 = vmatprep.subr.mxu0 0.0
    %3509 = vmatpush1.msra.mxu0 %v3497
    %3510 = vmatprep.subr.mxu0 0.0
    %3511 = vmatpush1.msra.mxu0 0.0
    %3512 = vmatprep.subr.mxu0 0.0
    %3513 = vmatpush1.msra.mxu0 0.0
    %3514 = vmatprep.subr.mxu0 0.0
    %3515 = vmatpush1.msra.mxu0 0.0
    %3516 = vmatprep.subr.mxu0 0.0
    %3517 = vmatpush1.msra.mxu0 0.0
    %3518 = vmatprep.subr.mxu0 0.0
    %3519 = vmatpush1.msra.mxu0 0.0
    %3520 = vmatprep.subr.mxu0 0.0
    %3521 = vmatpush1.msra.mxu0 0.0
    %3522 = vmatprep.subr.mxu0 0.0
    %3523 = vmatpush1.msra.mxu0 0.0
    %3524 = vmatprep.subr.mxu0 0.0
    %3525 = vmatpush1.msra.mxu0 0.0
    %3526 = vmatprep.subr.mxu0 0.0
    %3527 = vmatpush1.msra.mxu0 0.0
    %3528 = vmatprep.subr.mxu0 0.0
    %3529 = vmatpush1.msra.mxu0 0.0
    %3530 = vmatprep.subr.mxu0 0.0
    %3531 = vmatpush1.msra.mxu0 0.0
    %3532 = vmatprep.subr.mxu0 0.0
    %3533 = vmatpush1.msra.mxu0 0.0
    %3534 = vmatprep.subr.mxu0 0.0
    %3535 = vmatpush1.msra.mxu0 0.0
    %3536 = vmatprep.subr.mxu0 0.0
    %3537 = vmatpush1.msra.mxu0 0.0
    %3538 = vmatprep.subr.mxu0 0.0
    %3539 = vmatpush1.msra.mxu0 0.0
    %3540 = vmatprep.subr.mxu0 0.0
    %3541 = vmatpush1.msra.mxu0 0.0
    %3542 = vmatprep.subr.mxu0 0.0
    %3543 = vmatpush1.msra.mxu0 0.0
    %3544 = vmatprep.subr.mxu0 0.0
    %3545 = vmatpush1.msra.mxu0 0.0
    %3546 = vmatprep.subr.mxu0 0.0
    %3547 = vmatpush1.msra.mxu0 0.0
    %3548 = vmatprep.subr.mxu0 0.0
    %3549 = vmatpush1.msra.mxu0 0.0
    %3550 = vmatprep.subr.mxu0 0.0
    %3551 = vmatpush1.msra.mxu0 0.0
    %3552 = vmatprep.subr.mxu0 0.0
    %3553 = vmatpush1.msra.mxu0 0.0
    %3554 = vmatprep.subr.mxu0 0.0
    %3555 = vmatpush1.msra.mxu0 0.0
    %3556 = vmatprep.subr.mxu0 0.0
    %3557 = vmatpush1.msra.mxu0 0.0
    %3558 = vmatprep.subr.mxu0 0.0
    %3559 = vmatpush1.msra.mxu0 0.0
    %3560 = vmatprep.subr.mxu0 0.0
    %3561 = vmatpush1.msra.mxu0 0.0
    %3562 = vmatprep.subr.mxu0 0.0
    %3563 = vmatpush1.msra.mxu0 0.0
    %3564 = vmatprep.subr.mxu0 0.0
    %3565 = vmatpush1.msra.mxu0 0.0
    %3566 = vmatprep.subr.mxu0 0.0
    %3567 = vmatpush1.msra.mxu0 0.0
    %3568 = vmatprep.subr.mxu0 0.0
    %3569 = vmatpush1.msra.mxu0 0.0
    %3570 = vmatprep.mubr.f32.mxu0 0.0
    %3571 = vmatmul.mubr.f32.gmra.mrb[0].mxu0 %v3504
    %v3572 = vpop.f32.mrb[0].mxu0
    %v3573 = vadd.f32 %v3502, %v3572
    %v3574 = vpop.f32.mrb[0].mxu0
    %3575 = vdwg.mxu0
    %vm3576 = vcmask 7168
    %3577 = vst.msk [vmem:[%s5] sm:$0xff] %vm3576, %v3573
    // Predicated region
    $region22: #{transformer_model_cnn_forward.1} parent=1 // pred_check
      _
    $region23: #{transformer_model_cnn_forward.1} parent=1 // pred_check_branch
      %3579 = sbr.rel (0) target = $region25
    $region24: #{transformer_model_cnn_forward.1} parent=1 // pred_region
      _
    $region25: #{transformer_model_cnn_forward.1} parent=1 // pred_fallthru
      _
    // Predicated region
    $region26: #{transformer_model_cnn_forward.1} parent=1 // pred_check
      _
    $region27: #{transformer_model_cnn_forward.1} parent=1 // pred_check_branch
      %3581 = sbr.rel (0) target = $region29
    $region28: #{transformer_model_cnn_forward.1} parent=1 // pred_region
      %s3583 = ssub.s32 128, 128
      %3584 = vsyncadd [#allocation3], %s3583
      %s3586 = sshll.u32 [#allocation2], 4
      %s3587 = int_to_ptr.vmem [resolvable:$true] %s3586
      %3589 = dma.vmem_to_hbm [thread:$0]  %s3587, 128, %s6, [#allocation3]
    $region29: #{transformer_model_cnn_forward.1} parent=1 // pred_fallthru
      _
    // Predicated region
    $region30: #{transformer_model_cnn_forward.1} parent=1 // pred_check
      _
    $region31: #{transformer_model_cnn_forward.1} parent=1 // pred_check_branch
      %3591 = sbr.rel (0) target = $region33
    $region32: #{transformer_model_cnn_forward.1} parent=1 // pred_region
      _
    $region33: #{transformer_model_cnn_forward.1} parent=1 // pred_fallthru
      _
    // Predicated region
    $region34: #{transformer_model_cnn_forward.1} parent=1 // pred_check
      _
    $region35: #{transformer_model_cnn_forward.1} parent=1 // pred_check_branch
      %3593 = sbr.rel (0) target = $region37
    $region36: #{transformer_model_cnn_forward.1} parent=1 // pred_region
      %3594 = dma.done [#allocation3], 128
    $region37: #{transformer_model_cnn_forward.1} parent=1 // pred_fallthru
      _
    %3595 = vsyncpa [#allocation3], 1

</llo_original>
